<compile_context>
chip_gen: v7x
topology: tpu7x:2x2x1
jax: 0.10.0
libtpu: 0.0.40
codegen_flags: <defaults>
</compile_context>

<pallas_src>
import jax
import jax.numpy as jnp
from jax.experimental import pallas as pl
from jax.experimental.pallas import tpu as pltpu


# ----------------------------------------------------------------------------- kernel
def keypoints_gru_kernel(
    x_ref,                                  # [L, NB, F]  bf16, time-major batch block
    wir_ref, wiz_ref, win_ref,              # [F, H]  forward input weights, per gate
    whr_ref, whz_ref, whn_ref,              # [H, H]  forward hidden weights, per gate
    brf_ref, bzf_ref, bnif_ref, bhnf_ref,   # [1, H]  folded forward biases
    wbr_ref, wbz_ref, wbn_ref,              # [F, H]  backward input weights, per gate
    brb_ref, bzb_ref, bnib_ref, bhnb_ref,   # [1, H]  folded backward biases
    w1a_ref, w1b_ref,                       # [H, H]  Linear(2H->H) split into two halves
    hscale_ref, hshift_ref,                 # [1, H]  BatchNorm(eval) + b1 folded affine
    w2_ref, b2_ref,                         # [H, C], [1, C]
    o_ref,                                  # [NB, C] softmax probabilities
):
    f32 = jnp.float32
    L, NB, F = x_ref.shape
    H = whr_ref.shape[0]

    x = x_ref[...]                          # [L, NB, F] bf16
    x2d = x.reshape(L * NB, F)              # leading-dim merge (lane dim untouched)

    # ---- hoisted input projection for every timestep, biases folded in ----
    gir = (jnp.dot(x2d, wir_ref[...], preferred_element_type=f32)
           + brf_ref[...]).reshape(L, NB, H)
    giz = (jnp.dot(x2d, wiz_ref[...], preferred_element_type=f32)
           + bzf_ref[...]).reshape(L, NB, H)
    gin = (jnp.dot(x2d, win_ref[...], preferred_element_type=f32)
           + bnif_ref[...]).reshape(L, NB, H)

    whr = whr_ref[...]
    whz = whz_ref[...]
    whn = whn_ref[...]
    bhn_bc = jnp.broadcast_to(bhnf_ref[...], (NB, H))   # hoisted broadcast (no per-iter CSE)

    # ---- forward recurrence (statically unrolled, only h @ Wh on the critical path) ----
    h = jnp.zeros((NB, H), f32)
    for t in range(L):
        h_mm = h.astype(whr.dtype)
        ghr = jnp.dot(h_mm, whr, preferred_element_type=f32)
        ghz = jnp.dot(h_mm, whz, preferred_element_type=f32)
        ghn = jnp.dot(h_mm, whn, preferred_element_type=f32) + bhn_bc
        r = jax.nn.sigmoid(gir[t] + ghr)
        z = jax.nn.sigmoid(giz[t] + ghz)
        n = jnp.tanh(gin[t] + r * ghn)
        h = (1.0 - z) * n + z * h
    h_fwd = h

    # ---- backward direction, specialized: one step on x[:, -1] from h0 == 0 ----
    x_last = x[L - 1]                                   # [NB, F] bf16
    gr_b = jnp.dot(x_last, wbr_ref[...], preferred_element_type=f32) + brb_ref[...]
    gz_b = jnp.dot(x_last, wbz_ref[...], preferred_element_type=f32) + bzb_ref[...]
    gn_b = jnp.dot(x_last, wbn_ref[...], preferred_element_type=f32) + bnib_ref[...]
    r_b = jax.nn.sigmoid(gr_b)
    z_b = jax.nn.sigmoid(gz_b)
    n_b = jnp.tanh(gn_b + r_b * bhnb_ref[...])
    h_bwd = (1.0 - z_b) * n_b                           # h0 == 0 => z*h0 term vanishes

    # ---- head: Linear(2H->H) as two half-matmuls (no lane-offset concat),
    #      BatchNorm(eval)+bias folded affine, ReLU, Linear(H->C), softmax ----
    mm_dtype = w1a_ref.dtype
    y = (jnp.dot(h_fwd.astype(mm_dtype), w1a_ref[...], preferred_element_type=f32)
         + jnp.dot(h_bwd.astype(mm_dtype), w1b_ref[...], preferred_element_type=f32))
    y = y * hscale_ref[...] + hshift_ref[...]
    y = jnp.maximum(y, 0.0)

    logits = (jnp.dot(y.astype(mm_dtype), w2_ref[...], preferred_element_type=f32)
              + b2_ref[...])
    logits = logits - jnp.max(logits, axis=-1, keepdims=True)
    e = jnp.exp(logits)
    inv = pl.reciprocal(jnp.sum(e, axis=-1, keepdims=True), approx=True)
    o_ref[...] = (e * inv).astype(o_ref.dtype)


# ----------------------------------------------------------------------------- wrapper
def _prepare_kernel_params(p, H, mm_dtype):
    """Split PyTorch-layout GRU/head params per gate, transpose, fold biases / BN."""
    eps = 1e-5

    def split_rows(W):   # [3H, in] -> (Wr, Wz, Wn), each [in, H]
        return W[0:H].T, W[H:2 * H].T, W[2 * H:3 * H].T

    def split_vec(b):
        return b[0:H], b[H:2 * H], b[2 * H:3 * H]

    Wir, Wiz, Win = split_rows(p["W_ih_f"])
    Whr, Whz, Whn = split_rows(p["W_hh_f"])
    bir, biz, bin_ = split_vec(p["b_ih_f"])
    bhr, bhz, bhn = split_vec(p["b_hh_f"])

    Wbr, Wbz, Wbn = split_rows(p["W_ih_b"])
    # Backward hidden weights W_hh_b are NOT needed: the one backward step starts at h0 == 0.
    bbr_i, bbz_i, bbn_i = split_vec(p["b_ih_b"])
    bbr_h, bbz_h, bbn_h = split_vec(p["b_hh_b"])

    # eval-mode BatchNorm folded with Linear-1 bias into one affine
    s = p["bn_gamma"] / jnp.sqrt(p["bn_var"] + eps)
    head_scale = s
    head_shift = s * (p["b1"] - p["bn_mean"]) + p["bn_beta"]

    W1a = p["W1"][:, :H].T          # consumes h_fwd
    W1b = p["W1"][:, H:].T          # consumes h_bwd
    W2T = p["W2"].T

    row = lambda v: v.reshape(1, -1).astype(jnp.float32)
    w = lambda m: m.astype(mm_dtype)

    ordered = [
        w(Wir), w(Wiz), w(Win), w(Whr), w(Whz), w(Whn),
        row(bir + bhr), row(biz + bhz), row(bin_), row(bhn),
        w(Wbr), w(Wbz), w(Wbn),
        row(bbr_i + bbr_h), row(bbz_i + bbz_h), row(bbn_i), row(bbn_h),
        w(W1a), w(W1b), row(head_scale), row(head_shift),
        w(W2T), row(p["b2"]),
    ]
    return ordered


def keypoints_gru_forward(x, params, *, hidden_dim, num_classes,
                          mm_dtype=jnp.bfloat16):
    """x: [N, L, F] float32 -> [N, num_classes] softmax probabilities."""
    N, L, F = x.shape
    H, C = hidden_dim, num_classes
    weights = _prepare_kernel_params(params, H, mm_dtype)

    # Pad batch to a sublane multiple; block it so a "parallel" grid axis can be
    # split across TensorCores (v7x) when N is large. Weights stay resident.
    N_pad = ((N + 7) // 8) * 8
    NB = min(N_pad, 128)
    N_pad = ((N_pad + NB - 1) // NB) * NB
    grid = (N_pad // NB,)

    x_tm = jnp.transpose(x, (1, 0, 2)).astype(jnp.float32)      # time-major [L, N, F]
    if N_pad != N:
        x_tm = jnp.pad(x_tm, ((0, 0), (0, N_pad - N), (0, 0)))
    x_tm = x_tm.astype(mm_dtype)

    x_spec = pl.BlockSpec((L, NB, F), lambda i: (0, i, 0))
    w_specs = [pl.BlockSpec(w.shape, lambda i: (0, 0)) for w in weights]
    out_spec = pl.BlockSpec((NB, C), lambda i: (i, 0))

    out = pl.pallas_call(
        keypoints_gru_kernel,
        out_shape=jax.ShapeDtypeStruct((N_pad, C), jnp.float32),
        grid_spec=pltpu.PrefetchScalarGridSpec(
            num_scalar_prefetch=0,
            grid=grid,
            in_specs=[x_spec] + w_specs,
            out_specs=out_spec,
        ),
        compiler_params=pltpu.CompilerParams(
            dimension_semantics=("parallel",)),
    )(x_tm, *weights)
    return out[:N]


# ----------------------------------------------------------------------------- params / reference
def init_params(key, num_features, num_classes, hidden_dim):
    """PyTorch-layout parameters (weight_ih [3H,F], weight_hh [3H,H], gate order r,z,n)."""
    F, H, C = num_features, hidden_dim, num_classes
    ks = jax.random.split(key, 12)

    def unif(k, shape, bound):
        return jax.random.uniform(k, shape, jnp.float32, -bound, bound)

    kg = 1.0 / jnp.sqrt(H)
    k1 = 1.0 / jnp.sqrt(2.0 * H)
    k2 = 1.0 / jnp.sqrt(H)
    return {
        "W_ih_f": unif(ks[0], (3 * H, F), kg), "W_hh_f": unif(ks[1], (3 * H, H), kg),
        "b_ih_f": unif(ks[2], (3 * H,), kg),   "b_hh_f": unif(ks[3], (3 * H,), kg),
        "W_ih_b": unif(ks[4], (3 * H, F), kg), "W_hh_b": unif(ks[5], (3 * H, H), kg),
        "b_ih_b": unif(ks[6], (3 * H,), kg),   "b_hh_b": unif(ks[7], (3 * H,), kg),
        "W1": unif(ks[8], (H, 2 * H), k1), "b1": unif(ks[9], (H,), k1),
        "bn_gamma": jnp.ones((H,), jnp.float32), "bn_beta": jnp.zeros((H,), jnp.float32),
        "bn_mean": jnp.zeros((H,), jnp.float32), "bn_var": jnp.ones((H,), jnp.float32),
        "W2": unif(ks[10], (C, H), k2), "b2": unif(ks[11], (C,), k2),
    }


def keypoints_gru_reference(x, p, *, hidden_dim):
    """Pure-JAX f32 reference mirroring the PyTorch module (eval-mode BatchNorm)."""
    H = hidden_dim
    N, L, _ = x.shape

    def cell(x_t, h, Wih, Whh, bih, bhh):
        gi = x_t @ Wih.T + bih
        gh = h @ Whh.T + bhh
        r = jax.nn.sigmoid(gi[:, :H] + gh[:, :H])
        z = jax.nn.sigmoid(gi[:, H:2 * H] + gh[:, H:2 * H])
        n = jnp.tanh(gi[:, 2 * H:] + r * gh[:, 2 * H:])
        return (1.0 - z) * n + z * h

    h = jnp.zeros((N, H), jnp.float32)
    for t in range(L):
        h = cell(x[:, t], h, p["W_ih_f"], p["W_hh_f"], p["b_ih_f"], p["b_hh_f"])
    h_fwd = h
    h_bwd = cell(x[:, L - 1], jnp.zeros((N, H), jnp.float32),
                 p["W_ih_b"], p["W_hh_b"], p["b_ih_b"], p["b_hh_b"])
    last = jnp.concatenate([h_fwd, h_bwd], axis=-1)
    y = last @ p["W1"].T + p["b1"]
    y = (y - p["bn_mean"]) / jnp.sqrt(p["bn_var"] + 1e-5) * p["bn_gamma"] + p["bn_beta"]
    y = jnp.maximum(y, 0.0)
    logits = y @ p["W2"].T + p["b2"]
    return jax.nn.softmax(logits, axis=-1)


# ----------------------------------------------------------------------------- main
if __name__ == "__main__":
    # Small shapes consistent with the module: x is [N, L, num_features]
    N, L, F = 4, 8, 16
    HIDDEN, CLASSES = 32, 10

    root = jax.random.PRNGKey(0)
    kx, kp = jax.random.split(root)
    x = jax.random.normal(kx, (N, L, F), jnp.float32)
    params = init_params(kp, F, CLASSES, HIDDEN)

    out = keypoints_gru_forward(x, params, hidden_dim=HIDDEN, num_classes=CLASSES)
    out = jax.block_until_ready(out)
    ref = keypoints_gru_reference(x, params, hidden_dim=HIDDEN)

    assert out.shape == (N, CLASSES)
    # rows ~sum to 1 (approx-reciprocal softmax denominator)
    assert bool(jnp.all(jnp.abs(jnp.sum(out, axis=-1) - 1.0) < 1e-2))
    # matches the f32 reference within bf16-matmul / approx-reciprocal tolerance
    assert bool(jnp.max(jnp.abs(out - ref)) < 5e-2)
    print("KERNEL_OK")
</pallas_src>

<mosaic_0001>
module attributes {stable_mosaic.version = 11 : i64} {
  func.func @keypoints_gru_kernel(%arg0: i32, %arg1: memref<8x8x16xbf16, #tpu.memory_space<vmem>>, %arg2: memref<16x32xbf16, #tpu.memory_space<vmem>>, %arg3: memref<16x32xbf16, #tpu.memory_space<vmem>>, %arg4: memref<16x32xbf16, #tpu.memory_space<vmem>>, %arg5: memref<32x32xbf16, #tpu.memory_space<vmem>>, %arg6: memref<32x32xbf16, #tpu.memory_space<vmem>>, %arg7: memref<32x32xbf16, #tpu.memory_space<vmem>>, %arg8: memref<1x32xf32, #tpu.memory_space<vmem>>, %arg9: memref<1x32xf32, #tpu.memory_space<vmem>>, %arg10: memref<1x32xf32, #tpu.memory_space<vmem>>, %arg11: memref<1x32xf32, #tpu.memory_space<vmem>>, %arg12: memref<16x32xbf16, #tpu.memory_space<vmem>>, %arg13: memref<16x32xbf16, #tpu.memory_space<vmem>>, %arg14: memref<16x32xbf16, #tpu.memory_space<vmem>>, %arg15: memref<1x32xf32, #tpu.memory_space<vmem>>, %arg16: memref<1x32xf32, #tpu.memory_space<vmem>>, %arg17: memref<1x32xf32, #tpu.memory_space<vmem>>, %arg18: memref<1x32xf32, #tpu.memory_space<vmem>>, %arg19: memref<32x32xbf16, #tpu.memory_space<vmem>>, %arg20: memref<32x32xbf16, #tpu.memory_space<vmem>>, %arg21: memref<1x32xf32, #tpu.memory_space<vmem>>, %arg22: memref<1x32xf32, #tpu.memory_space<vmem>>, %arg23: memref<32x10xbf16, #tpu.memory_space<vmem>>, %arg24: memref<1x10xf32, #tpu.memory_space<vmem>>, %arg25: memref<8x10xf32, #tpu.memory_space<vmem>>) attributes {dimension_semantics = [#tpu.dimension_semantics<parallel>], iteration_bounds = array<i64: 1>, scalar_prefetch = 0 : i64, scratch_operands = 0 : i64, tpu.core_type = #tpu.core_type<tc>, window_params = [{transform_indices = @transform_0, window_bounds = array<i64: 8, 8, 16>}, {pipeline_mode = #tpu.pipeline_mode<synchronous>, transform_indices = @transform_1, window_bounds = array<i64: 16, 32>}, {pipeline_mode = #tpu.pipeline_mode<synchronous>, transform_indices = @transform_2, window_bounds = array<i64: 16, 32>}, {pipeline_mode = #tpu.pipeline_mode<synchronous>, transform_indices = @transform_3, window_bounds = array<i64: 16, 32>}, {pipeline_mode = #tpu.pipeline_mode<synchronous>, transform_indices = @transform_4, window_bounds = array<i64: 32, 32>}, {pipeline_mode = #tpu.pipeline_mode<synchronous>, transform_indices = @transform_5, window_bounds = array<i64: 32, 32>}, {pipeline_mode = #tpu.pipeline_mode<synchronous>, transform_indices = @transform_6, window_bounds = array<i64: 32, 32>}, {pipeline_mode = #tpu.pipeline_mode<synchronous>, transform_indices = @transform_7, window_bounds = array<i64: 1, 32>}, {pipeline_mode = #tpu.pipeline_mode<synchronous>, transform_indices = @transform_8, window_bounds = array<i64: 1, 32>}, {pipeline_mode = #tpu.pipeline_mode<synchronous>, transform_indices = @transform_9, window_bounds = array<i64: 1, 32>}, {pipeline_mode = #tpu.pipeline_mode<synchronous>, transform_indices = @transform_10, window_bounds = array<i64: 1, 32>}, {pipeline_mode = #tpu.pipeline_mode<synchronous>, transform_indices = @transform_11, window_bounds = array<i64: 16, 32>}, {pipeline_mode = #tpu.pipeline_mode<synchronous>, transform_indices = @transform_12, window_bounds = array<i64: 16, 32>}, {pipeline_mode = #tpu.pipeline_mode<synchronous>, transform_indices = @transform_13, window_bounds = array<i64: 16, 32>}, {pipeline_mode = #tpu.pipeline_mode<synchronous>, transform_indices = @transform_14, window_bounds = array<i64: 1, 32>}, {pipeline_mode = #tpu.pipeline_mode<synchronous>, transform_indices = @transform_15, window_bounds = array<i64: 1, 32>}, {pipeline_mode = #tpu.pipeline_mode<synchronous>, transform_indices = @transform_16, window_bounds = array<i64: 1, 32>}, {pipeline_mode = #tpu.pipeline_mode<synchronous>, transform_indices = @transform_17, window_bounds = array<i64: 1, 32>}, {pipeline_mode = #tpu.pipeline_mode<synchronous>, transform_indices = @transform_18, window_bounds = array<i64: 32, 32>}, {pipeline_mode = #tpu.pipeline_mode<synchronous>, transform_indices = @transform_19, window_bounds = array<i64: 32, 32>}, {pipeline_mode = #tpu.pipeline_mode<synchronous>, transform_indices = @transform_20, window_bounds = array<i64: 1, 32>}, {pipeline_mode = #tpu.pipeline_mode<synchronous>, transform_indices = @transform_21, window_bounds = array<i64: 1, 32>}, {pipeline_mode = #tpu.pipeline_mode<synchronous>, transform_indices = @transform_22, window_bounds = array<i64: 32, 10>}, {pipeline_mode = #tpu.pipeline_mode<synchronous>, transform_indices = @transform_23, window_bounds = array<i64: 1, 10>}, {transform_indices = @transform_24, window_bounds = array<i64: 8, 10>}]} {
    %c0 = arith.constant 0 : index
    %c0_0 = arith.constant 0 : index
    %c0_1 = arith.constant 0 : index
    %0 = vector.load %arg1[%c0, %c0_0, %c0_1] : memref<8x8x16xbf16, #tpu.memory_space<vmem>>, vector<8x8x16xbf16>
    %1 = vector.shape_cast %0 : vector<8x8x16xbf16> to vector<64x16xbf16>
    %c0_2 = arith.constant 0 : index
    %c0_3 = arith.constant 0 : index
    %2 = vector.load %arg2[%c0_2, %c0_3] : memref<16x32xbf16, #tpu.memory_space<vmem>>, vector<16x32xbf16>
    %cst = arith.constant dense<0.000000e+00> : vector<64x32xf32>
    %3 = tpu.matmul %1, %2, %cst {dimension_numbers = #tpu.dot_dimension_numbers<[1], [0], [0], [1], [0, 0, 1, 1], [], []>} : vector<64x16xbf16>, vector<16x32xbf16>, vector<64x32xf32> -> vector<64x32xf32>
    %c0_4 = arith.constant 0 : index
    %c0_5 = arith.constant 0 : index
    %4 = vector.load %arg8[%c0_4, %c0_5] : memref<1x32xf32, #tpu.memory_space<vmem>>, vector<1x32xf32>
    %5 = vector.broadcast %4 : vector<1x32xf32> to vector<64x32xf32>
    %6 = arith.addf %3, %5 : vector<64x32xf32>
    %7 = vector.shape_cast %6 : vector<64x32xf32> to vector<8x8x32xf32>
    %c0_6 = arith.constant 0 : index
    %c0_7 = arith.constant 0 : index
    %8 = vector.load %arg3[%c0_6, %c0_7] : memref<16x32xbf16, #tpu.memory_space<vmem>>, vector<16x32xbf16>
    %cst_8 = arith.constant dense<0.000000e+00> : vector<64x32xf32>
    %9 = tpu.matmul %1, %8, %cst_8 {dimension_numbers = #tpu.dot_dimension_numbers<[1], [0], [0], [1], [0, 0, 1, 1], [], []>} : vector<64x16xbf16>, vector<16x32xbf16>, vector<64x32xf32> -> vector<64x32xf32>
    %c0_9 = arith.constant 0 : index
    %c0_10 = arith.constant 0 : index
    %10 = vector.load %arg9[%c0_9, %c0_10] : memref<1x32xf32, #tpu.memory_space<vmem>>, vector<1x32xf32>
    %11 = vector.broadcast %10 : vector<1x32xf32> to vector<64x32xf32>
    %12 = arith.addf %9, %11 : vector<64x32xf32>
    %13 = vector.shape_cast %12 : vector<64x32xf32> to vector<8x8x32xf32>
    %c0_11 = arith.constant 0 : index
    %c0_12 = arith.constant 0 : index
    %14 = vector.load %arg4[%c0_11, %c0_12] : memref<16x32xbf16, #tpu.memory_space<vmem>>, vector<16x32xbf16>
    %cst_13 = arith.constant dense<0.000000e+00> : vector<64x32xf32>
    %15 = tpu.matmul %1, %14, %cst_13 {dimension_numbers = #tpu.dot_dimension_numbers<[1], [0], [0], [1], [0, 0, 1, 1], [], []>} : vector<64x16xbf16>, vector<16x32xbf16>, vector<64x32xf32> -> vector<64x32xf32>
    %c0_14 = arith.constant 0 : index
    %c0_15 = arith.constant 0 : index
    %16 = vector.load %arg10[%c0_14, %c0_15] : memref<1x32xf32, #tpu.memory_space<vmem>>, vector<1x32xf32>
    %17 = vector.broadcast %16 : vector<1x32xf32> to vector<64x32xf32>
    %18 = arith.addf %15, %17 : vector<64x32xf32>
    %19 = vector.shape_cast %18 : vector<64x32xf32> to vector<8x8x32xf32>
    %c0_16 = arith.constant 0 : index
    %c0_17 = arith.constant 0 : index
    %20 = vector.load %arg5[%c0_16, %c0_17] : memref<32x32xbf16, #tpu.memory_space<vmem>>, vector<32x32xbf16>
    %c0_18 = arith.constant 0 : index
    %c0_19 = arith.constant 0 : index
    %21 = vector.load %arg6[%c0_18, %c0_19] : memref<32x32xbf16, #tpu.memory_space<vmem>>, vector<32x32xbf16>
    %c0_20 = arith.constant 0 : index
    %c0_21 = arith.constant 0 : index
    %22 = vector.load %arg7[%c0_20, %c0_21] : memref<32x32xbf16, #tpu.memory_space<vmem>>, vector<32x32xbf16>
    %c0_22 = arith.constant 0 : index
    %c0_23 = arith.constant 0 : index
    %23 = vector.load %arg11[%c0_22, %c0_23] : memref<1x32xf32, #tpu.memory_space<vmem>>, vector<1x32xf32>
    %24 = vector.shape_cast %23 : vector<1x32xf32> to vector<1x32xf32>
    %25 = vector.broadcast %24 : vector<1x32xf32> to vector<8x32xf32>
    %cst_24 = arith.constant 0.000000e+00 : f32
    %26 = vector.broadcast %cst_24 : f32 to vector<8x32xf32>
    %27 = arith.truncf %26 : vector<8x32xf32> to vector<8x32xbf16>
    %cst_25 = arith.constant dense<0.000000e+00> : vector<8x32xf32>
    %28 = tpu.matmul %27, %20, %cst_25 {dimension_numbers = #tpu.dot_dimension_numbers<[1], [0], [0], [1], [0, 0, 1, 1], [], []>} : vector<8x32xbf16>, vector<32x32xbf16>, vector<8x32xf32> -> vector<8x32xf32>
    %cst_26 = arith.constant dense<0.000000e+00> : vector<8x32xf32>
    %29 = tpu.matmul %27, %21, %cst_26 {dimension_numbers = #tpu.dot_dimension_numbers<[1], [0], [0], [1], [0, 0, 1, 1], [], []>} : vector<8x32xbf16>, vector<32x32xbf16>, vector<8x32xf32> -> vector<8x32xf32>
    %cst_27 = arith.constant dense<0.000000e+00> : vector<8x32xf32>
    %30 = tpu.matmul %27, %22, %cst_27 {dimension_numbers = #tpu.dot_dimension_numbers<[1], [0], [0], [1], [0, 0, 1, 1], [], []>} : vector<8x32xbf16>, vector<32x32xbf16>, vector<8x32xf32> -> vector<8x32xf32>
    %31 = arith.addf %30, %25 : vector<8x32xf32>
    %32 = vector.extract_strided_slice %7 {offsets = [0, 0, 0], sizes = [1, 8, 32], strides = [1, 1, 1]} : vector<8x8x32xf32> to vector<1x8x32xf32>
    %33 = vector.shape_cast %32 : vector<1x8x32xf32> to vector<8x32xf32>
    %34 = arith.addf %33, %28 : vector<8x32xf32>
    %35 = arith.negf %34 : vector<8x32xf32>
    %36 = math.exp %35 : vector<8x32xf32>
    %cst_28 = arith.constant 1.000000e+00 : f32
    %37 = vector.broadcast %cst_28 : f32 to vector<8x32xf32>
    %38 = arith.addf %37, %36 : vector<8x32xf32>
    %39 = arith.divf %37, %38 : vector<8x32xf32>
    %40 = vector.extract_strided_slice %13 {offsets = [0, 0, 0], sizes = [1, 8, 32], strides = [1, 1, 1]} : vector<8x8x32xf32> to vector<1x8x32xf32>
    %41 = vector.shape_cast %40 : vector<1x8x32xf32> to vector<8x32xf32>
    %42 = arith.addf %41, %29 : vector<8x32xf32>
    %43 = arith.negf %42 : vector<8x32xf32>
    %44 = math.exp %43 : vector<8x32xf32>
    %cst_29 = arith.constant 1.000000e+00 : f32
    %45 = vector.broadcast %cst_29 : f32 to vector<8x32xf32>
    %46 = arith.addf %45, %44 : vector<8x32xf32>
    %47 = arith.divf %45, %46 : vector<8x32xf32>
    %48 = vector.extract_strided_slice %19 {offsets = [0, 0, 0], sizes = [1, 8, 32], strides = [1, 1, 1]} : vector<8x8x32xf32> to vector<1x8x32xf32>
    %49 = vector.shape_cast %48 : vector<1x8x32xf32> to vector<8x32xf32>
    %50 = arith.mulf %39, %31 : vector<8x32xf32>
    %51 = arith.addf %49, %50 : vector<8x32xf32>
    %52 = math.tanh %51 : vector<8x32xf32>
    %cst_30 = arith.constant 1.000000e+00 : f32
    %53 = vector.broadcast %cst_30 : f32 to vector<8x32xf32>
    %54 = arith.subf %53, %47 : vector<8x32xf32>
    %55 = arith.mulf %54, %52 : vector<8x32xf32>
    %56 = arith.mulf %47, %26 : vector<8x32xf32>
    %57 = arith.addf %55, %56 : vector<8x32xf32>
    %58 = arith.truncf %57 : vector<8x32xf32> to vector<8x32xbf16>
    %cst_31 = arith.constant dense<0.000000e+00> : vector<8x32xf32>
    %59 = tpu.matmul %58, %20, %cst_31 {dimension_numbers = #tpu.dot_dimension_numbers<[1], [0], [0], [1], [0, 0, 1, 1], [], []>} : vector<8x32xbf16>, vector<32x32xbf16>, vector<8x32xf32> -> vector<8x32xf32>
    %cst_32 = arith.constant dense<0.000000e+00> : vector<8x32xf32>
    %60 = tpu.matmul %58, %21, %cst_32 {dimension_numbers = #tpu.dot_dimension_numbers<[1], [0], [0], [1], [0, 0, 1, 1], [], []>} : vector<8x32xbf16>, vector<32x32xbf16>, vector<8x32xf32> -> vector<8x32xf32>
    %cst_33 = arith.constant dense<0.000000e+00> : vector<8x32xf32>
    %61 = tpu.matmul %58, %22, %cst_33 {dimension_numbers = #tpu.dot_dimension_numbers<[1], [0], [0], [1], [0, 0, 1, 1], [], []>} : vector<8x32xbf16>, vector<32x32xbf16>, vector<8x32xf32> -> vector<8x32xf32>
    %62 = arith.addf %61, %25 : vector<8x32xf32>
    %63 = vector.extract_strided_slice %7 {offsets = [1, 0, 0], sizes = [1, 8, 32], strides = [1, 1, 1]} : vector<8x8x32xf32> to vector<1x8x32xf32>
    %64 = vector.shape_cast %63 : vector<1x8x32xf32> to vector<8x32xf32>
    %65 = arith.addf %64, %59 : vector<8x32xf32>
    %66 = arith.negf %65 : vector<8x32xf32>
    %67 = math.exp %66 : vector<8x32xf32>
    %cst_34 = arith.constant 1.000000e+00 : f32
    %68 = vector.broadcast %cst_34 : f32 to vector<8x32xf32>
    %69 = arith.addf %68, %67 : vector<8x32xf32>
    %70 = arith.divf %68, %69 : vector<8x32xf32>
    %71 = vector.extract_strided_slice %13 {offsets = [1, 0, 0], sizes = [1, 8, 32], strides = [1, 1, 1]} : vector<8x8x32xf32> to vector<1x8x32xf32>
    %72 = vector.shape_cast %71 : vector<1x8x32xf32> to vector<8x32xf32>
    %73 = arith.addf %72, %60 : vector<8x32xf32>
    %74 = arith.negf %73 : vector<8x32xf32>
    %75 = math.exp %74 : vector<8x32xf32>
    %cst_35 = arith.constant 1.000000e+00 : f32
    %76 = vector.broadcast %cst_35 : f32 to vector<8x32xf32>
    %77 = arith.addf %76, %75 : vector<8x32xf32>
    %78 = arith.divf %76, %77 : vector<8x32xf32>
    %79 = vector.extract_strided_slice %19 {offsets = [1, 0, 0], sizes = [1, 8, 32], strides = [1, 1, 1]} : vector<8x8x32xf32> to vector<1x8x32xf32>
    %80 = vector.shape_cast %79 : vector<1x8x32xf32> to vector<8x32xf32>
    %81 = arith.mulf %70, %62 : vector<8x32xf32>
    %82 = arith.addf %80, %81 : vector<8x32xf32>
    %83 = math.tanh %82 : vector<8x32xf32>
    %cst_36 = arith.constant 1.000000e+00 : f32
    %84 = vector.broadcast %cst_36 : f32 to vector<8x32xf32>
    %85 = arith.subf %84, %78 : vector<8x32xf32>
    %86 = arith.mulf %85, %83 : vector<8x32xf32>
    %87 = arith.mulf %78, %57 : vector<8x32xf32>
    %88 = arith.addf %86, %87 : vector<8x32xf32>
    %89 = arith.truncf %88 : vector<8x32xf32> to vector<8x32xbf16>
    %cst_37 = arith.constant dense<0.000000e+00> : vector<8x32xf32>
    %90 = tpu.matmul %89, %20, %cst_37 {dimension_numbers = #tpu.dot_dimension_numbers<[1], [0], [0], [1], [0, 0, 1, 1], [], []>} : vector<8x32xbf16>, vector<32x32xbf16>, vector<8x32xf32> -> vector<8x32xf32>
    %cst_38 = arith.constant dense<0.000000e+00> : vector<8x32xf32>
    %91 = tpu.matmul %89, %21, %cst_38 {dimension_numbers = #tpu.dot_dimension_numbers<[1], [0], [0], [1], [0, 0, 1, 1], [], []>} : vector<8x32xbf16>, vector<32x32xbf16>, vector<8x32xf32> -> vector<8x32xf32>
    %cst_39 = arith.constant dense<0.000000e+00> : vector<8x32xf32>
    %92 = tpu.matmul %89, %22, %cst_39 {dimension_numbers = #tpu.dot_dimension_numbers<[1], [0], [0], [1], [0, 0, 1, 1], [], []>} : vector<8x32xbf16>, vector<32x32xbf16>, vector<8x32xf32> -> vector<8x32xf32>
    %93 = arith.addf %92, %25 : vector<8x32xf32>
    %94 = vector.extract_strided_slice %7 {offsets = [2, 0, 0], sizes = [1, 8, 32], strides = [1, 1, 1]} : vector<8x8x32xf32> to vector<1x8x32xf32>
    %95 = vector.shape_cast %94 : vector<1x8x32xf32> to vector<8x32xf32>
    %96 = arith.addf %95, %90 : vector<8x32xf32>
    %97 = arith.negf %96 : vector<8x32xf32>
    %98 = math.exp %97 : vector<8x32xf32>
    %cst_40 = arith.constant 1.000000e+00 : f32
    %99 = vector.broadcast %cst_40 : f32 to vector<8x32xf32>
    %100 = arith.addf %99, %98 : vector<8x32xf32>
    %101 = arith.divf %99, %100 : vector<8x32xf32>
    %102 = vector.extract_strided_slice %13 {offsets = [2, 0, 0], sizes = [1, 8, 32], strides = [1, 1, 1]} : vector<8x8x32xf32> to vector<1x8x32xf32>
    %103 = vector.shape_cast %102 : vector<1x8x32xf32> to vector<8x32xf32>
    %104 = arith.addf %103, %91 : vector<8x32xf32>
    %105 = arith.negf %104 : vector<8x32xf32>
    %106 = math.exp %105 : vector<8x32xf32>
    %cst_41 = arith.constant 1.000000e+00 : f32
    %107 = vector.broadcast %cst_41 : f32 to vector<8x32xf32>
    %108 = arith.addf %107, %106 : vector<8x32xf32>
    %109 = arith.divf %107, %108 : vector<8x32xf32>
    %110 = vector.extract_strided_slice %19 {offsets = [2, 0, 0], sizes = [1, 8, 32], strides = [1, 1, 1]} : vector<8x8x32xf32> to vector<1x8x32xf32>
    %111 = vector.shape_cast %110 : vector<1x8x32xf32> to vector<8x32xf32>
    %112 = arith.mulf %101, %93 : vector<8x32xf32>
    %113 = arith.addf %111, %112 : vector<8x32xf32>
    %114 = math.tanh %113 : vector<8x32xf32>
    %cst_42 = arith.constant 1.000000e+00 : f32
    %115 = vector.broadcast %cst_42 : f32 to vector<8x32xf32>
    %116 = arith.subf %115, %109 : vector<8x32xf32>
    %117 = arith.mulf %116, %114 : vector<8x32xf32>
    %118 = arith.mulf %109, %88 : vector<8x32xf32>
    %119 = arith.addf %117, %118 : vector<8x32xf32>
    %120 = arith.truncf %119 : vector<8x32xf32> to vector<8x32xbf16>
    %cst_43 = arith.constant dense<0.000000e+00> : vector<8x32xf32>
    %121 = tpu.matmul %120, %20, %cst_43 {dimension_numbers = #tpu.dot_dimension_numbers<[1], [0], [0], [1], [0, 0, 1, 1], [], []>} : vector<8x32xbf16>, vector<32x32xbf16>, vector<8x32xf32> -> vector<8x32xf32>
    %cst_44 = arith.constant dense<0.000000e+00> : vector<8x32xf32>
    %122 = tpu.matmul %120, %21, %cst_44 {dimension_numbers = #tpu.dot_dimension_numbers<[1], [0], [0], [1], [0, 0, 1, 1], [], []>} : vector<8x32xbf16>, vector<32x32xbf16>, vector<8x32xf32> -> vector<8x32xf32>
    %cst_45 = arith.constant dense<0.000000e+00> : vector<8x32xf32>
    %123 = tpu.matmul %120, %22, %cst_45 {dimension_numbers = #tpu.dot_dimension_numbers<[1], [0], [0], [1], [0, 0, 1, 1], [], []>} : vector<8x32xbf16>, vector<32x32xbf16>, vector<8x32xf32> -> vector<8x32xf32>
    %124 = arith.addf %123, %25 : vector<8x32xf32>
    %125 = vector.extract_strided_slice %7 {offsets = [3, 0, 0], sizes = [1, 8, 32], strides = [1, 1, 1]} : vector<8x8x32xf32> to vector<1x8x32xf32>
    %126 = vector.shape_cast %125 : vector<1x8x32xf32> to vector<8x32xf32>
    %127 = arith.addf %126, %121 : vector<8x32xf32>
    %128 = arith.negf %127 : vector<8x32xf32>
    %129 = math.exp %128 : vector<8x32xf32>
    %cst_46 = arith.constant 1.000000e+00 : f32
    %130 = vector.broadcast %cst_46 : f32 to vector<8x32xf32>
    %131 = arith.addf %130, %129 : vector<8x32xf32>
    %132 = arith.divf %130, %131 : vector<8x32xf32>
    %133 = vector.extract_strided_slice %13 {offsets = [3, 0, 0], sizes = [1, 8, 32], strides = [1, 1, 1]} : vector<8x8x32xf32> to vector<1x8x32xf32>
    %134 = vector.shape_cast %133 : vector<1x8x32xf32> to vector<8x32xf32>
    %135 = arith.addf %134, %122 : vector<8x32xf32>
    %136 = arith.negf %135 : vector<8x32xf32>
    %137 = math.exp %136 : vector<8x32xf32>
    %cst_47 = arith.constant 1.000000e+00 : f32
    %138 = vector.broadcast %cst_47 : f32 to vector<8x32xf32>
    %139 = arith.addf %138, %137 : vector<8x32xf32>
    %140 = arith.divf %138, %139 : vector<8x32xf32>
    %141 = vector.extract_strided_slice %19 {offsets = [3, 0, 0], sizes = [1, 8, 32], strides = [1, 1, 1]} : vector<8x8x32xf32> to vector<1x8x32xf32>
    %142 = vector.shape_cast %141 : vector<1x8x32xf32> to vector<8x32xf32>
    %143 = arith.mulf %132, %124 : vector<8x32xf32>
    %144 = arith.addf %142, %143 : vector<8x32xf32>
    %145 = math.tanh %144 : vector<8x32xf32>
    %cst_48 = arith.constant 1.000000e+00 : f32
    %146 = vector.broadcast %cst_48 : f32 to vector<8x32xf32>
    %147 = arith.subf %146, %140 : vector<8x32xf32>
    %148 = arith.mulf %147, %145 : vector<8x32xf32>
    %149 = arith.mulf %140, %119 : vector<8x32xf32>
    %150 = arith.addf %148, %149 : vector<8x32xf32>
    %151 = arith.truncf %150 : vector<8x32xf32> to vector<8x32xbf16>
    %cst_49 = arith.constant dense<0.000000e+00> : vector<8x32xf32>
    %152 = tpu.matmul %151, %20, %cst_49 {dimension_numbers = #tpu.dot_dimension_numbers<[1], [0], [0], [1], [0, 0, 1, 1], [], []>} : vector<8x32xbf16>, vector<32x32xbf16>, vector<8x32xf32> -> vector<8x32xf32>
    %cst_50 = arith.constant dense<0.000000e+00> : vector<8x32xf32>
    %153 = tpu.matmul %151, %21, %cst_50 {dimension_numbers = #tpu.dot_dimension_numbers<[1], [0], [0], [1], [0, 0, 1, 1], [], []>} : vector<8x32xbf16>, vector<32x32xbf16>, vector<8x32xf32> -> vector<8x32xf32>
    %cst_51 = arith.constant dense<0.000000e+00> : vector<8x32xf32>
    %154 = tpu.matmul %151, %22, %cst_51 {dimension_numbers = #tpu.dot_dimension_numbers<[1], [0], [0], [1], [0, 0, 1, 1], [], []>} : vector<8x32xbf16>, vector<32x32xbf16>, vector<8x32xf32> -> vector<8x32xf32>
    %155 = arith.addf %154, %25 : vector<8x32xf32>
    %156 = vector.extract_strided_slice %7 {offsets = [4, 0, 0], sizes = [1, 8, 32], strides = [1, 1, 1]} : vector<8x8x32xf32> to vector<1x8x32xf32>
    %157 = vector.shape_cast %156 : vector<1x8x32xf32> to vector<8x32xf32>
    %158 = arith.addf %157, %152 : vector<8x32xf32>
    %159 = arith.negf %158 : vector<8x32xf32>
    %160 = math.exp %159 : vector<8x32xf32>
    %cst_52 = arith.constant 1.000000e+00 : f32
    %161 = vector.broadcast %cst_52 : f32 to vector<8x32xf32>
    %162 = arith.addf %161, %160 : vector<8x32xf32>
    %163 = arith.divf %161, %162 : vector<8x32xf32>
    %164 = vector.extract_strided_slice %13 {offsets = [4, 0, 0], sizes = [1, 8, 32], strides = [1, 1, 1]} : vector<8x8x32xf32> to vector<1x8x32xf32>
    %165 = vector.shape_cast %164 : vector<1x8x32xf32> to vector<8x32xf32>
    %166 = arith.addf %165, %153 : vector<8x32xf32>
    %167 = arith.negf %166 : vector<8x32xf32>
    %168 = math.exp %167 : vector<8x32xf32>
    %cst_53 = arith.constant 1.000000e+00 : f32
    %169 = vector.broadcast %cst_53 : f32 to vector<8x32xf32>
    %170 = arith.addf %169, %168 : vector<8x32xf32>
    %171 = arith.divf %169, %170 : vector<8x32xf32>
    %172 = vector.extract_strided_slice %19 {offsets = [4, 0, 0], sizes = [1, 8, 32], strides = [1, 1, 1]} : vector<8x8x32xf32> to vector<1x8x32xf32>
    %173 = vector.shape_cast %172 : vector<1x8x32xf32> to vector<8x32xf32>
    %174 = arith.mulf %163, %155 : vector<8x32xf32>
    %175 = arith.addf %173, %174 : vector<8x32xf32>
    %176 = math.tanh %175 : vector<8x32xf32>
    %cst_54 = arith.constant 1.000000e+00 : f32
    %177 = vector.broadcast %cst_54 : f32 to vector<8x32xf32>
    %178 = arith.subf %177, %171 : vector<8x32xf32>
    %179 = arith.mulf %178, %176 : vector<8x32xf32>
    %180 = arith.mulf %171, %150 : vector<8x32xf32>
    %181 = arith.addf %179, %180 : vector<8x32xf32>
    %182 = arith.truncf %181 : vector<8x32xf32> to vector<8x32xbf16>
    %cst_55 = arith.constant dense<0.000000e+00> : vector<8x32xf32>
    %183 = tpu.matmul %182, %20, %cst_55 {dimension_numbers = #tpu.dot_dimension_numbers<[1], [0], [0], [1], [0, 0, 1, 1], [], []>} : vector<8x32xbf16>, vector<32x32xbf16>, vector<8x32xf32> -> vector<8x32xf32>
    %cst_56 = arith.constant dense<0.000000e+00> : vector<8x32xf32>
    %184 = tpu.matmul %182, %21, %cst_56 {dimension_numbers = #tpu.dot_dimension_numbers<[1], [0], [0], [1], [0, 0, 1, 1], [], []>} : vector<8x32xbf16>, vector<32x32xbf16>, vector<8x32xf32> -> vector<8x32xf32>
    %cst_57 = arith.constant dense<0.000000e+00> : vector<8x32xf32>
    %185 = tpu.matmul %182, %22, %cst_57 {dimension_numbers = #tpu.dot_dimension_numbers<[1], [0], [0], [1], [0, 0, 1, 1], [], []>} : vector<8x32xbf16>, vector<32x32xbf16>, vector<8x32xf32> -> vector<8x32xf32>
    %186 = arith.addf %185, %25 : vector<8x32xf32>
    %187 = vector.extract_strided_slice %7 {offsets = [5, 0, 0], sizes = [1, 8, 32], strides = [1, 1, 1]} : vector<8x8x32xf32> to vector<1x8x32xf32>
    %188 = vector.shape_cast %187 : vector<1x8x32xf32> to vector<8x32xf32>
    %189 = arith.addf %188, %183 : vector<8x32xf32>
    %190 = arith.negf %189 : vector<8x32xf32>
    %191 = math.exp %190 : vector<8x32xf32>
    %cst_58 = arith.constant 1.000000e+00 : f32
    %192 = vector.broadcast %cst_58 : f32 to vector<8x32xf32>
    %193 = arith.addf %192, %191 : vector<8x32xf32>
    %194 = arith.divf %192, %193 : vector<8x32xf32>
    %195 = vector.extract_strided_slice %13 {offsets = [5, 0, 0], sizes = [1, 8, 32], strides = [1, 1, 1]} : vector<8x8x32xf32> to vector<1x8x32xf32>
    %196 = vector.shape_cast %195 : vector<1x8x32xf32> to vector<8x32xf32>
    %197 = arith.addf %196, %184 : vector<8x32xf32>
    %198 = arith.negf %197 : vector<8x32xf32>
    %199 = math.exp %198 : vector<8x32xf32>
    %cst_59 = arith.constant 1.000000e+00 : f32
    %200 = vector.broadcast %cst_59 : f32 to vector<8x32xf32>
    %201 = arith.addf %200, %199 : vector<8x32xf32>
    %202 = arith.divf %200, %201 : vector<8x32xf32>
    %203 = vector.extract_strided_slice %19 {offsets = [5, 0, 0], sizes = [1, 8, 32], strides = [1, 1, 1]} : vector<8x8x32xf32> to vector<1x8x32xf32>
    %204 = vector.shape_cast %203 : vector<1x8x32xf32> to vector<8x32xf32>
    %205 = arith.mulf %194, %186 : vector<8x32xf32>
    %206 = arith.addf %204, %205 : vector<8x32xf32>
    %207 = math.tanh %206 : vector<8x32xf32>
    %cst_60 = arith.constant 1.000000e+00 : f32
    %208 = vector.broadcast %cst_60 : f32 to vector<8x32xf32>
    %209 = arith.subf %208, %202 : vector<8x32xf32>
    %210 = arith.mulf %209, %207 : vector<8x32xf32>
    %211 = arith.mulf %202, %181 : vector<8x32xf32>
    %212 = arith.addf %210, %211 : vector<8x32xf32>
    %213 = arith.truncf %212 : vector<8x32xf32> to vector<8x32xbf16>
    %cst_61 = arith.constant dense<0.000000e+00> : vector<8x32xf32>
    %214 = tpu.matmul %213, %20, %cst_61 {dimension_numbers = #tpu.dot_dimension_numbers<[1], [0], [0], [1], [0, 0, 1, 1], [], []>} : vector<8x32xbf16>, vector<32x32xbf16>, vector<8x32xf32> -> vector<8x32xf32>
    %cst_62 = arith.constant dense<0.000000e+00> : vector<8x32xf32>
    %215 = tpu.matmul %213, %21, %cst_62 {dimension_numbers = #tpu.dot_dimension_numbers<[1], [0], [0], [1], [0, 0, 1, 1], [], []>} : vector<8x32xbf16>, vector<32x32xbf16>, vector<8x32xf32> -> vector<8x32xf32>
    %cst_63 = arith.constant dense<0.000000e+00> : vector<8x32xf32>
    %216 = tpu.matmul %213, %22, %cst_63 {dimension_numbers = #tpu.dot_dimension_numbers<[1], [0], [0], [1], [0, 0, 1, 1], [], []>} : vector<8x32xbf16>, vector<32x32xbf16>, vector<8x32xf32> -> vector<8x32xf32>
    %217 = arith.addf %216, %25 : vector<8x32xf32>
    %218 = vector.extract_strided_slice %7 {offsets = [6, 0, 0], sizes = [1, 8, 32], strides = [1, 1, 1]} : vector<8x8x32xf32> to vector<1x8x32xf32>
    %219 = vector.shape_cast %218 : vector<1x8x32xf32> to vector<8x32xf32>
    %220 = arith.addf %219, %214 : vector<8x32xf32>
    %221 = arith.negf %220 : vector<8x32xf32>
    %222 = math.exp %221 : vector<8x32xf32>
    %cst_64 = arith.constant 1.000000e+00 : f32
    %223 = vector.broadcast %cst_64 : f32 to vector<8x32xf32>
    %224 = arith.addf %223, %222 : vector<8x32xf32>
    %225 = arith.divf %223, %224 : vector<8x32xf32>
    %226 = vector.extract_strided_slice %13 {offsets = [6, 0, 0], sizes = [1, 8, 32], strides = [1, 1, 1]} : vector<8x8x32xf32> to vector<1x8x32xf32>
    %227 = vector.shape_cast %226 : vector<1x8x32xf32> to vector<8x32xf32>
    %228 = arith.addf %227, %215 : vector<8x32xf32>
    %229 = arith.negf %228 : vector<8x32xf32>
    %230 = math.exp %229 : vector<8x32xf32>
    %cst_65 = arith.constant 1.000000e+00 : f32
    %231 = vector.broadcast %cst_65 : f32 to vector<8x32xf32>
    %232 = arith.addf %231, %230 : vector<8x32xf32>
    %233 = arith.divf %231, %232 : vector<8x32xf32>
    %234 = vector.extract_strided_slice %19 {offsets = [6, 0, 0], sizes = [1, 8, 32], strides = [1, 1, 1]} : vector<8x8x32xf32> to vector<1x8x32xf32>
    %235 = vector.shape_cast %234 : vector<1x8x32xf32> to vector<8x32xf32>
    %236 = arith.mulf %225, %217 : vector<8x32xf32>
    %237 = arith.addf %235, %236 : vector<8x32xf32>
    %238 = math.tanh %237 : vector<8x32xf32>
    %cst_66 = arith.constant 1.000000e+00 : f32
    %239 = vector.broadcast %cst_66 : f32 to vector<8x32xf32>
    %240 = arith.subf %239, %233 : vector<8x32xf32>
    %241 = arith.mulf %240, %238 : vector<8x32xf32>
    %242 = arith.mulf %233, %212 : vector<8x32xf32>
    %243 = arith.addf %241, %242 : vector<8x32xf32>
    %244 = arith.truncf %243 : vector<8x32xf32> to vector<8x32xbf16>
    %cst_67 = arith.constant dense<0.000000e+00> : vector<8x32xf32>
    %245 = tpu.matmul %244, %20, %cst_67 {dimension_numbers = #tpu.dot_dimension_numbers<[1], [0], [0], [1], [0, 0, 1, 1], [], []>} : vector<8x32xbf16>, vector<32x32xbf16>, vector<8x32xf32> -> vector<8x32xf32>
    %cst_68 = arith.constant dense<0.000000e+00> : vector<8x32xf32>
    %246 = tpu.matmul %244, %21, %cst_68 {dimension_numbers = #tpu.dot_dimension_numbers<[1], [0], [0], [1], [0, 0, 1, 1], [], []>} : vector<8x32xbf16>, vector<32x32xbf16>, vector<8x32xf32> -> vector<8x32xf32>
    %cst_69 = arith.constant dense<0.000000e+00> : vector<8x32xf32>
    %247 = tpu.matmul %244, %22, %cst_69 {dimension_numbers = #tpu.dot_dimension_numbers<[1], [0], [0], [1], [0, 0, 1, 1], [], []>} : vector<8x32xbf16>, vector<32x32xbf16>, vector<8x32xf32> -> vector<8x32xf32>
    %248 = arith.addf %247, %25 : vector<8x32xf32>
    %249 = vector.extract_strided_slice %7 {offsets = [7, 0, 0], sizes = [1, 8, 32], strides = [1, 1, 1]} : vector<8x8x32xf32> to vector<1x8x32xf32>
    %250 = vector.shape_cast %249 : vector<1x8x32xf32> to vector<8x32xf32>
    %251 = arith.addf %250, %245 : vector<8x32xf32>
    %252 = arith.negf %251 : vector<8x32xf32>
    %253 = math.exp %252 : vector<8x32xf32>
    %cst_70 = arith.constant 1.000000e+00 : f32
    %254 = vector.broadcast %cst_70 : f32 to vector<8x32xf32>
    %255 = arith.addf %254, %253 : vector<8x32xf32>
    %256 = arith.divf %254, %255 : vector<8x32xf32>
    %257 = vector.extract_strided_slice %13 {offsets = [7, 0, 0], sizes = [1, 8, 32], strides = [1, 1, 1]} : vector<8x8x32xf32> to vector<1x8x32xf32>
    %258 = vector.shape_cast %257 : vector<1x8x32xf32> to vector<8x32xf32>
    %259 = arith.addf %258, %246 : vector<8x32xf32>
    %260 = arith.negf %259 : vector<8x32xf32>
    %261 = math.exp %260 : vector<8x32xf32>
    %cst_71 = arith.constant 1.000000e+00 : f32
    %262 = vector.broadcast %cst_71 : f32 to vector<8x32xf32>
    %263 = arith.addf %262, %261 : vector<8x32xf32>
    %264 = arith.divf %262, %263 : vector<8x32xf32>
    %265 = vector.extract_strided_slice %19 {offsets = [7, 0, 0], sizes = [1, 8, 32], strides = [1, 1, 1]} : vector<8x8x32xf32> to vector<1x8x32xf32>
    %266 = vector.shape_cast %265 : vector<1x8x32xf32> to vector<8x32xf32>
    %267 = arith.mulf %256, %248 : vector<8x32xf32>
    %268 = arith.addf %266, %267 : vector<8x32xf32>
    %269 = math.tanh %268 : vector<8x32xf32>
    %cst_72 = arith.constant 1.000000e+00 : f32
    %270 = vector.broadcast %cst_72 : f32 to vector<8x32xf32>
    %271 = arith.subf %270, %264 : vector<8x32xf32>
    %272 = arith.mulf %271, %269 : vector<8x32xf32>
    %273 = arith.mulf %264, %243 : vector<8x32xf32>
    %274 = arith.addf %272, %273 : vector<8x32xf32>
    %275 = vector.extract_strided_slice %0 {offsets = [7, 0, 0], sizes = [1, 8, 16], strides = [1, 1, 1]} : vector<8x8x16xbf16> to vector<1x8x16xbf16>
    %276 = vector.shape_cast %275 : vector<1x8x16xbf16> to vector<8x16xbf16>
    %c0_73 = arith.constant 0 : index
    %c0_74 = arith.constant 0 : index
    %277 = vector.load %arg12[%c0_73, %c0_74] : memref<16x32xbf16, #tpu.memory_space<vmem>>, vector<16x32xbf16>
    %cst_75 = arith.constant dense<0.000000e+00> : vector<8x32xf32>
    %278 = tpu.matmul %276, %277, %cst_75 {dimension_numbers = #tpu.dot_dimension_numbers<[1], [0], [0], [1], [0, 0, 1, 1], [], []>} : vector<8x16xbf16>, vector<16x32xbf16>, vector<8x32xf32> -> vector<8x32xf32>
    %c0_76 = arith.constant 0 : index
    %c0_77 = arith.constant 0 : index
    %279 = vector.load %arg15[%c0_76, %c0_77] : memref<1x32xf32, #tpu.memory_space<vmem>>, vector<1x32xf32>
    %280 = vector.broadcast %279 : vector<1x32xf32> to vector<8x32xf32>
    %281 = arith.addf %278, %280 : vector<8x32xf32>
    %c0_78 = arith.constant 0 : index
    %c0_79 = arith.constant 0 : index
    %282 = vector.load %arg13[%c0_78, %c0_79] : memref<16x32xbf16, #tpu.memory_space<vmem>>, vector<16x32xbf16>
    %cst_80 = arith.constant dense<0.000000e+00> : vector<8x32xf32>
    %283 = tpu.matmul %276, %282, %cst_80 {dimension_numbers = #tpu.dot_dimension_numbers<[1], [0], [0], [1], [0, 0, 1, 1], [], []>} : vector<8x16xbf16>, vector<16x32xbf16>, vector<8x32xf32> -> vector<8x32xf32>
    %c0_81 = arith.constant 0 : index
    %c0_82 = arith.constant 0 : index
    %284 = vector.load %arg16[%c0_81, %c0_82] : memref<1x32xf32, #tpu.memory_space<vmem>>, vector<1x32xf32>
    %285 = vector.broadcast %284 : vector<1x32xf32> to vector<8x32xf32>
    %286 = arith.addf %283, %285 : vector<8x32xf32>
    %c0_83 = arith.constant 0 : index
    %c0_84 = arith.constant 0 : index
    %287 = vector.load %arg14[%c0_83, %c0_84] : memref<16x32xbf16, #tpu.memory_space<vmem>>, vector<16x32xbf16>
    %cst_85 = arith.constant dense<0.000000e+00> : vector<8x32xf32>
    %288 = tpu.matmul %276, %287, %cst_85 {dimension_numbers = #tpu.dot_dimension_numbers<[1], [0], [0], [1], [0, 0, 1, 1], [], []>} : vector<8x16xbf16>, vector<16x32xbf16>, vector<8x32xf32> -> vector<8x32xf32>
    %c0_86 = arith.constant 0 : index
    %c0_87 = arith.constant 0 : index
    %289 = vector.load %arg17[%c0_86, %c0_87] : memref<1x32xf32, #tpu.memory_space<vmem>>, vector<1x32xf32>
    %290 = vector.broadcast %289 : vector<1x32xf32> to vector<8x32xf32>
    %291 = arith.addf %288, %290 : vector<8x32xf32>
    %292 = arith.negf %281 : vector<8x32xf32>
    %293 = math.exp %292 : vector<8x32xf32>
    %cst_88 = arith.constant 1.000000e+00 : f32
    %294 = vector.broadcast %cst_88 : f32 to vector<8x32xf32>
    %295 = arith.addf %294, %293 : vector<8x32xf32>
    %296 = arith.divf %294, %295 : vector<8x32xf32>
    %297 = arith.negf %286 : vector<8x32xf32>
    %298 = math.exp %297 : vector<8x32xf32>
    %cst_89 = arith.constant 1.000000e+00 : f32
    %299 = vector.broadcast %cst_89 : f32 to vector<8x32xf32>
    %300 = arith.addf %299, %298 : vector<8x32xf32>
    %301 = arith.divf %299, %300 : vector<8x32xf32>
    %c0_90 = arith.constant 0 : index
    %c0_91 = arith.constant 0 : index
    %302 = vector.load %arg18[%c0_90, %c0_91] : memref<1x32xf32, #tpu.memory_space<vmem>>, vector<1x32xf32>
    %303 = vector.broadcast %302 : vector<1x32xf32> to vector<8x32xf32>
    %304 = arith.mulf %296, %303 : vector<8x32xf32>
    %305 = arith.addf %291, %304 : vector<8x32xf32>
    %306 = math.tanh %305 : vector<8x32xf32>
    %cst_92 = arith.constant 1.000000e+00 : f32
    %307 = vector.broadcast %cst_92 : f32 to vector<8x32xf32>
    %308 = arith.subf %307, %301 : vector<8x32xf32>
    %309 = arith.mulf %308, %306 : vector<8x32xf32>
    %310 = arith.truncf %274 : vector<8x32xf32> to vector<8x32xbf16>
    %c0_93 = arith.constant 0 : index
    %c0_94 = arith.constant 0 : index
    %311 = vector.load %arg19[%c0_93, %c0_94] : memref<32x32xbf16, #tpu.memory_space<vmem>>, vector<32x32xbf16>
    %cst_95 = arith.constant dense<0.000000e+00> : vector<8x32xf32>
    %312 = tpu.matmul %310, %311, %cst_95 {dimension_numbers = #tpu.dot_dimension_numbers<[1], [0], [0], [1], [0, 0, 1, 1], [], []>} : vector<8x32xbf16>, vector<32x32xbf16>, vector<8x32xf32> -> vector<8x32xf32>
    %313 = arith.truncf %309 : vector<8x32xf32> to vector<8x32xbf16>
    %c0_96 = arith.constant 0 : index
    %c0_97 = arith.constant 0 : index
    %314 = vector.load %arg20[%c0_96, %c0_97] : memref<32x32xbf16, #tpu.memory_space<vmem>>, vector<32x32xbf16>
    %cst_98 = arith.constant dense<0.000000e+00> : vector<8x32xf32>
    %315 = tpu.matmul %313, %314, %cst_98 {dimension_numbers = #tpu.dot_dimension_numbers<[1], [0], [0], [1], [0, 0, 1, 1], [], []>} : vector<8x32xbf16>, vector<32x32xbf16>, vector<8x32xf32> -> vector<8x32xf32>
    %316 = arith.addf %312, %315 : vector<8x32xf32>
    %c0_99 = arith.constant 0 : index
    %c0_100 = arith.constant 0 : index
    %317 = vector.load %arg21[%c0_99, %c0_100] : memref<1x32xf32, #tpu.memory_space<vmem>>, vector<1x32xf32>
    %318 = vector.broadcast %317 : vector<1x32xf32> to vector<8x32xf32>
    %319 = arith.mulf %316, %318 : vector<8x32xf32>
    %c0_101 = arith.constant 0 : index
    %c0_102 = arith.constant 0 : index
    %320 = vector.load %arg22[%c0_101, %c0_102] : memref<1x32xf32, #tpu.memory_space<vmem>>, vector<1x32xf32>
    %321 = vector.broadcast %320 : vector<1x32xf32> to vector<8x32xf32>
    %322 = arith.addf %319, %321 : vector<8x32xf32>
    %cst_103 = arith.constant 0.000000e+00 : f32
    %323 = vector.broadcast %cst_103 : f32 to vector<8x32xf32>
    %324 = arith.maximumf %322, %323 : vector<8x32xf32>
    %325 = arith.truncf %324 : vector<8x32xf32> to vector<8x32xbf16>
    %c0_104 = arith.constant 0 : index
    %c0_105 = arith.constant 0 : index
    %326 = vector.load %arg23[%c0_104, %c0_105] : memref<32x10xbf16, #tpu.memory_space<vmem>>, vector<32x10xbf16>
    %cst_106 = arith.constant dense<0.000000e+00> : vector<8x10xf32>
    %327 = tpu.matmul %325, %326, %cst_106 {dimension_numbers = #tpu.dot_dimension_numbers<[1], [0], [0], [1], [0, 0, 1, 1], [], []>} : vector<8x32xbf16>, vector<32x10xbf16>, vector<8x10xf32> -> vector<8x10xf32>
    %c0_107 = arith.constant 0 : index
    %c0_108 = arith.constant 0 : index
    %328 = vector.load %arg24[%c0_107, %c0_108] : memref<1x10xf32, #tpu.memory_space<vmem>>, vector<1x10xf32>
    %329 = vector.broadcast %328 : vector<1x10xf32> to vector<8x10xf32>
    %330 = arith.addf %327, %329 : vector<8x10xf32>
    %cst_109 = arith.constant dense<0xFF800000> : vector<8xf32>
    %331 = vector.multi_reduction <maximumf>, %330, %cst_109 [1] : vector<8x10xf32> to vector<8xf32>
    %332 = vector.shape_cast %331 : vector<8xf32> to vector<8x1xf32>
    %333 = vector.broadcast %332 : vector<8x1xf32> to vector<8x10xf32>
    %334 = arith.subf %330, %333 : vector<8x10xf32>
    %335 = math.exp %334 : vector<8x10xf32>
    %cst_110 = arith.constant dense<0.000000e+00> : vector<8xf32>
    %336 = vector.multi_reduction <add>, %335, %cst_110 [1] : vector<8x10xf32> to vector<8xf32>
    %337 = vector.shape_cast %336 : vector<8xf32> to vector<8x1xf32>
    %338 = tpu.reciprocal %337 {approx = true} : vector<8x1xf32> -> vector<8x1xf32>
    %339 = vector.broadcast %338 : vector<8x1xf32> to vector<8x10xf32>
    %340 = arith.mulf %335, %339 : vector<8x10xf32>
    %c0_111 = arith.constant 0 : index
    %c0_112 = arith.constant 0 : index
    %341 = vector.load %arg25[%c0_111, %c0_112] : memref<8x10xf32, #tpu.memory_space<vmem>>, vector<8x10xf32>
    tpu.vector_store %arg25[%c0_111, %c0_112], %340 {strides = array<i32>} : memref<8x10xf32, #tpu.memory_space<vmem>>, vector<8x10xf32>,
    return
  }
  func.func @transform_0(%arg0: i32) -> (i32, i32, i32) {
    %c0_i32 = arith.constant 0 : i32
    %c0_i32_0 = arith.constant 0 : i32
    %c0_i32_1 = arith.constant 0 : i32
    return %c0_i32, %arg0, %c0_i32_0 : i32, i32, i32
  }
  func.func @transform_1(%arg0: i32) -> (i32, i32) {
    %c0_i32 = arith.constant 0 : i32
    %c0_i32_0 = arith.constant 0 : i32
    %c0_i32_1 = arith.constant 0 : i32
    return %c0_i32, %c0_i32_0 : i32, i32
  }
  func.func @transform_2(%arg0: i32) -> (i32, i32) {
    %c0_i32 = arith.constant 0 : i32
    %c0_i32_0 = arith.constant 0 : i32
    %c0_i32_1 = arith.constant 0 : i32
    return %c0_i32, %c0_i32_0 : i32, i32
  }
  func.func @transform_3(%arg0: i32) -> (i32, i32) {
    %c0_i32 = arith.constant 0 : i32
    %c0_i32_0 = arith.constant 0 : i32
    %c0_i32_1 = arith.constant 0 : i32
    return %c0_i32, %c0_i32_0 : i32, i32
  }
  func.func @transform_4(%arg0: i32) -> (i32, i32) {
    %c0_i32 = arith.constant 0 : i32
    %c0_i32_0 = arith.constant 0 : i32
    %c0_i32_1 = arith.constant 0 : i32
    return %c0_i32, %c0_i32_0 : i32, i32
  }
  func.func @transform_5(%arg0: i32) -> (i32, i32) {
    %c0_i32 = arith.constant 0 : i32
    %c0_i32_0 = arith.constant 0 : i32
    %c0_i32_1 = arith.constant 0 : i32
    return %c0_i32, %c0_i32_0 : i32, i32
  }
  func.func @transform_6(%arg0: i32) -> (i32, i32) {
    %c0_i32 = arith.constant 0 : i32
    %c0_i32_0 = arith.constant 0 : i32
    %c0_i32_1 = arith.constant 0 : i32
    return %c0_i32, %c0_i32_0 : i32, i32
  }
  func.func @transform_7(%arg0: i32) -> (i32, i32) {
    %c0_i32 = arith.constant 0 : i32
    %c0_i32_0 = arith.constant 0 : i32
    %c0_i32_1 = arith.constant 0 : i32
    return %c0_i32, %c0_i32_0 : i32, i32
  }
  func.func @transform_8(%arg0: i32) -> (i32, i32) {
    %c0_i32 = arith.constant 0 : i32
    %c0_i32_0 = arith.constant 0 : i32
    %c0_i32_1 = arith.constant 0 : i32
    return %c0_i32, %c0_i32_0 : i32, i32
  }
  func.func @transform_9(%arg0: i32) -> (i32, i32) {
    %c0_i32 = arith.constant 0 : i32
    %c0_i32_0 = arith.constant 0 : i32
    %c0_i32_1 = arith.constant 0 : i32
    return %c0_i32, %c0_i32_0 : i32, i32
  }
  func.func @transform_10(%arg0: i32) -> (i32, i32) {
    %c0_i32 = arith.constant 0 : i32
    %c0_i32_0 = arith.constant 0 : i32
    %c0_i32_1 = arith.constant 0 : i32
    return %c0_i32, %c0_i32_0 : i32, i32
  }
  func.func @transform_11(%arg0: i32) -> (i32, i32) {
    %c0_i32 = arith.constant 0 : i32
    %c0_i32_0 = arith.constant 0 : i32
    %c0_i32_1 = arith.constant 0 : i32
    return %c0_i32, %c0_i32_0 : i32, i32
  }
  func.func @transform_12(%arg0: i32) -> (i32, i32) {
    %c0_i32 = arith.constant 0 : i32
    %c0_i32_0 = arith.constant 0 : i32
    %c0_i32_1 = arith.constant 0 : i32
    return %c0_i32, %c0_i32_0 : i32, i32
  }
  func.func @transform_13(%arg0: i32) -> (i32, i32) {
    %c0_i32 = arith.constant 0 : i32
    %c0_i32_0 = arith.constant 0 : i32
    %c0_i32_1 = arith.constant 0 : i32
    return %c0_i32, %c0_i32_0 : i32, i32
  }
  func.func @transform_14(%arg0: i32) -> (i32, i32) {
    %c0_i32 = arith.constant 0 : i32
    %c0_i32_0 = arith.constant 0 : i32
    %c0_i32_1 = arith.constant 0 : i32
    return %c0_i32, %c0_i32_0 : i32, i32
  }
  func.func @transform_15(%arg0: i32) -> (i32, i32) {
    %c0_i32 = arith.constant 0 : i32
    %c0_i32_0 = arith.constant 0 : i32
    %c0_i32_1 = arith.constant 0 : i32
    return %c0_i32, %c0_i32_0 : i32, i32
  }
  func.func @transform_16(%arg0: i32) -> (i32, i32) {
    %c0_i32 = arith.constant 0 : i32
    %c0_i32_0 = arith.constant 0 : i32
    %c0_i32_1 = arith.constant 0 : i32
    return %c0_i32, %c0_i32_0 : i32, i32
  }
  func.func @transform_17(%arg0: i32) -> (i32, i32) {
    %c0_i32 = arith.constant 0 : i32
    %c0_i32_0 = arith.constant 0 : i32
    %c0_i32_1 = arith.constant 0 : i32
    return %c0_i32, %c0_i32_0 : i32, i32
  }
  func.func @transform_18(%arg0: i32) -> (i32, i32) {
    %c0_i32 = arith.constant 0 : i32
    %c0_i32_0 = arith.constant 0 : i32
    %c0_i32_1 = arith.constant 0 : i32
    return %c0_i32, %c0_i32_0 : i32, i32
  }
  func.func @transform_19(%arg0: i32) -> (i32, i32) {
    %c0_i32 = arith.constant 0 : i32
    %c0_i32_0 = arith.constant 0 : i32
    %c0_i32_1 = arith.constant 0 : i32
    return %c0_i32, %c0_i32_0 : i32, i32
  }
  func.func @transform_20(%arg0: i32) -> (i32, i32) {
    %c0_i32 = arith.constant 0 : i32
    %c0_i32_0 = arith.constant 0 : i32
    %c0_i32_1 = arith.constant 0 : i32
    return %c0_i32, %c0_i32_0 : i32, i32
  }
  func.func @transform_21(%arg0: i32) -> (i32, i32) {
    %c0_i32 = arith.constant 0 : i32
    %c0_i32_0 = arith.constant 0 : i32
    %c0_i32_1 = arith.constant 0 : i32
    return %c0_i32, %c0_i32_0 : i32, i32
  }
  func.func @transform_22(%arg0: i32) -> (i32, i32) {
    %c0_i32 = arith.constant 0 : i32
    %c0_i32_0 = arith.constant 0 : i32
    %c0_i32_1 = arith.constant 0 : i32
    return %c0_i32, %c0_i32_0 : i32, i32
  }
  func.func @transform_23(%arg0: i32) -> (i32, i32) {
    %c0_i32 = arith.constant 0 : i32
    %c0_i32_0 = arith.constant 0 : i32
    %c0_i32_1 = arith.constant 0 : i32
    return %c0_i32, %c0_i32_0 : i32, i32
  }
  func.func @transform_24(%arg0: i32) -> (i32, i32) {
    %c0_i32 = arith.constant 0 : i32
    %c0_i32_0 = arith.constant 0 : i32
    return %arg0, %c0_i32 : i32, i32
  }
}

</mosaic_0001>

<llo_original>
// kernel: tpu_custom_call.1
$region0: #{tpu_custom_call.1}
  #allocation0 [shape = 'u32[]', space=smem, size = 0x4, offset = 0x4, fixed_abs, tag = 'smem constant byte address 0x4 - core index']
  #allocation1 [shape = 'u32[144,128]{1,0:T(1,128)}', space=vmem, size = 0x12000, scoped, tag = 'internal scratch']
  %s0 = inlined_call_operand.hbm [shape: bf16[8,8,16], index: 0, kind: input, shape index: {}]
  %s1 = inlined_call_operand.hbm [shape: bf16[16,32], index: 1, kind: input, shape index: {}]
  %s2 = inlined_call_operand.hbm [shape: bf16[16,32], index: 2, kind: input, shape index: {}]
  %s3 = inlined_call_operand.hbm [shape: bf16[16,32], index: 3, kind: input, shape index: {}]
  %s4 = inlined_call_operand.vmem [shape: bf16[32,32], index: 4, kind: input, shape index: {}]
  %s5 = inlined_call_operand.vmem [shape: bf16[32,32], index: 5, kind: input, shape index: {}]
  %s6 = inlined_call_operand.hbm [shape: bf16[32,32], index: 6, kind: input, shape index: {}]
  %s7 = inlined_call_operand.vmem [shape: f32[1,32], index: 7, kind: input, shape index: {}]
  %s8 = inlined_call_operand.hbm [shape: f32[1,32], index: 8, kind: input, shape index: {}]
  %s9 = inlined_call_operand.hbm [shape: f32[1,32], index: 9, kind: input, shape index: {}]
  %s10 = inlined_call_operand.hbm [shape: f32[1,32], index: 10, kind: input, shape index: {}]
  %s11 = inlined_call_operand.hbm [shape: bf16[16,32], index: 11, kind: input, shape index: {}]
  %s12 = inlined_call_operand.hbm [shape: bf16[16,32], index: 12, kind: input, shape index: {}]
  %s13 = inlined_call_operand.hbm [shape: bf16[16,32], index: 13, kind: input, shape index: {}]
  %s14 = inlined_call_operand.vmem [shape: f32[1,32], index: 14, kind: input, shape index: {}]
  %s15 = inlined_call_operand.vmem [shape: f32[1,32], index: 15, kind: input, shape index: {}]
  %s16 = inlined_call_operand.vmem [shape: f32[1,32], index: 16, kind: input, shape index: {}]
  %s17 = inlined_call_operand.vmem [shape: f32[1,32], index: 17, kind: input, shape index: {}]
  %s18 = inlined_call_operand.vmem [shape: bf16[32,32], index: 18, kind: input, shape index: {}]
  %s19 = inlined_call_operand.vmem [shape: bf16[32,32], index: 19, kind: input, shape index: {}]
  %s20 = inlined_call_operand.vmem [shape: f32[1,32], index: 20, kind: input, shape index: {}]
  %s21 = inlined_call_operand.vmem [shape: f32[1,32], index: 21, kind: input, shape index: {}]
  %s22 = inlined_call_operand.vmem [shape: bf16[32,10], index: 22, kind: input, shape index: {}]
  %s23 = inlined_call_operand.vmem [shape: f32[1,10], index: 23, kind: input, shape index: {}]
  %s24 = inlined_call_operand.hbm [shape: f32[8,10], index: 24, kind: output, shape index: {}]
  %s25 = sld [smem:[#allocation0]]
  $region150: #{tpu_custom_call.1} parent=0
    _
  %s27 = ssub.s32 1, %s25
  %s28 = scalar_select 0, %s27, %s25
  $region1: #{tpu_custom_call.1} parent=0
    #allocation2 [shape = 'u8[16384]{0}', space=vmem, size = 0x4000, scoped, tag = 'input window, operand 0, single buffered']
    #allocation3 [shape = 's32[1]{0}', space=sflag, size = 0x4, scoped, tag = 'scoped memory for tpu_custom_call.1']
    #allocation4 [shape = 's32[1]{0}', space=sflag, size = 0x4, scoped, tag = 'scoped memory for tpu_custom_call.1']
    #allocation5 [shape = 'u8[4096]{0}', space=vmem, size = 0x1000, scoped, tag = 'input window, operand 1, single buffered']
    #allocation6 [shape = 's32[1]{0}', space=sflag, size = 0x4, scoped, tag = 'scoped memory for tpu_custom_call.1']
    #allocation7 [shape = 'u8[4096]{0}', space=vmem, size = 0x1000, scoped, tag = 'input window, operand 2, single buffered']
    #allocation8 [shape = 'u8[4096]{0}', space=vmem, size = 0x1000, scoped, tag = 'input window, operand 3, single buffered']
    #allocation9 [shape = 's32[1]{0}', space=sflag, size = 0x4, scoped, tag = 'scoped memory for tpu_custom_call.1']
    #allocation10 [shape = 'u8[8192]{0}', space=vmem, size = 0x2000, scoped, tag = 'input window, operand 6, single buffered']
    #allocation11 [shape = 'u8[512]{0}', space=vmem, size = 0x400, scoped, tag = 'input window, operand 8, single buffered']
    #allocation12 [shape = 's32[1]{0}', space=sflag, size = 0x4, scoped, tag = 'scoped memory for tpu_custom_call.1']
    #allocation13 [shape = 'u8[512]{0}', space=vmem, size = 0x400, scoped, tag = 'input window, operand 9, single buffered']
    #allocation14 [shape = 'u8[512]{0}', space=vmem, size = 0x400, scoped, tag = 'input window, operand 10, single buffered']
    #allocation15 [shape = 's32[1]{0}', space=sflag, size = 0x4, scoped, tag = 'scoped memory for tpu_custom_call.1']
    #allocation16 [shape = 'u8[4096]{0}', space=vmem, size = 0x1000, scoped, tag = 'input window, operand 11, single buffered']
    #allocation17 [shape = 'u8[4096]{0}', space=vmem, size = 0x1000, scoped, tag = 'input window, operand 12, single buffered']
    #allocation18 [shape = 's32[1]{0}', space=sflag, size = 0x4, scoped, tag = 'scoped memory for tpu_custom_call.1']
    #allocation19 [shape = 'u8[4096]{0}', space=vmem, size = 0x1000, scoped, tag = 'input window, operand 13, single buffered']
    #allocation20 [shape = 'u8[4096]{0}', space=vmem, size = 0x1000, scoped, tag = 'output window, operand 0, single buffered']
    %29 = vsyncpa [#allocation3], 0
    %30 = vsyncpa [#allocation6], 0
    %31 = vsyncpa [#allocation9], 0
    %32 = vsyncpa [#allocation12], 0
    %33 = vsyncpa [#allocation15], 0
    %34 = vsyncpa [#allocation18], 0
    %35 = vsyncpa [#allocation4], 0
    // Predicated region
    $region2: #{tpu_custom_call.1} parent=1 // pred_check
      _
    $region3: #{tpu_custom_call.1} parent=1 // pred_check_branch
      %37 = sbr.rel (0) target = $region5
    $region4: #{tpu_custom_call.1} parent=1 // pred_region
      %s39 = ssub.s32 512, 512
      %40 = vsyncadd [#allocation3], %s39
      %s41 = sshll.u32 [#allocation2], 4
      %s42 = int_to_ptr.vmem [resolvable:$true] %s41
      %47 = dma.hbm_to_vmem [thread:$0]  %s0, 512, %s42, [#allocation3], 64, 64, 4
    $region5: #{tpu_custom_call.1} parent=1 // pred_fallthru
      _
    // Predicated region
    $region6: #{tpu_custom_call.1} parent=1 // pred_check
      _
    $region7: #{tpu_custom_call.1} parent=1 // pred_check_branch
      %49 = sbr.rel (0) target = $region9
    $region8: #{tpu_custom_call.1} parent=1 // pred_region
      %s51 = ssub.s32 128, 128
      %52 = vsyncadd [#allocation6], %s51
      %s53 = sshll.u32 [#allocation5], 4
      %s54 = int_to_ptr.vmem [resolvable:$true] %s53
      %59 = dma.hbm_to_vmem [thread:$0]  %s1, 128, %s54, [#allocation6], 64, 64, 4
    $region9: #{tpu_custom_call.1} parent=1 // pred_fallthru
      _
    // Predicated region
    $region10: #{tpu_custom_call.1} parent=1 // pred_check
      _
    $region11: #{tpu_custom_call.1} parent=1 // pred_check_branch
      %61 = sbr.rel (0) target = $region13
    $region12: #{tpu_custom_call.1} parent=1 // pred_region
      %s63 = ssub.s32 128, 128
      %64 = vsyncadd [#allocation6], %s63
      %s65 = sshll.u32 [#allocation7], 4
      %s66 = int_to_ptr.vmem [resolvable:$true] %s65
      %71 = dma.hbm_to_vmem [thread:$0]  %s2, 128, %s66, [#allocation6], 64, 64, 4
    $region13: #{tpu_custom_call.1} parent=1 // pred_fallthru
      _
    // Predicated region
    $region14: #{tpu_custom_call.1} parent=1 // pred_check
      _
    $region15: #{tpu_custom_call.1} parent=1 // pred_check_branch
      %73 = sbr.rel (0) target = $region17
    $region16: #{tpu_custom_call.1} parent=1 // pred_region
      %s75 = ssub.s32 128, 128
      %76 = vsyncadd [#allocation9], %s75
      %s77 = sshll.u32 [#allocation8], 4
      %s78 = int_to_ptr.vmem [resolvable:$true] %s77
      %83 = dma.hbm_to_vmem [thread:$0]  %s3, 128, %s78, [#allocation9], 64, 64, 4
    $region17: #{tpu_custom_call.1} parent=1 // pred_fallthru
      _
    // Predicated region
    $region18: #{tpu_custom_call.1} parent=1 // pred_check
      _
    $region19: #{tpu_custom_call.1} parent=1 // pred_check_branch
      %85 = sbr.rel (0) target = $region21
    $region20: #{tpu_custom_call.1} parent=1 // pred_region
      _
    $region21: #{tpu_custom_call.1} parent=1 // pred_fallthru
      _
    // Predicated region
    $region22: #{tpu_custom_call.1} parent=1 // pred_check
      _
    $region23: #{tpu_custom_call.1} parent=1 // pred_check_branch
      %87 = sbr.rel (0) target = $region25
    $region24: #{tpu_custom_call.1} parent=1 // pred_region
      _
    $region25: #{tpu_custom_call.1} parent=1 // pred_fallthru
      _
    // Predicated region
    $region26: #{tpu_custom_call.1} parent=1 // pred_check
      _
    $region27: #{tpu_custom_call.1} parent=1 // pred_check_branch
      %89 = sbr.rel (0) target = $region29
    $region28: #{tpu_custom_call.1} parent=1 // pred_region
      %s91 = ssub.s32 256, 256
      %92 = vsyncadd [#allocation9], %s91
      %s93 = sshll.u32 [#allocation10], 4
      %s94 = int_to_ptr.vmem [resolvable:$true] %s93
      %99 = dma.hbm_to_vmem [thread:$0]  %s6, 256, %s94, [#allocation9], 64, 64, 4
    $region29: #{tpu_custom_call.1} parent=1 // pred_fallthru
      _
    // Predicated region
    $region30: #{tpu_custom_call.1} parent=1 // pred_check
      _
    $region31: #{tpu_custom_call.1} parent=1 // pred_check_branch
      %101 = sbr.rel (0) target = $region33
    $region32: #{tpu_custom_call.1} parent=1 // pred_region
      _
    $region33: #{tpu_custom_call.1} parent=1 // pred_fallthru
      _
    // Predicated region
    $region34: #{tpu_custom_call.1} parent=1 // pred_check
      _
    $region35: #{tpu_custom_call.1} parent=1 // pred_check_branch
      %103 = sbr.rel (0) target = $region37
    $region36: #{tpu_custom_call.1} parent=1 // pred_region
      %s105 = ssub.s32 16, 16
      %106 = vsyncadd [#allocation12], %s105
      %s108 = sshll.u32 [#allocation11], 4
      %s109 = int_to_ptr.vmem [resolvable:$true] %s108
      %111 = dma.hbm_to_vmem [thread:$0]  %s8, 16, %s109, [#allocation12]
    $region37: #{tpu_custom_call.1} parent=1 // pred_fallthru
      _
    // Predicated region
    $region38: #{tpu_custom_call.1} parent=1 // pred_check
      _
    $region39: #{tpu_custom_call.1} parent=1 // pred_check_branch
      %113 = sbr.rel (0) target = $region41
    $region40: #{tpu_custom_call.1} parent=1 // pred_region
      %s115 = ssub.s32 16, 16
      %116 = vsyncadd [#allocation12], %s115
      %s118 = sshll.u32 [#allocation13], 4
      %s119 = int_to_ptr.vmem [resolvable:$true] %s118
      %121 = dma.hbm_to_vmem [thread:$0]  %s9, 16, %s119, [#allocation12]
    $region41: #{tpu_custom_call.1} parent=1 // pred_fallthru
      _
    // Predicated region
    $region42: #{tpu_custom_call.1} parent=1 // pred_check
      _
    $region43: #{tpu_custom_call.1} parent=1 // pred_check_branch
      %123 = sbr.rel (0) target = $region45
    $region44: #{tpu_custom_call.1} parent=1 // pred_region
      %s125 = ssub.s32 16, 16
      %126 = vsyncadd [#allocation15], %s125
      %s128 = sshll.u32 [#allocation14], 4
      %s129 = int_to_ptr.vmem [resolvable:$true] %s128
      %131 = dma.hbm_to_vmem [thread:$0]  %s10, 16, %s129, [#allocation15]
    $region45: #{tpu_custom_call.1} parent=1 // pred_fallthru
      _
    // Predicated region
    $region46: #{tpu_custom_call.1} parent=1 // pred_check
      _
    $region47: #{tpu_custom_call.1} parent=1 // pred_check_branch
      %133 = sbr.rel (0) target = $region49
    $region48: #{tpu_custom_call.1} parent=1 // pred_region
      %s135 = ssub.s32 128, 128
      %136 = vsyncadd [#allocation15], %s135
      %s137 = sshll.u32 [#allocation16], 4
      %s138 = int_to_ptr.vmem [resolvable:$true] %s137
      %143 = dma.hbm_to_vmem [thread:$0]  %s11, 128, %s138, [#allocation15], 64, 64, 4
    $region49: #{tpu_custom_call.1} parent=1 // pred_fallthru
      _
    // Predicated region
    $region50: #{tpu_custom_call.1} parent=1 // pred_check
      _
    $region51: #{tpu_custom_call.1} parent=1 // pred_check_branch
      %145 = sbr.rel (0) target = $region53
    $region52: #{tpu_custom_call.1} parent=1 // pred_region
      %s147 = ssub.s32 128, 128
      %148 = vsyncadd [#allocation18], %s147
      %s149 = sshll.u32 [#allocation17], 4
      %s150 = int_to_ptr.vmem [resolvable:$true] %s149
      %155 = dma.hbm_to_vmem [thread:$0]  %s12, 128, %s150, [#allocation18], 64, 64, 4
    $region53: #{tpu_custom_call.1} parent=1 // pred_fallthru
      _
    // Predicated region
    $region54: #{tpu_custom_call.1} parent=1 // pred_check
      _
    $region55: #{tpu_custom_call.1} parent=1 // pred_check_branch
      %157 = sbr.rel (0) target = $region57
    $region56: #{tpu_custom_call.1} parent=1 // pred_region
      %s159 = ssub.s32 128, 128
      %160 = vsyncadd [#allocation18], %s159
      %s161 = sshll.u32 [#allocation19], 4
      %s162 = int_to_ptr.vmem [resolvable:$true] %s161
      %167 = dma.hbm_to_vmem [thread:$0]  %s13, 128, %s162, [#allocation18], 64, 64, 4
    $region57: #{tpu_custom_call.1} parent=1 // pred_fallthru
      _
    // Predicated region
    $region58: #{tpu_custom_call.1} parent=1 // pred_check
      _
    $region59: #{tpu_custom_call.1} parent=1 // pred_check_branch
      %169 = sbr.rel (0) target = $region61
    $region60: #{tpu_custom_call.1} parent=1 // pred_region
      _
    $region61: #{tpu_custom_call.1} parent=1 // pred_fallthru
      _
    // Predicated region
    $region62: #{tpu_custom_call.1} parent=1 // pred_check
      _
    $region63: #{tpu_custom_call.1} parent=1 // pred_check_branch
      %171 = sbr.rel (0) target = $region65
    $region64: #{tpu_custom_call.1} parent=1 // pred_region
      _
    $region65: #{tpu_custom_call.1} parent=1 // pred_fallthru
      _
    // Predicated region
    $region66: #{tpu_custom_call.1} parent=1 // pred_check
      _
    $region67: #{tpu_custom_call.1} parent=1 // pred_check_branch
      %173 = sbr.rel (0) target = $region69
    $region68: #{tpu_custom_call.1} parent=1 // pred_region
      _
    $region69: #{tpu_custom_call.1} parent=1 // pred_fallthru
      _
    // Predicated region
    $region70: #{tpu_custom_call.1} parent=1 // pred_check
      _
    $region71: #{tpu_custom_call.1} parent=1 // pred_check_branch
      %175 = sbr.rel (0) target = $region73
    $region72: #{tpu_custom_call.1} parent=1 // pred_region
      _
    $region73: #{tpu_custom_call.1} parent=1 // pred_fallthru
      _
    // Predicated region
    $region74: #{tpu_custom_call.1} parent=1 // pred_check
      _
    $region75: #{tpu_custom_call.1} parent=1 // pred_check_branch
      %177 = sbr.rel (0) target = $region77
    $region76: #{tpu_custom_call.1} parent=1 // pred_region
      _
    $region77: #{tpu_custom_call.1} parent=1 // pred_fallthru
      _
    // Predicated region
    $region78: #{tpu_custom_call.1} parent=1 // pred_check
      _
    $region79: #{tpu_custom_call.1} parent=1 // pred_check_branch
      %179 = sbr.rel (0) target = $region81
    $region80: #{tpu_custom_call.1} parent=1 // pred_region
      _
    $region81: #{tpu_custom_call.1} parent=1 // pred_fallthru
      _
    // Predicated region
    $region82: #{tpu_custom_call.1} parent=1 // pred_check
      _
    $region83: #{tpu_custom_call.1} parent=1 // pred_check_branch
      %181 = sbr.rel (0) target = $region85
    $region84: #{tpu_custom_call.1} parent=1 // pred_region
      _
    $region85: #{tpu_custom_call.1} parent=1 // pred_fallthru
      _
    // Predicated region
    $region86: #{tpu_custom_call.1} parent=1 // pred_check
      _
    $region87: #{tpu_custom_call.1} parent=1 // pred_check_branch
      %183 = sbr.rel (0) target = $region89
    $region88: #{tpu_custom_call.1} parent=1 // pred_region
      _
    $region89: #{tpu_custom_call.1} parent=1 // pred_fallthru
      _
    // Predicated region
    $region90: #{tpu_custom_call.1} parent=1 // pred_check
      _
    $region91: #{tpu_custom_call.1} parent=1 // pred_check_branch
      %185 = sbr.rel (0) target = $region93
    $region92: #{tpu_custom_call.1} parent=1 // pred_region
      _
    $region93: #{tpu_custom_call.1} parent=1 // pred_fallthru
      _
    // Predicated region
    $region94: #{tpu_custom_call.1} parent=1 // pred_check
      _
    $region95: #{tpu_custom_call.1} parent=1 // pred_check_branch
      %187 = sbr.rel (0) target = $region97
    $region96: #{tpu_custom_call.1} parent=1 // pred_region
      _
    $region97: #{tpu_custom_call.1} parent=1 // pred_fallthru
      _
    // Predicated region
    $region98: #{tpu_custom_call.1} parent=1 // pred_check
      _
    $region99: #{tpu_custom_call.1} parent=1 // pred_check_branch
      %189 = sbr.rel (0) target = $region101
    $region100: #{tpu_custom_call.1} parent=1 // pred_region
      %190 = dma.done [#allocation3], 512
    $region101: #{tpu_custom_call.1} parent=1 // pred_fallthru
      _
    // Predicated region
    $region102: #{tpu_custom_call.1} parent=1 // pred_check
      _
    $region103: #{tpu_custom_call.1} parent=1 // pred_check_branch
      %192 = sbr.rel (0) target = $region105
    $region104: #{tpu_custom_call.1} parent=1 // pred_region
      %193 = dma.done [#allocation6], 128
    $region105: #{tpu_custom_call.1} parent=1 // pred_fallthru
      _
    // Predicated region
    $region106: #{tpu_custom_call.1} parent=1 // pred_check
      _
    $region107: #{tpu_custom_call.1} parent=1 // pred_check_branch
      %195 = sbr.rel (0) target = $region109
    $region108: #{tpu_custom_call.1} parent=1 // pred_region
      %196 = dma.done [#allocation6], 128
    $region109: #{tpu_custom_call.1} parent=1 // pred_fallthru
      _
    // Predicated region
    $region110: #{tpu_custom_call.1} parent=1 // pred_check
      _
    $region111: #{tpu_custom_call.1} parent=1 // pred_check_branch
      %198 = sbr.rel (0) target = $region113
    $region112: #{tpu_custom_call.1} parent=1 // pred_region
      %199 = dma.done [#allocation9], 128
    $region113: #{tpu_custom_call.1} parent=1 // pred_fallthru
      _
    // Predicated region
    $region114: #{tpu_custom_call.1} parent=1 // pred_check
      _
    $region115: #{tpu_custom_call.1} parent=1 // pred_check_branch
      %201 = sbr.rel (0) target = $region117
    $region116: #{tpu_custom_call.1} parent=1 // pred_region
      %202 = dma.done [#allocation9], 256
    $region117: #{tpu_custom_call.1} parent=1 // pred_fallthru
      _
    // Predicated region
    $region118: #{tpu_custom_call.1} parent=1 // pred_check
      _
    $region119: #{tpu_custom_call.1} parent=1 // pred_check_branch
      %204 = sbr.rel (0) target = $region121
    $region120: #{tpu_custom_call.1} parent=1 // pred_region
      %205 = dma.done [#allocation12], 16
    $region121: #{tpu_custom_call.1} parent=1 // pred_fallthru
      _
    // Predicated region
    $region122: #{tpu_custom_call.1} parent=1 // pred_check
      _
    $region123: #{tpu_custom_call.1} parent=1 // pred_check_branch
      %207 = sbr.rel (0) target = $region125
    $region124: #{tpu_custom_call.1} parent=1 // pred_region
      %208 = dma.done [#allocation12], 16
    $region125: #{tpu_custom_call.1} parent=1 // pred_fallthru
      _
    // Predicated region
    $region126: #{tpu_custom_call.1} parent=1 // pred_check
      _
    $region127: #{tpu_custom_call.1} parent=1 // pred_check_branch
      %210 = sbr.rel (0) target = $region129
    $region128: #{tpu_custom_call.1} parent=1 // pred_region
      %211 = dma.done [#allocation15], 16
    $region129: #{tpu_custom_call.1} parent=1 // pred_fallthru
      _
    // Predicated region
    $region130: #{tpu_custom_call.1} parent=1 // pred_check
      _
    $region131: #{tpu_custom_call.1} parent=1 // pred_check_branch
      %213 = sbr.rel (0) target = $region133
    $region132: #{tpu_custom_call.1} parent=1 // pred_region
      %214 = dma.done [#allocation15], 128
    $region133: #{tpu_custom_call.1} parent=1 // pred_fallthru
      _
    // Predicated region
    $region134: #{tpu_custom_call.1} parent=1 // pred_check
      _
    $region135: #{tpu_custom_call.1} parent=1 // pred_check_branch
      %216 = sbr.rel (0) target = $region137
    $region136: #{tpu_custom_call.1} parent=1 // pred_region
      %217 = dma.done [#allocation18], 128
    $region137: #{tpu_custom_call.1} parent=1 // pred_fallthru
      _
    // Predicated region
    $region138: #{tpu_custom_call.1} parent=1 // pred_check
      _
    $region139: #{tpu_custom_call.1} parent=1 // pred_check_branch
      %219 = sbr.rel (0) target = $region141
    $region140: #{tpu_custom_call.1} parent=1 // pred_region
      %220 = dma.done [#allocation18], 128
    $region141: #{tpu_custom_call.1} parent=1 // pred_fallthru
      _
    %v222 = vld [vmem:[#allocation2] sm:$0xf]
    %v223 = vld [vmem:[#allocation2 + $0x4] sm:$0xf]
    %v224 = vld [vmem:[#allocation2 + $0x8] sm:$0xf]
    %v225 = vld [vmem:[#allocation2 + $0xc] sm:$0xf]
    %v226 = vld [vmem:[#allocation2 + $0x10] sm:$0xf]
    %v227 = vld [vmem:[#allocation2 + $0x14] sm:$0xf]
    %v228 = vld [vmem:[#allocation2 + $0x18] sm:$0xf]
    %v229 = vld [vmem:[#allocation2 + $0x1c] sm:$0xf]
    %v230 = vld [vmem:[#allocation5] sm:$0xf]
    %v231 = vld [vmem:[#allocation5 + $0x4] sm:$0xf]
    %v232 = vld [vmem:[%s7] sm:$0x1]
    %v234 = vlaneseq
    %v235 = vshrl.u32 %v234, 7
    %v236 = vsub.s32 0, %v235
    %v237 = vrot.slane %v232, %v236
    %v247 = vunpack.c.l.b16 %v222
    %v248 = vunpack.c.l.b16 %v223
    %v249 = vunpack.c.l.b16 %v224
    %v250 = vunpack.c.l.b16 %v225
    %v251 = vunpack.c.l.b16 %v226
    %v252 = vunpack.c.l.b16 %v227
    %v253 = vunpack.c.l.b16 %v228
    %v254 = vunpack.c.l.b16 %v229
    %v255 = vpack.c.b16 %v248, %v247
    %v256 = vpack.c.b16 %v250, %v249
    %v257 = vpack.c.b16 %v252, %v251
    %v258 = vpack.c.b16 %v254, %v253
    %v261 = vunpack.c.l.b16 %v230
    %v262 = vunpack.c.l.b16 %v231
    %v263 = vpack.c.b16 %v262, %v261
    %vm265 = vcmask 130048
    %v267 = vsel %vm265, %v255, 0
    %v270 = vsel %vm265, %v256, 0
    %v273 = vsel %vm265, %v257, 0
    %v276 = vsel %vm265, %v258, 0
    %278 = vmatprep.subr.bf16.mxu0 0
    %279 = vmatpush1.bf16.msra.mxu0 %v263
    %280 = vmatprep.subr.bf16.mxu0 0
    %281 = vmatpush1.bf16.msra.mxu0 0
    %282 = vmatprep.subr.bf16.mxu0 0
    %283 = vmatpush1.bf16.msra.mxu0 0
    %284 = vmatprep.subr.bf16.mxu0 0
    %285 = vmatpush1.bf16.msra.mxu0 0
    %286 = vmatprep.subr.bf16.mxu0 0
    %287 = vmatpush1.bf16.msra.mxu0 0
    %288 = vmatprep.subr.bf16.mxu0 0
    %289 = vmatpush1.bf16.msra.mxu0 0
    %290 = vmatprep.subr.bf16.mxu0 0
    %291 = vmatpush1.bf16.msra.mxu0 0
    %292 = vmatprep.subr.bf16.mxu0 0
    %293 = vmatpush1.bf16.msra.mxu0 0
    %294 = vmatprep.subr.bf16.mxu0 0
    %295 = vmatpush1.bf16.msra.mxu0 0
    %296 = vmatprep.subr.bf16.mxu0 0
    %297 = vmatpush1.bf16.msra.mxu0 0
    %298 = vmatprep.subr.bf16.mxu0 0
    %299 = vmatpush1.bf16.msra.mxu0 0
    %300 = vmatprep.subr.bf16.mxu0 0
    %301 = vmatpush1.bf16.msra.mxu0 0
    %302 = vmatprep.subr.bf16.mxu0 0
    %303 = vmatpush1.bf16.msra.mxu0 0
    %304 = vmatprep.subr.bf16.mxu0 0
    %305 = vmatpush1.bf16.msra.mxu0 0
    %306 = vmatprep.subr.bf16.mxu0 0
    %307 = vmatpush1.bf16.msra.mxu0 0
    %308 = vmatprep.subr.bf16.mxu0 0
    %309 = vmatpush1.bf16.msra.mxu0 0
    %310 = vmatprep.mubr.bf16.mxu0 0
    %311 = vmatmul.mubr.bf16.gmra.mrb[0].mxu0 %v267
    %v312 = vpop.f32.mrb[0].mxu0
    %v313 = vadd.f32 %v237, %v312
    %v314 = vpop.f32.mrb[0].mxu0
    %v315 = vpop.f32.mrb[0].mxu0
    %v316 = vadd.f32 %v237, %v315
    %v317 = vpop.f32.mrb[0].mxu0
    %318 = vmatprep.mubr.bf16.mxu0 0
    %319 = vmatmul.mubr.bf16.gmra.mrb[0].mxu0 %v270
    %v320 = vpop.f32.mrb[0].mxu0
    %v321 = vadd.f32 %v237, %v320
    %v322 = vpop.f32.mrb[0].mxu0
    %v323 = vpop.f32.mrb[0].mxu0
    %v324 = vadd.f32 %v237, %v323
    %v325 = vpop.f32.mrb[0].mxu0
    %326 = vmatprep.mubr.bf16.mxu0 0
    %327 = vmatmul.mubr.bf16.gmra.mrb[0].mxu0 %v273
    %v328 = vpop.f32.mrb[0].mxu0
    %v329 = vadd.f32 %v237, %v328
    %v330 = vpop.f32.mrb[0].mxu0
    %v331 = vpop.f32.mrb[0].mxu0
    %v332 = vadd.f32 %v237, %v331
    %v333 = vpop.f32.mrb[0].mxu0
    %334 = vmatprep.mubr.bf16.mxu0 0
    %335 = vmatmul.mubr.bf16.gmra.mrb[0].mxu0 %v276
    %v336 = vpop.f32.mrb[0].mxu0
    %v337 = vadd.f32 %v237, %v336
    %v338 = vpop.f32.mrb[0].mxu0
    %v339 = vpop.f32.mrb[0].mxu0
    %v340 = vadd.f32 %v237, %v339
    %v341 = vpop.f32.mrb[0].mxu0
    %342 = vdwg.mxu0
    %v343 = vld [vmem:[#allocation7] sm:$0xf]
    %v344 = vld [vmem:[#allocation7 + $0x4] sm:$0xf]
    %v345 = vld [vmem:[#allocation11] sm:$0x1]
    %v347 = vlaneseq
    %v348 = vshrl.u32 %v347, 7
    %v349 = vsub.s32 0, %v348
    %v350 = vrot.slane %v345, %v349
    %v354 = vunpack.c.l.b16 %v343
    %v355 = vunpack.c.l.b16 %v344
    %v356 = vpack.c.b16 %v355, %v354
    %358 = vmatprep.subr.bf16.mxu0 0
    %359 = vmatpush1.bf16.msra.mxu0 %v356
    %360 = vmatprep.subr.bf16.mxu0 0
    %361 = vmatpush1.bf16.msra.mxu0 0
    %362 = vmatprep.subr.bf16.mxu0 0
    %363 = vmatpush1.bf16.msra.mxu0 0
    %364 = vmatprep.subr.bf16.mxu0 0
    %365 = vmatpush1.bf16.msra.mxu0 0
    %366 = vmatprep.subr.bf16.mxu0 0
    %367 = vmatpush1.bf16.msra.mxu0 0
    %368 = vmatprep.subr.bf16.mxu0 0
    %369 = vmatpush1.bf16.msra.mxu0 0
    %370 = vmatprep.subr.bf16.mxu0 0
    %371 = vmatpush1.bf16.msra.mxu0 0
    %372 = vmatprep.subr.bf16.mxu0 0
    %373 = vmatpush1.bf16.msra.mxu0 0
    %374 = vmatprep.subr.bf16.mxu0 0
    %375 = vmatpush1.bf16.msra.mxu0 0
    %376 = vmatprep.subr.bf16.mxu0 0
    %377 = vmatpush1.bf16.msra.mxu0 0
    %378 = vmatprep.subr.bf16.mxu0 0
    %379 = vmatpush1.bf16.msra.mxu0 0
    %380 = vmatprep.subr.bf16.mxu0 0
    %381 = vmatpush1.bf16.msra.mxu0 0
    %382 = vmatprep.subr.bf16.mxu0 0
    %383 = vmatpush1.bf16.msra.mxu0 0
    %384 = vmatprep.subr.bf16.mxu0 0
    %385 = vmatpush1.bf16.msra.mxu0 0
    %386 = vmatprep.subr.bf16.mxu0 0
    %387 = vmatpush1.bf16.msra.mxu0 0
    %388 = vmatprep.subr.bf16.mxu0 0
    %389 = vmatpush1.bf16.msra.mxu0 0
    %390 = vmatprep.mubr.bf16.mxu0 0
    %391 = vmatmul.mubr.bf16.gmra.mrb[0].mxu0 %v267
    %v392 = vpop.f32.mrb[0].mxu0
    %v393 = vadd.f32 %v350, %v392
    %v394 = vpop.f32.mrb[0].mxu0
    %v395 = vpop.f32.mrb[0].mxu0
    %v396 = vadd.f32 %v350, %v395
    %v397 = vpop.f32.mrb[0].mxu0
    %398 = vmatprep.mubr.bf16.mxu0 0
    %399 = vmatmul.mubr.bf16.gmra.mrb[0].mxu0 %v270
    %v400 = vpop.f32.mrb[0].mxu0
    %v401 = vadd.f32 %v350, %v400
    %v402 = vpop.f32.mrb[0].mxu0
    %v403 = vpop.f32.mrb[0].mxu0
    %v404 = vadd.f32 %v350, %v403
    %v405 = vpop.f32.mrb[0].mxu0
    %406 = vmatprep.mubr.bf16.mxu0 0
    %407 = vmatmul.mubr.bf16.gmra.mrb[0].mxu0 %v273
    %v408 = vpop.f32.mrb[0].mxu0
    %v409 = vadd.f32 %v350, %v408
    %v410 = vpop.f32.mrb[0].mxu0
    %v411 = vpop.f32.mrb[0].mxu0
    %v412 = vadd.f32 %v350, %v411
    %v413 = vpop.f32.mrb[0].mxu0
    %414 = vmatprep.mubr.bf16.mxu0 0
    %415 = vmatmul.mubr.bf16.gmra.mrb[0].mxu0 %v276
    %v416 = vpop.f32.mrb[0].mxu0
    %v417 = vadd.f32 %v350, %v416
    %v418 = vpop.f32.mrb[0].mxu0
    %v419 = vpop.f32.mrb[0].mxu0
    %v420 = vadd.f32 %v350, %v419
    %v421 = vpop.f32.mrb[0].mxu0
    %422 = vdwg.mxu0
    %v423 = vld [vmem:[#allocation8] sm:$0xf]
    %v424 = vld [vmem:[#allocation8 + $0x4] sm:$0xf]
    %v425 = vld [vmem:[#allocation13] sm:$0x1]
    %v427 = vlaneseq
    %v428 = vshrl.u32 %v427, 7
    %v429 = vsub.s32 0, %v428
    %v430 = vrot.slane %v425, %v429
    %v434 = vunpack.c.l.b16 %v423
    %v435 = vunpack.c.l.b16 %v424
    %v436 = vpack.c.b16 %v435, %v434
    %438 = vmatprep.subr.bf16.mxu0 0
    %439 = vmatpush1.bf16.msra.mxu0 %v436
    %440 = vmatprep.subr.bf16.mxu0 0
    %441 = vmatpush1.bf16.msra.mxu0 0
    %442 = vmatprep.subr.bf16.mxu0 0
    %443 = vmatpush1.bf16.msra.mxu0 0
    %444 = vmatprep.subr.bf16.mxu0 0
    %445 = vmatpush1.bf16.msra.mxu0 0
    %446 = vmatprep.subr.bf16.mxu0 0
    %447 = vmatpush1.bf16.msra.mxu0 0
    %448 = vmatprep.subr.bf16.mxu0 0
    %449 = vmatpush1.bf16.msra.mxu0 0
    %450 = vmatprep.subr.bf16.mxu0 0
    %451 = vmatpush1.bf16.msra.mxu0 0
    %452 = vmatprep.subr.bf16.mxu0 0
    %453 = vmatpush1.bf16.msra.mxu0 0
    %454 = vmatprep.subr.bf16.mxu0 0
    %455 = vmatpush1.bf16.msra.mxu0 0
    %456 = vmatprep.subr.bf16.mxu0 0
    %457 = vmatpush1.bf16.msra.mxu0 0
    %458 = vmatprep.subr.bf16.mxu0 0
    %459 = vmatpush1.bf16.msra.mxu0 0
    %460 = vmatprep.subr.bf16.mxu0 0
    %461 = vmatpush1.bf16.msra.mxu0 0
    %462 = vmatprep.subr.bf16.mxu0 0
    %463 = vmatpush1.bf16.msra.mxu0 0
    %464 = vmatprep.subr.bf16.mxu0 0
    %465 = vmatpush1.bf16.msra.mxu0 0
    %466 = vmatprep.subr.bf16.mxu0 0
    %467 = vmatpush1.bf16.msra.mxu0 0
    %468 = vmatprep.subr.bf16.mxu0 0
    %469 = vmatpush1.bf16.msra.mxu0 0
    %470 = vmatprep.mubr.bf16.mxu0 0
    %471 = vmatmul.mubr.bf16.gmra.mrb[0].mxu0 %v267
    %v472 = vpop.f32.mrb[0].mxu0
    %v473 = vadd.f32 %v430, %v472
    %v474 = vpop.f32.mrb[0].mxu0
    %v475 = vpop.f32.mrb[0].mxu0
    %v476 = vadd.f32 %v430, %v475
    %v477 = vpop.f32.mrb[0].mxu0
    %478 = vmatprep.mubr.bf16.mxu0 0
    %479 = vmatmul.mubr.bf16.gmra.mrb[0].mxu0 %v270
    %v480 = vpop.f32.mrb[0].mxu0
    %v481 = vadd.f32 %v430, %v480
    %v482 = vpop.f32.mrb[0].mxu0
    %v483 = vpop.f32.mrb[0].mxu0
    %v484 = vadd.f32 %v430, %v483
    %v485 = vpop.f32.mrb[0].mxu0
    %486 = vmatprep.mubr.bf16.mxu0 0
    %487 = vmatmul.mubr.bf16.gmra.mrb[0].mxu0 %v273
    %v488 = vpop.f32.mrb[0].mxu0
    %v489 = vadd.f32 %v430, %v488
    %v490 = vpop.f32.mrb[0].mxu0
    %v491 = vpop.f32.mrb[0].mxu0
    %v492 = vadd.f32 %v430, %v491
    %v493 = vpop.f32.mrb[0].mxu0
    %494 = vmatprep.mubr.bf16.mxu0 0
    %495 = vmatmul.mubr.bf16.gmra.mrb[0].mxu0 %v276
    %v496 = vpop.f32.mrb[0].mxu0
    %v497 = vadd.f32 %v430, %v496
    %v498 = vpop.f32.mrb[0].mxu0
    %v499 = vpop.f32.mrb[0].mxu0
    %v500 = vadd.f32 %v430, %v499
    %v501 = vpop.f32.mrb[0].mxu0
    %502 = vdwg.mxu0
    %v503 = vld [vmem:[%s4] sm:$0xf]
    %v504 = vld [vmem:[%s4 + $0x4] sm:$0xf]
    %v505 = vld [vmem:[%s4 + $0x8] sm:$0xf]
    %v506 = vld [vmem:[%s4 + $0xc] sm:$0xf]
    %v507 = vld [vmem:[%s5] sm:$0xf]
    %v508 = vld [vmem:[%s5 + $0x4] sm:$0xf]
    %v509 = vld [vmem:[%s5 + $0x8] sm:$0xf]
    %v510 = vld [vmem:[%s5 + $0xc] sm:$0xf]
    %v511 = vld [vmem:[#allocation10] sm:$0xf]
    %v512 = vld [vmem:[#allocation10 + $0x4] sm:$0xf]
    %v513 = vld [vmem:[#allocation10 + $0x8] sm:$0xf]
    %v514 = vld [vmem:[#allocation10 + $0xc] sm:$0xf]
    %v515 = vld [vmem:[#allocation14] sm:$0x1]
    %v517 = vlaneseq
    %v518 = vshrl.u32 %v517, 7
    %v519 = vsub.s32 0, %v518
    %v520 = vrot.slane %v515, %v519
    %v526 = vunpack.c.l.b16 %v503
    %v527 = vunpack.c.l.b16 %v504
    %v528 = vunpack.c.l.b16 %v505
    %v529 = vunpack.c.l.b16 %v506
    %v530 = vpack.c.b16 %v527, %v526
    %v531 = vpack.c.b16 %v529, %v528
    %vm534 = vcmask 261120
    %v536 = vsel %vm534, 0, 0
    %538 = vmatprep.subr.bf16.mxu0 0
    %539 = vmatpush1.bf16.msra.mxu0 %v530
    %540 = vmatprep.subr.bf16.mxu0 0
    %541 = vmatpush1.bf16.msra.mxu0 %v531
    %542 = vmatprep.subr.bf16.mxu0 0
    %543 = vmatpush1.bf16.msra.mxu0 0
    %544 = vmatprep.subr.bf16.mxu0 0
    %545 = vmatpush1.bf16.msra.mxu0 0
    %546 = vmatprep.subr.bf16.mxu0 0
    %547 = vmatpush1.bf16.msra.mxu0 0
    %548 = vmatprep.subr.bf16.mxu0 0
    %549 = vmatpush1.bf16.msra.mxu0 0
    %550 = vmatprep.subr.bf16.mxu0 0
    %551 = vmatpush1.bf16.msra.mxu0 0
    %552 = vmatprep.subr.bf16.mxu0 0
    %553 = vmatpush1.bf16.msra.mxu0 0
    %554 = vmatprep.subr.bf16.mxu0 0
    %555 = vmatpush1.bf16.msra.mxu0 0
    %556 = vmatprep.subr.bf16.mxu0 0
    %557 = vmatpush1.bf16.msra.mxu0 0
    %558 = vmatprep.subr.bf16.mxu0 0
    %559 = vmatpush1.bf16.msra.mxu0 0
    %560 = vmatprep.subr.bf16.mxu0 0
    %561 = vmatpush1.bf16.msra.mxu0 0
    %562 = vmatprep.subr.bf16.mxu0 0
    %563 = vmatpush1.bf16.msra.mxu0 0
    %564 = vmatprep.subr.bf16.mxu0 0
    %565 = vmatpush1.bf16.msra.mxu0 0
    %566 = vmatprep.subr.bf16.mxu0 0
    %567 = vmatpush1.bf16.msra.mxu0 0
    %568 = vmatprep.subr.bf16.mxu0 0
    %569 = vmatpush1.bf16.msra.mxu0 0
    %570 = vmatprep.mubr.bf16.mxu0 0
    %571 = vmatmul.mubr.bf16.gmra.mrb[0].mxu0 %v536
    %v572 = vpop.f32.mrb[0].mxu0
    %v573 = vadd.f32 0.0, %v572
    %v574 = vpop.f32.mrb[0].mxu0
    %v575 = vpop.f32.mrb[0].mxu0
    %v576 = vpop.f32.mrb[0].mxu0
    %577 = vdwg.mxu0
    %v582 = vunpack.c.l.b16 %v507
    %v583 = vunpack.c.l.b16 %v508
    %v584 = vunpack.c.l.b16 %v509
    %v585 = vunpack.c.l.b16 %v510
    %v586 = vpack.c.b16 %v583, %v582
    %v587 = vpack.c.b16 %v585, %v584
    %590 = vmatprep.subr.bf16.mxu0 0
    %591 = vmatpush1.bf16.msra.mxu0 %v586
    %592 = vmatprep.subr.bf16.mxu0 0
    %593 = vmatpush1.bf16.msra.mxu0 %v587
    %594 = vmatprep.subr.bf16.mxu0 0
    %595 = vmatpush1.bf16.msra.mxu0 0
    %596 = vmatprep.subr.bf16.mxu0 0
    %597 = vmatpush1.bf16.msra.mxu0 0
    %598 = vmatprep.subr.bf16.mxu0 0
    %599 = vmatpush1.bf16.msra.mxu0 0
    %600 = vmatprep.subr.bf16.mxu0 0
    %601 = vmatpush1.bf16.msra.mxu0 0
    %602 = vmatprep.subr.bf16.mxu0 0
    %603 = vmatpush1.bf16.msra.mxu0 0
    %604 = vmatprep.subr.bf16.mxu0 0
    %605 = vmatpush1.bf16.msra.mxu0 0
    %606 = vmatprep.subr.bf16.mxu0 0
    %607 = vmatpush1.bf16.msra.mxu0 0
    %608 = vmatprep.subr.bf16.mxu0 0
    %609 = vmatpush1.bf16.msra.mxu0 0
    %610 = vmatprep.subr.bf16.mxu0 0
    %611 = vmatpush1.bf16.msra.mxu0 0
    %612 = vmatprep.subr.bf16.mxu0 0
    %613 = vmatpush1.bf16.msra.mxu0 0
    %614 = vmatprep.subr.bf16.mxu0 0
    %615 = vmatpush1.bf16.msra.mxu0 0
    %616 = vmatprep.subr.bf16.mxu0 0
    %617 = vmatpush1.bf16.msra.mxu0 0
    %618 = vmatprep.subr.bf16.mxu0 0
    %619 = vmatpush1.bf16.msra.mxu0 0
    %620 = vmatprep.subr.bf16.mxu0 0
    %621 = vmatpush1.bf16.msra.mxu0 0
    %622 = vmatprep.mubr.bf16.mxu0 0
    %623 = vmatmul.mubr.bf16.gmra.mrb[0].mxu0 %v536
    %v624 = vpop.f32.mrb[0].mxu0
    %v625 = vadd.f32 0.0, %v624
    %v626 = vpop.f32.mrb[0].mxu0
    %v627 = vpop.f32.mrb[0].mxu0
    %v628 = vpop.f32.mrb[0].mxu0
    %629 = vdwg.mxu0
    %v634 = vunpack.c.l.b16 %v511
    %v635 = vunpack.c.l.b16 %v512
    %v636 = vunpack.c.l.b16 %v513
    %v637 = vunpack.c.l.b16 %v514
    %v638 = vpack.c.b16 %v635, %v634
    %v639 = vpack.c.b16 %v637, %v636
    %642 = vmatprep.subr.bf16.mxu0 0
    %643 = vmatpush1.bf16.msra.mxu0 %v638
    %644 = vmatprep.subr.bf16.mxu0 0
    %645 = vmatpush1.bf16.msra.mxu0 %v639
    %646 = vmatprep.subr.bf16.mxu0 0
    %647 = vmatpush1.bf16.msra.mxu0 0
    %648 = vmatprep.subr.bf16.mxu0 0
    %649 = vmatpush1.bf16.msra.mxu0 0
    %650 = vmatprep.subr.bf16.mxu0 0
    %651 = vmatpush1.bf16.msra.mxu0 0
    %652 = vmatprep.subr.bf16.mxu0 0
    %653 = vmatpush1.bf16.msra.mxu0 0
    %654 = vmatprep.subr.bf16.mxu0 0
    %655 = vmatpush1.bf16.msra.mxu0 0
    %656 = vmatprep.subr.bf16.mxu0 0
    %657 = vmatpush1.bf16.msra.mxu0 0
    %658 = vmatprep.subr.bf16.mxu0 0
    %659 = vmatpush1.bf16.msra.mxu0 0
    %660 = vmatprep.subr.bf16.mxu0 0
    %661 = vmatpush1.bf16.msra.mxu0 0
    %662 = vmatprep.subr.bf16.mxu0 0
    %663 = vmatpush1.bf16.msra.mxu0 0
    %664 = vmatprep.subr.bf16.mxu0 0
    %665 = vmatpush1.bf16.msra.mxu0 0
    %666 = vmatprep.subr.bf16.mxu0 0
    %667 = vmatpush1.bf16.msra.mxu0 0
    %668 = vmatprep.subr.bf16.mxu0 0
    %669 = vmatpush1.bf16.msra.mxu0 0
    %670 = vmatprep.subr.bf16.mxu0 0
    %671 = vmatpush1.bf16.msra.mxu0 0
    %672 = vmatprep.subr.bf16.mxu0 0
    %673 = vmatpush1.bf16.msra.mxu0 0
    %674 = vmatprep.mubr.bf16.mxu0 0
    %675 = vmatmul.mubr.bf16.gmra.mrb[0].mxu0 %v536
    %v676 = vpop.f32.mrb[0].mxu0
    %v677 = vadd.f32 %v520, %v676
    %v678 = vpop.f32.mrb[0].mxu0
    %v679 = vpop.f32.mrb[0].mxu0
    %v680 = vpop.f32.mrb[0].mxu0
    %681 = vdwg.mxu0
    %v682 = vadd.f32 %v313, %v573
    %v683 = vxor.u32 %v682, 2147483648
    %v684 = vmul.f32 %v683, 1.442695
    %v685 = vpow.pop %v684
    %v686 = vadd.f32 %v685, 1.0
    %v687 = vrcp.pop %v686
    %v688 = vmul.f32 1.0, %v687
    %v689 = vadd.f32 %v393, %v625
    %v690 = vxor.u32 %v689, 2147483648
    %v691 = vmul.f32 %v690, 1.442695
    %v692 = vpow.pop %v691
    %v693 = vadd.f32 %v692, 1.0
    %v694 = vrcp.pop %v693
    %v695 = vmul.f32 1.0, %v694
    %v696 = vmul.f32 %v688, %v677
    %v697 = vadd.f32 %v473, %v696
    %v698 = vtanh.pop %v697
    %v699 = vsub.f32 1.0, %v695
    %v700 = vmul.f32 %v699, %v698
    %v701 = vmul.f32 %v695, 0.0
    %v702 = vadd.f32 %v700, %v701
    %v703 = vpack.c.bf16 %v702, %v702
    %v705 = vsel %vm534, %v703, 0
    %707 = vmatprep.subr.bf16.mxu0 0
    %708 = vmatpush1.bf16.msra.mxu0 %v530
    %709 = vmatprep.subr.bf16.mxu0 0
    %710 = vmatpush1.bf16.msra.mxu0 %v531
    %711 = vmatprep.subr.bf16.mxu0 0
    %712 = vmatpush1.bf16.msra.mxu0 0
    %713 = vmatprep.subr.bf16.mxu0 0
    %714 = vmatpush1.bf16.msra.mxu0 0
    %715 = vmatprep.subr.bf16.mxu0 0
    %716 = vmatpush1.bf16.msra.mxu0 0
    %717 = vmatprep.subr.bf16.mxu0 0
    %718 = vmatpush1.bf16.msra.mxu0 0
    %719 = vmatprep.subr.bf16.mxu0 0
    %720 = vmatpush1.bf16.msra.mxu0 0
    %721 = vmatprep.subr.bf16.mxu0 0
    %722 = vmatpush1.bf16.msra.mxu0 0
    %723 = vmatprep.subr.bf16.mxu0 0
    %724 = vmatpush1.bf16.msra.mxu0 0
    %725 = vmatprep.subr.bf16.mxu0 0
    %726 = vmatpush1.bf16.msra.mxu0 0
    %727 = vmatprep.subr.bf16.mxu0 0
    %728 = vmatpush1.bf16.msra.mxu0 0
    %729 = vmatprep.subr.bf16.mxu0 0
    %730 = vmatpush1.bf16.msra.mxu0 0
    %731 = vmatprep.subr.bf16.mxu0 0
    %732 = vmatpush1.bf16.msra.mxu0 0
    %733 = vmatprep.subr.bf16.mxu0 0
    %734 = vmatpush1.bf16.msra.mxu0 0
    %735 = vmatprep.subr.bf16.mxu0 0
    %736 = vmatpush1.bf16.msra.mxu0 0
    %737 = vmatprep.subr.bf16.mxu0 0
    %738 = vmatpush1.bf16.msra.mxu0 0
    %739 = vmatprep.mubr.bf16.mxu0 0
    %740 = vmatmul.mubr.bf16.gmra.mrb[0].mxu0 %v705
    %v741 = vpop.f32.mrb[0].mxu0
    %v742 = vadd.f32 0.0, %v741
    %v743 = vpop.f32.mrb[0].mxu0
    %v744 = vpop.f32.mrb[0].mxu0
    %v745 = vpop.f32.mrb[0].mxu0
    %746 = vdwg.mxu0
    %747 = vmatprep.subr.bf16.mxu0 0
    %748 = vmatpush1.bf16.msra.mxu0 %v586
    %749 = vmatprep.subr.bf16.mxu0 0
    %750 = vmatpush1.bf16.msra.mxu0 %v587
    %751 = vmatprep.subr.bf16.mxu0 0
    %752 = vmatpush1.bf16.msra.mxu0 0
    %753 = vmatprep.subr.bf16.mxu0 0
    %754 = vmatpush1.bf16.msra.mxu0 0
    %755 = vmatprep.subr.bf16.mxu0 0
    %756 = vmatpush1.bf16.msra.mxu0 0
    %757 = vmatprep.subr.bf16.mxu0 0
    %758 = vmatpush1.bf16.msra.mxu0 0
    %759 = vmatprep.subr.bf16.mxu0 0
    %760 = vmatpush1.bf16.msra.mxu0 0
    %761 = vmatprep.subr.bf16.mxu0 0
    %762 = vmatpush1.bf16.msra.mxu0 0
    %763 = vmatprep.subr.bf16.mxu0 0
    %764 = vmatpush1.bf16.msra.mxu0 0
    %765 = vmatprep.subr.bf16.mxu0 0
    %766 = vmatpush1.bf16.msra.mxu0 0
    %767 = vmatprep.subr.bf16.mxu0 0
    %768 = vmatpush1.bf16.msra.mxu0 0
    %769 = vmatprep.subr.bf16.mxu0 0
    %770 = vmatpush1.bf16.msra.mxu0 0
    %771 = vmatprep.subr.bf16.mxu0 0
    %772 = vmatpush1.bf16.msra.mxu0 0
    %773 = vmatprep.subr.bf16.mxu0 0
    %774 = vmatpush1.bf16.msra.mxu0 0
    %775 = vmatprep.subr.bf16.mxu0 0
    %776 = vmatpush1.bf16.msra.mxu0 0
    %777 = vmatprep.subr.bf16.mxu0 0
    %778 = vmatpush1.bf16.msra.mxu0 0
    %779 = vmatprep.mubr.bf16.mxu0 0
    %780 = vmatmul.mubr.bf16.gmra.mrb[0].mxu0 %v705
    %v781 = vpop.f32.mrb[0].mxu0
    %v782 = vadd.f32 0.0, %v781
    %v783 = vpop.f32.mrb[0].mxu0
    %v784 = vpop.f32.mrb[0].mxu0
    %v785 = vpop.f32.mrb[0].mxu0
    %786 = vdwg.mxu0
    %787 = vmatprep.subr.bf16.mxu0 0
    %788 = vmatpush1.bf16.msra.mxu0 %v638
    %789 = vmatprep.subr.bf16.mxu0 0
    %790 = vmatpush1.bf16.msra.mxu0 %v639
    %791 = vmatprep.subr.bf16.mxu0 0
    %792 = vmatpush1.bf16.msra.mxu0 0
    %793 = vmatprep.subr.bf16.mxu0 0
    %794 = vmatpush1.bf16.msra.mxu0 0
    %795 = vmatprep.subr.bf16.mxu0 0
    %796 = vmatpush1.bf16.msra.mxu0 0
    %797 = vmatprep.subr.bf16.mxu0 0
    %798 = vmatpush1.bf16.msra.mxu0 0
    %799 = vmatprep.subr.bf16.mxu0 0
    %800 = vmatpush1.bf16.msra.mxu0 0
    %801 = vmatprep.subr.bf16.mxu0 0
    %802 = vmatpush1.bf16.msra.mxu0 0
    %803 = vmatprep.subr.bf16.mxu0 0
    %804 = vmatpush1.bf16.msra.mxu0 0
    %805 = vmatprep.subr.bf16.mxu0 0
    %806 = vmatpush1.bf16.msra.mxu0 0
    %807 = vmatprep.subr.bf16.mxu0 0
    %808 = vmatpush1.bf16.msra.mxu0 0
    %809 = vmatprep.subr.bf16.mxu0 0
    %810 = vmatpush1.bf16.msra.mxu0 0
    %811 = vmatprep.subr.bf16.mxu0 0
    %812 = vmatpush1.bf16.msra.mxu0 0
    %813 = vmatprep.subr.bf16.mxu0 0
    %814 = vmatpush1.bf16.msra.mxu0 0
    %815 = vmatprep.subr.bf16.mxu0 0
    %816 = vmatpush1.bf16.msra.mxu0 0
    %817 = vmatprep.subr.bf16.mxu0 0
    %818 = vmatpush1.bf16.msra.mxu0 0
    %819 = vmatprep.mubr.bf16.mxu0 0
    %820 = vmatmul.mubr.bf16.gmra.mrb[0].mxu0 %v705
    %v821 = vpop.f32.mrb[0].mxu0
    %v822 = vadd.f32 %v520, %v821
    %v823 = vpop.f32.mrb[0].mxu0
    %v824 = vpop.f32.mrb[0].mxu0
    %v825 = vpop.f32.mrb[0].mxu0
    %826 = vdwg.mxu0
    %v827 = vadd.f32 %v316, %v742
    %v828 = vxor.u32 %v827, 2147483648
    %v829 = vmul.f32 %v828, 1.442695
    %v830 = vpow.pop %v829
    %v831 = vadd.f32 %v830, 1.0
    %v832 = vrcp.pop %v831
    %v833 = vmul.f32 1.0, %v832
    %v834 = vadd.f32 %v396, %v782
    %v835 = vxor.u32 %v834, 2147483648
    %v836 = vmul.f32 %v835, 1.442695
    %v837 = vpow.pop %v836
    %v838 = vadd.f32 %v837, 1.0
    %v839 = vrcp.pop %v838
    %v840 = vmul.f32 1.0, %v839
    %v841 = vmul.f32 %v833, %v822
    %v842 = vadd.f32 %v476, %v841
    %v843 = vtanh.pop %v842
    %v844 = vsub.f32 1.0, %v840
    %v845 = vmul.f32 %v844, %v843
    %v846 = vmul.f32 %v840, %v702
    %v847 = vadd.f32 %v845, %v846
    %v848 = vpack.c.bf16 %v847, %v847
    %v850 = vsel %vm534, %v848, 0
    %852 = vmatprep.subr.bf16.mxu0 0
    %853 = vmatpush1.bf16.msra.mxu0 %v530
    %854 = vmatprep.subr.bf16.mxu0 0
    %855 = vmatpush1.bf16.msra.mxu0 %v531
    %856 = vmatprep.subr.bf16.mxu0 0
    %857 = vmatpush1.bf16.msra.mxu0 0
    %858 = vmatprep.subr.bf16.mxu0 0
    %859 = vmatpush1.bf16.msra.mxu0 0
    %860 = vmatprep.subr.bf16.mxu0 0
    %861 = vmatpush1.bf16.msra.mxu0 0
    %862 = vmatprep.subr.bf16.mxu0 0
    %863 = vmatpush1.bf16.msra.mxu0 0
    %864 = vmatprep.subr.bf16.mxu0 0
    %865 = vmatpush1.bf16.msra.mxu0 0
    %866 = vmatprep.subr.bf16.mxu0 0
    %867 = vmatpush1.bf16.msra.mxu0 0
    %868 = vmatprep.subr.bf16.mxu0 0
    %869 = vmatpush1.bf16.msra.mxu0 0
    %870 = vmatprep.subr.bf16.mxu0 0
    %871 = vmatpush1.bf16.msra.mxu0 0
    %872 = vmatprep.subr.bf16.mxu0 0
    %873 = vmatpush1.bf16.msra.mxu0 0
    %874 = vmatprep.subr.bf16.mxu0 0
    %875 = vmatpush1.bf16.msra.mxu0 0
    %876 = vmatprep.subr.bf16.mxu0 0
    %877 = vmatpush1.bf16.msra.mxu0 0
    %878 = vmatprep.subr.bf16.mxu0 0
    %879 = vmatpush1.bf16.msra.mxu0 0
    %880 = vmatprep.subr.bf16.mxu0 0
    %881 = vmatpush1.bf16.msra.mxu0 0
    %882 = vmatprep.subr.bf16.mxu0 0
    %883 = vmatpush1.bf16.msra.mxu0 0
    %884 = vmatprep.mubr.bf16.mxu0 0
    %885 = vmatmul.mubr.bf16.gmra.mrb[0].mxu0 %v850
    %v886 = vpop.f32.mrb[0].mxu0
    %v887 = vadd.f32 0.0, %v886
    %v888 = vpop.f32.mrb[0].mxu0
    %v889 = vpop.f32.mrb[0].mxu0
    %v890 = vpop.f32.mrb[0].mxu0
    %891 = vdwg.mxu0
    %892 = vmatprep.subr.bf16.mxu0 0
    %893 = vmatpush1.bf16.msra.mxu0 %v586
    %894 = vmatprep.subr.bf16.mxu0 0
    %895 = vmatpush1.bf16.msra.mxu0 %v587
    %896 = vmatprep.subr.bf16.mxu0 0
    %897 = vmatpush1.bf16.msra.mxu0 0
    %898 = vmatprep.subr.bf16.mxu0 0
    %899 = vmatpush1.bf16.msra.mxu0 0
    %900 = vmatprep.subr.bf16.mxu0 0
    %901 = vmatpush1.bf16.msra.mxu0 0
    %902 = vmatprep.subr.bf16.mxu0 0
    %903 = vmatpush1.bf16.msra.mxu0 0
    %904 = vmatprep.subr.bf16.mxu0 0
    %905 = vmatpush1.bf16.msra.mxu0 0
    %906 = vmatprep.subr.bf16.mxu0 0
    %907 = vmatpush1.bf16.msra.mxu0 0
    %908 = vmatprep.subr.bf16.mxu0 0
    %909 = vmatpush1.bf16.msra.mxu0 0
    %910 = vmatprep.subr.bf16.mxu0 0
    %911 = vmatpush1.bf16.msra.mxu0 0
    %912 = vmatprep.subr.bf16.mxu0 0
    %913 = vmatpush1.bf16.msra.mxu0 0
    %914 = vmatprep.subr.bf16.mxu0 0
    %915 = vmatpush1.bf16.msra.mxu0 0
    %916 = vmatprep.subr.bf16.mxu0 0
    %917 = vmatpush1.bf16.msra.mxu0 0
    %918 = vmatprep.subr.bf16.mxu0 0
    %919 = vmatpush1.bf16.msra.mxu0 0
    %920 = vmatprep.subr.bf16.mxu0 0
    %921 = vmatpush1.bf16.msra.mxu0 0
    %922 = vmatprep.subr.bf16.mxu0 0
    %923 = vmatpush1.bf16.msra.mxu0 0
    %924 = vmatprep.mubr.bf16.mxu0 0
    %925 = vmatmul.mubr.bf16.gmra.mrb[0].mxu0 %v850
    %v926 = vpop.f32.mrb[0].mxu0
    %v927 = vadd.f32 0.0, %v926
    %v928 = vpop.f32.mrb[0].mxu0
    %v929 = vpop.f32.mrb[0].mxu0
    %v930 = vpop.f32.mrb[0].mxu0
    %931 = vdwg.mxu0
    %932 = vmatprep.subr.bf16.mxu0 0
    %933 = vmatpush1.bf16.msra.mxu0 %v638
    %934 = vmatprep.subr.bf16.mxu0 0
    %935 = vmatpush1.bf16.msra.mxu0 %v639
    %936 = vmatprep.subr.bf16.mxu0 0
    %937 = vmatpush1.bf16.msra.mxu0 0
    %938 = vmatprep.subr.bf16.mxu0 0
    %939 = vmatpush1.bf16.msra.mxu0 0
    %940 = vmatprep.subr.bf16.mxu0 0
    %941 = vmatpush1.bf16.msra.mxu0 0
    %942 = vmatprep.subr.bf16.mxu0 0
    %943 = vmatpush1.bf16.msra.mxu0 0
    %944 = vmatprep.subr.bf16.mxu0 0
    %945 = vmatpush1.bf16.msra.mxu0 0
    %946 = vmatprep.subr.bf16.mxu0 0
    %947 = vmatpush1.bf16.msra.mxu0 0
    %948 = vmatprep.subr.bf16.mxu0 0
    %949 = vmatpush1.bf16.msra.mxu0 0
    %950 = vmatprep.subr.bf16.mxu0 0
    %951 = vmatpush1.bf16.msra.mxu0 0
    %952 = vmatprep.subr.bf16.mxu0 0
    %953 = vmatpush1.bf16.msra.mxu0 0
    %954 = vmatprep.subr.bf16.mxu0 0
    %955 = vmatpush1.bf16.msra.mxu0 0
    %956 = vmatprep.subr.bf16.mxu0 0
    %957 = vmatpush1.bf16.msra.mxu0 0
    %958 = vmatprep.subr.bf16.mxu0 0
    %959 = vmatpush1.bf16.msra.mxu0 0
    %960 = vmatprep.subr.bf16.mxu0 0
    %961 = vmatpush1.bf16.msra.mxu0 0
    %962 = vmatprep.subr.bf16.mxu0 0
    %963 = vmatpush1.bf16.msra.mxu0 0
    %964 = vmatprep.mubr.bf16.mxu0 0
    %965 = vmatmul.mubr.bf16.gmra.mrb[0].mxu0 %v850
    %v966 = vpop.f32.mrb[0].mxu0
    %v967 = vadd.f32 %v520, %v966
    %v968 = vpop.f32.mrb[0].mxu0
    %v969 = vpop.f32.mrb[0].mxu0
    %v970 = vpop.f32.mrb[0].mxu0
    %971 = vdwg.mxu0
    %v972 = vadd.f32 %v321, %v887
    %v973 = vxor.u32 %v972, 2147483648
    %v974 = vmul.f32 %v973, 1.442695
    %v975 = vpow.pop %v974
    %v976 = vadd.f32 %v975, 1.0
    %v977 = vrcp.pop %v976
    %v978 = vmul.f32 1.0, %v977
    %v979 = vadd.f32 %v401, %v927
    %v980 = vxor.u32 %v979, 2147483648
    %v981 = vmul.f32 %v980, 1.442695
    %v982 = vpow.pop %v981
    %v983 = vadd.f32 %v982, 1.0
    %v984 = vrcp.pop %v983
    %v985 = vmul.f32 1.0, %v984
    %v986 = vmul.f32 %v978, %v967
    %v987 = vadd.f32 %v481, %v986
    %v988 = vtanh.pop %v987
    %v989 = vsub.f32 1.0, %v985
    %v990 = vmul.f32 %v989, %v988
    %v991 = vmul.f32 %v985, %v847
    %v992 = vadd.f32 %v990, %v991
    %v993 = vpack.c.bf16 %v992, %v992
    %v995 = vsel %vm534, %v993, 0
    %997 = vmatprep.subr.bf16.mxu0 0
    %998 = vmatpush1.bf16.msra.mxu0 %v530
    %999 = vmatprep.subr.bf16.mxu0 0
    %1000 = vmatpush1.bf16.msra.mxu0 %v531
    %1001 = vmatprep.subr.bf16.mxu0 0
    %1002 = vmatpush1.bf16.msra.mxu0 0
    %1003 = vmatprep.subr.bf16.mxu0 0
    %1004 = vmatpush1.bf16.msra.mxu0 0
    %1005 = vmatprep.subr.bf16.mxu0 0
    %1006 = vmatpush1.bf16.msra.mxu0 0
    %1007 = vmatprep.subr.bf16.mxu0 0
    %1008 = vmatpush1.bf16.msra.mxu0 0
    %1009 = vmatprep.subr.bf16.mxu0 0
    %1010 = vmatpush1.bf16.msra.mxu0 0
    %1011 = vmatprep.subr.bf16.mxu0 0
    %1012 = vmatpush1.bf16.msra.mxu0 0
    %1013 = vmatprep.subr.bf16.mxu0 0
    %1014 = vmatpush1.bf16.msra.mxu0 0
    %1015 = vmatprep.subr.bf16.mxu0 0
    %1016 = vmatpush1.bf16.msra.mxu0 0
    %1017 = vmatprep.subr.bf16.mxu0 0
    %1018 = vmatpush1.bf16.msra.mxu0 0
    %1019 = vmatprep.subr.bf16.mxu0 0
    %1020 = vmatpush1.bf16.msra.mxu0 0
    %1021 = vmatprep.subr.bf16.mxu0 0
    %1022 = vmatpush1.bf16.msra.mxu0 0
    %1023 = vmatprep.subr.bf16.mxu0 0
    %1024 = vmatpush1.bf16.msra.mxu0 0
    %1025 = vmatprep.subr.bf16.mxu0 0
    %1026 = vmatpush1.bf16.msra.mxu0 0
    %1027 = vmatprep.subr.bf16.mxu0 0
    %1028 = vmatpush1.bf16.msra.mxu0 0
    %1029 = vmatprep.mubr.bf16.mxu0 0
    %1030 = vmatmul.mubr.bf16.gmra.mrb[0].mxu0 %v995
    %v1031 = vpop.f32.mrb[0].mxu0
    %v1032 = vadd.f32 0.0, %v1031
    %v1033 = vpop.f32.mrb[0].mxu0
    %v1034 = vpop.f32.mrb[0].mxu0
    %v1035 = vpop.f32.mrb[0].mxu0
    %1036 = vdwg.mxu0
    %1037 = vmatprep.subr.bf16.mxu0 0
    %1038 = vmatpush1.bf16.msra.mxu0 %v586
    %1039 = vmatprep.subr.bf16.mxu0 0
    %1040 = vmatpush1.bf16.msra.mxu0 %v587
    %1041 = vmatprep.subr.bf16.mxu0 0
    %1042 = vmatpush1.bf16.msra.mxu0 0
    %1043 = vmatprep.subr.bf16.mxu0 0
    %1044 = vmatpush1.bf16.msra.mxu0 0
    %1045 = vmatprep.subr.bf16.mxu0 0
    %1046 = vmatpush1.bf16.msra.mxu0 0
    %1047 = vmatprep.subr.bf16.mxu0 0
    %1048 = vmatpush1.bf16.msra.mxu0 0
    %1049 = vmatprep.subr.bf16.mxu0 0
    %1050 = vmatpush1.bf16.msra.mxu0 0
    %1051 = vmatprep.subr.bf16.mxu0 0
    %1052 = vmatpush1.bf16.msra.mxu0 0
    %1053 = vmatprep.subr.bf16.mxu0 0
    %1054 = vmatpush1.bf16.msra.mxu0 0
    %1055 = vmatprep.subr.bf16.mxu0 0
    %1056 = vmatpush1.bf16.msra.mxu0 0
    %1057 = vmatprep.subr.bf16.mxu0 0
    %1058 = vmatpush1.bf16.msra.mxu0 0
    %1059 = vmatprep.subr.bf16.mxu0 0
    %1060 = vmatpush1.bf16.msra.mxu0 0
    %1061 = vmatprep.subr.bf16.mxu0 0
    %1062 = vmatpush1.bf16.msra.mxu0 0
    %1063 = vmatprep.subr.bf16.mxu0 0
    %1064 = vmatpush1.bf16.msra.mxu0 0
    %1065 = vmatprep.subr.bf16.mxu0 0
    %1066 = vmatpush1.bf16.msra.mxu0 0
    %1067 = vmatprep.subr.bf16.mxu0 0
    %1068 = vmatpush1.bf16.msra.mxu0 0
    %1069 = vmatprep.mubr.bf16.mxu0 0
    %1070 = vmatmul.mubr.bf16.gmra.mrb[0].mxu0 %v995
    %v1071 = vpop.f32.mrb[0].mxu0
    %v1072 = vadd.f32 0.0, %v1071
    %v1073 = vpop.f32.mrb[0].mxu0
    %v1074 = vpop.f32.mrb[0].mxu0
    %v1075 = vpop.f32.mrb[0].mxu0
    %1076 = vdwg.mxu0
    %1077 = vmatprep.subr.bf16.mxu0 0
    %1078 = vmatpush1.bf16.msra.mxu0 %v638
    %1079 = vmatprep.subr.bf16.mxu0 0
    %1080 = vmatpush1.bf16.msra.mxu0 %v639
    %1081 = vmatprep.subr.bf16.mxu0 0
    %1082 = vmatpush1.bf16.msra.mxu0 0
    %1083 = vmatprep.subr.bf16.mxu0 0
    %1084 = vmatpush1.bf16.msra.mxu0 0
    %1085 = vmatprep.subr.bf16.mxu0 0
    %1086 = vmatpush1.bf16.msra.mxu0 0
    %1087 = vmatprep.subr.bf16.mxu0 0
    %1088 = vmatpush1.bf16.msra.mxu0 0
    %1089 = vmatprep.subr.bf16.mxu0 0
    %1090 = vmatpush1.bf16.msra.mxu0 0
    %1091 = vmatprep.subr.bf16.mxu0 0
    %1092 = vmatpush1.bf16.msra.mxu0 0
    %1093 = vmatprep.subr.bf16.mxu0 0
    %1094 = vmatpush1.bf16.msra.mxu0 0
    %1095 = vmatprep.subr.bf16.mxu0 0
    %1096 = vmatpush1.bf16.msra.mxu0 0
    %1097 = vmatprep.subr.bf16.mxu0 0
    %1098 = vmatpush1.bf16.msra.mxu0 0
    %1099 = vmatprep.subr.bf16.mxu0 0
    %1100 = vmatpush1.bf16.msra.mxu0 0
    %1101 = vmatprep.subr.bf16.mxu0 0
    %1102 = vmatpush1.bf16.msra.mxu0 0
    %1103 = vmatprep.subr.bf16.mxu0 0
    %1104 = vmatpush1.bf16.msra.mxu0 0
    %1105 = vmatprep.subr.bf16.mxu0 0
    %1106 = vmatpush1.bf16.msra.mxu0 0
    %1107 = vmatprep.subr.bf16.mxu0 0
    %1108 = vmatpush1.bf16.msra.mxu0 0
    %1109 = vmatprep.mubr.bf16.mxu0 0
    %1110 = vmatmul.mubr.bf16.gmra.mrb[0].mxu0 %v995
    %v1111 = vpop.f32.mrb[0].mxu0
    %v1112 = vadd.f32 %v520, %v1111
    %v1113 = vpop.f32.mrb[0].mxu0
    %v1114 = vpop.f32.mrb[0].mxu0
    %v1115 = vpop.f32.mrb[0].mxu0
    %1116 = vdwg.mxu0
    %v1117 = vadd.f32 %v324, %v1032
    %v1118 = vxor.u32 %v1117, 2147483648
    %v1119 = vmul.f32 %v1118, 1.442695
    %v1120 = vpow.pop %v1119
    %v1121 = vadd.f32 %v1120, 1.0
    %v1122 = vrcp.pop %v1121
    %v1123 = vmul.f32 1.0, %v1122
    %v1124 = vadd.f32 %v404, %v1072
    %v1125 = vxor.u32 %v1124, 2147483648
    %v1126 = vmul.f32 %v1125, 1.442695
    %v1127 = vpow.pop %v1126
    %v1128 = vadd.f32 %v1127, 1.0
    %v1129 = vrcp.pop %v1128
    %v1130 = vmul.f32 1.0, %v1129
    %v1131 = vmul.f32 %v1123, %v1112
    %v1132 = vadd.f32 %v484, %v1131
    %v1133 = vtanh.pop %v1132
    %v1134 = vsub.f32 1.0, %v1130
    %v1135 = vmul.f32 %v1134, %v1133
    %v1136 = vmul.f32 %v1130, %v992
    %v1137 = vadd.f32 %v1135, %v1136
    %v1138 = vpack.c.bf16 %v1137, %v1137
    %v1140 = vsel %vm534, %v1138, 0
    %1142 = vmatprep.subr.bf16.mxu0 0
    %1143 = vmatpush1.bf16.msra.mxu0 %v530
    %1144 = vmatprep.subr.bf16.mxu0 0
    %1145 = vmatpush1.bf16.msra.mxu0 %v531
    %1146 = vmatprep.subr.bf16.mxu0 0
    %1147 = vmatpush1.bf16.msra.mxu0 0
    %1148 = vmatprep.subr.bf16.mxu0 0
    %1149 = vmatpush1.bf16.msra.mxu0 0
    %1150 = vmatprep.subr.bf16.mxu0 0
    %1151 = vmatpush1.bf16.msra.mxu0 0
    %1152 = vmatprep.subr.bf16.mxu0 0
    %1153 = vmatpush1.bf16.msra.mxu0 0
    %1154 = vmatprep.subr.bf16.mxu0 0
    %1155 = vmatpush1.bf16.msra.mxu0 0
    %1156 = vmatprep.subr.bf16.mxu0 0
    %1157 = vmatpush1.bf16.msra.mxu0 0
    %1158 = vmatprep.subr.bf16.mxu0 0
    %1159 = vmatpush1.bf16.msra.mxu0 0
    %1160 = vmatprep.subr.bf16.mxu0 0
    %1161 = vmatpush1.bf16.msra.mxu0 0
    %1162 = vmatprep.subr.bf16.mxu0 0
    %1163 = vmatpush1.bf16.msra.mxu0 0
    %1164 = vmatprep.subr.bf16.mxu0 0
    %1165 = vmatpush1.bf16.msra.mxu0 0
    %1166 = vmatprep.subr.bf16.mxu0 0
    %1167 = vmatpush1.bf16.msra.mxu0 0
    %1168 = vmatprep.subr.bf16.mxu0 0
    %1169 = vmatpush1.bf16.msra.mxu0 0
    %1170 = vmatprep.subr.bf16.mxu0 0
    %1171 = vmatpush1.bf16.msra.mxu0 0
    %1172 = vmatprep.subr.bf16.mxu0 0
    %1173 = vmatpush1.bf16.msra.mxu0 0
    %1174 = vmatprep.mubr.bf16.mxu0 0
    %1175 = vmatmul.mubr.bf16.gmra.mrb[0].mxu0 %v1140
    %v1176 = vpop.f32.mrb[0].mxu0
    %v1177 = vadd.f32 0.0, %v1176
    %v1178 = vpop.f32.mrb[0].mxu0
    %v1179 = vpop.f32.mrb[0].mxu0
    %v1180 = vpop.f32.mrb[0].mxu0
    %1181 = vdwg.mxu0
    %1182 = vmatprep.subr.bf16.mxu0 0
    %1183 = vmatpush1.bf16.msra.mxu0 %v586
    %1184 = vmatprep.subr.bf16.mxu0 0
    %1185 = vmatpush1.bf16.msra.mxu0 %v587
    %1186 = vmatprep.subr.bf16.mxu0 0
    %1187 = vmatpush1.bf16.msra.mxu0 0
    %1188 = vmatprep.subr.bf16.mxu0 0
    %1189 = vmatpush1.bf16.msra.mxu0 0
    %1190 = vmatprep.subr.bf16.mxu0 0
    %1191 = vmatpush1.bf16.msra.mxu0 0
    %1192 = vmatprep.subr.bf16.mxu0 0
    %1193 = vmatpush1.bf16.msra.mxu0 0
    %1194 = vmatprep.subr.bf16.mxu0 0
    %1195 = vmatpush1.bf16.msra.mxu0 0
    %1196 = vmatprep.subr.bf16.mxu0 0
    %1197 = vmatpush1.bf16.msra.mxu0 0
    %1198 = vmatprep.subr.bf16.mxu0 0
    %1199 = vmatpush1.bf16.msra.mxu0 0
    %1200 = vmatprep.subr.bf16.mxu0 0
    %1201 = vmatpush1.bf16.msra.mxu0 0
    %1202 = vmatprep.subr.bf16.mxu0 0
    %1203 = vmatpush1.bf16.msra.mxu0 0
    %1204 = vmatprep.subr.bf16.mxu0 0
    %1205 = vmatpush1.bf16.msra.mxu0 0
    %1206 = vmatprep.subr.bf16.mxu0 0
    %1207 = vmatpush1.bf16.msra.mxu0 0
    %1208 = vmatprep.subr.bf16.mxu0 0
    %1209 = vmatpush1.bf16.msra.mxu0 0
    %1210 = vmatprep.subr.bf16.mxu0 0
    %1211 = vmatpush1.bf16.msra.mxu0 0
    %1212 = vmatprep.subr.bf16.mxu0 0
    %1213 = vmatpush1.bf16.msra.mxu0 0
    %1214 = vmatprep.mubr.bf16.mxu0 0
    %1215 = vmatmul.mubr.bf16.gmra.mrb[0].mxu0 %v1140
    %v1216 = vpop.f32.mrb[0].mxu0
    %v1217 = vadd.f32 0.0, %v1216
    %v1218 = vpop.f32.mrb[0].mxu0
    %v1219 = vpop.f32.mrb[0].mxu0
    %v1220 = vpop.f32.mrb[0].mxu0
    %1221 = vdwg.mxu0
    %1222 = vmatprep.subr.bf16.mxu0 0
    %1223 = vmatpush1.bf16.msra.mxu0 %v638
    %1224 = vmatprep.subr.bf16.mxu0 0
    %1225 = vmatpush1.bf16.msra.mxu0 %v639
    %1226 = vmatprep.subr.bf16.mxu0 0
    %1227 = vmatpush1.bf16.msra.mxu0 0
    %1228 = vmatprep.subr.bf16.mxu0 0
    %1229 = vmatpush1.bf16.msra.mxu0 0
    %1230 = vmatprep.subr.bf16.mxu0 0
    %1231 = vmatpush1.bf16.msra.mxu0 0
    %1232 = vmatprep.subr.bf16.mxu0 0
    %1233 = vmatpush1.bf16.msra.mxu0 0
    %1234 = vmatprep.subr.bf16.mxu0 0
    %1235 = vmatpush1.bf16.msra.mxu0 0
    %1236 = vmatprep.subr.bf16.mxu0 0
    %1237 = vmatpush1.bf16.msra.mxu0 0
    %1238 = vmatprep.subr.bf16.mxu0 0
    %1239 = vmatpush1.bf16.msra.mxu0 0
    %1240 = vmatprep.subr.bf16.mxu0 0
    %1241 = vmatpush1.bf16.msra.mxu0 0
    %1242 = vmatprep.subr.bf16.mxu0 0
    %1243 = vmatpush1.bf16.msra.mxu0 0
    %1244 = vmatprep.subr.bf16.mxu0 0
    %1245 = vmatpush1.bf16.msra.mxu0 0
    %1246 = vmatprep.subr.bf16.mxu0 0
    %1247 = vmatpush1.bf16.msra.mxu0 0
    %1248 = vmatprep.subr.bf16.mxu0 0
    %1249 = vmatpush1.bf16.msra.mxu0 0
    %1250 = vmatprep.subr.bf16.mxu0 0
    %1251 = vmatpush1.bf16.msra.mxu0 0
    %1252 = vmatprep.subr.bf16.mxu0 0
    %1253 = vmatpush1.bf16.msra.mxu0 0
    %1254 = vmatprep.mubr.bf16.mxu0 0
    %1255 = vmatmul.mubr.bf16.gmra.mrb[0].mxu0 %v1140
    %v1256 = vpop.f32.mrb[0].mxu0
    %v1257 = vadd.f32 %v520, %v1256
    %v1258 = vpop.f32.mrb[0].mxu0
    %v1259 = vpop.f32.mrb[0].mxu0
    %v1260 = vpop.f32.mrb[0].mxu0
    %1261 = vdwg.mxu0
    %v1262 = vadd.f32 %v329, %v1177
    %v1263 = vxor.u32 %v1262, 2147483648
    %v1264 = vmul.f32 %v1263, 1.442695
    %v1265 = vpow.pop %v1264
    %v1266 = vadd.f32 %v1265, 1.0
    %v1267 = vrcp.pop %v1266
    %v1268 = vmul.f32 1.0, %v1267
    %v1269 = vadd.f32 %v409, %v1217
    %v1270 = vxor.u32 %v1269, 2147483648
    %v1271 = vmul.f32 %v1270, 1.442695
    %v1272 = vpow.pop %v1271
    %v1273 = vadd.f32 %v1272, 1.0
    %v1274 = vrcp.pop %v1273
    %v1275 = vmul.f32 1.0, %v1274
    %v1276 = vmul.f32 %v1268, %v1257
    %v1277 = vadd.f32 %v489, %v1276
    %v1278 = vtanh.pop %v1277
    %v1279 = vsub.f32 1.0, %v1275
    %v1280 = vmul.f32 %v1279, %v1278
    %v1281 = vmul.f32 %v1275, %v1137
    %v1282 = vadd.f32 %v1280, %v1281
    %v1283 = vpack.c.bf16 %v1282, %v1282
    %v1285 = vsel %vm534, %v1283, 0
    %1287 = vmatprep.subr.bf16.mxu0 0
    %1288 = vmatpush1.bf16.msra.mxu0 %v530
    %1289 = vmatprep.subr.bf16.mxu0 0
    %1290 = vmatpush1.bf16.msra.mxu0 %v531
    %1291 = vmatprep.subr.bf16.mxu0 0
    %1292 = vmatpush1.bf16.msra.mxu0 0
    %1293 = vmatprep.subr.bf16.mxu0 0
    %1294 = vmatpush1.bf16.msra.mxu0 0
    %1295 = vmatprep.subr.bf16.mxu0 0
    %1296 = vmatpush1.bf16.msra.mxu0 0
    %1297 = vmatprep.subr.bf16.mxu0 0
    %1298 = vmatpush1.bf16.msra.mxu0 0
    %1299 = vmatprep.subr.bf16.mxu0 0
    %1300 = vmatpush1.bf16.msra.mxu0 0
    %1301 = vmatprep.subr.bf16.mxu0 0
    %1302 = vmatpush1.bf16.msra.mxu0 0
    %1303 = vmatprep.subr.bf16.mxu0 0
    %1304 = vmatpush1.bf16.msra.mxu0 0
    %1305 = vmatprep.subr.bf16.mxu0 0
    %1306 = vmatpush1.bf16.msra.mxu0 0
    %1307 = vmatprep.subr.bf16.mxu0 0
    %1308 = vmatpush1.bf16.msra.mxu0 0
    %1309 = vmatprep.subr.bf16.mxu0 0
    %1310 = vmatpush1.bf16.msra.mxu0 0
    %1311 = vmatprep.subr.bf16.mxu0 0
    %1312 = vmatpush1.bf16.msra.mxu0 0
    %1313 = vmatprep.subr.bf16.mxu0 0
    %1314 = vmatpush1.bf16.msra.mxu0 0
    %1315 = vmatprep.subr.bf16.mxu0 0
    %1316 = vmatpush1.bf16.msra.mxu0 0
    %1317 = vmatprep.subr.bf16.mxu0 0
    %1318 = vmatpush1.bf16.msra.mxu0 0
    %1319 = vmatprep.mubr.bf16.mxu0 0
    %1320 = vmatmul.mubr.bf16.gmra.mrb[0].mxu0 %v1285
    %v1321 = vpop.f32.mrb[0].mxu0
    %v1322 = vadd.f32 0.0, %v1321
    %v1323 = vpop.f32.mrb[0].mxu0
    %v1324 = vpop.f32.mrb[0].mxu0
    %v1325 = vpop.f32.mrb[0].mxu0
    %1326 = vdwg.mxu0
    %1327 = vmatprep.subr.bf16.mxu0 0
    %1328 = vmatpush1.bf16.msra.mxu0 %v586
    %1329 = vmatprep.subr.bf16.mxu0 0
    %1330 = vmatpush1.bf16.msra.mxu0 %v587
    %1331 = vmatprep.subr.bf16.mxu0 0
    %1332 = vmatpush1.bf16.msra.mxu0 0
    %1333 = vmatprep.subr.bf16.mxu0 0
    %1334 = vmatpush1.bf16.msra.mxu0 0
    %1335 = vmatprep.subr.bf16.mxu0 0
    %1336 = vmatpush1.bf16.msra.mxu0 0
    %1337 = vmatprep.subr.bf16.mxu0 0
    %1338 = vmatpush1.bf16.msra.mxu0 0
    %1339 = vmatprep.subr.bf16.mxu0 0
    %1340 = vmatpush1.bf16.msra.mxu0 0
    %1341 = vmatprep.subr.bf16.mxu0 0
    %1342 = vmatpush1.bf16.msra.mxu0 0
    %1343 = vmatprep.subr.bf16.mxu0 0
    %1344 = vmatpush1.bf16.msra.mxu0 0
    %1345 = vmatprep.subr.bf16.mxu0 0
    %1346 = vmatpush1.bf16.msra.mxu0 0
    %1347 = vmatprep.subr.bf16.mxu0 0
    %1348 = vmatpush1.bf16.msra.mxu0 0
    %1349 = vmatprep.subr.bf16.mxu0 0
    %1350 = vmatpush1.bf16.msra.mxu0 0
    %1351 = vmatprep.subr.bf16.mxu0 0
    %1352 = vmatpush1.bf16.msra.mxu0 0
    %1353 = vmatprep.subr.bf16.mxu0 0
    %1354 = vmatpush1.bf16.msra.mxu0 0
    %1355 = vmatprep.subr.bf16.mxu0 0
    %1356 = vmatpush1.bf16.msra.mxu0 0
    %1357 = vmatprep.subr.bf16.mxu0 0
    %1358 = vmatpush1.bf16.msra.mxu0 0
    %1359 = vmatprep.mubr.bf16.mxu0 0
    %1360 = vmatmul.mubr.bf16.gmra.mrb[0].mxu0 %v1285
    %v1361 = vpop.f32.mrb[0].mxu0
    %v1362 = vadd.f32 0.0, %v1361
    %v1363 = vpop.f32.mrb[0].mxu0
    %v1364 = vpop.f32.mrb[0].mxu0
    %v1365 = vpop.f32.mrb[0].mxu0
    %1366 = vdwg.mxu0
    %1367 = vmatprep.subr.bf16.mxu0 0
    %1368 = vmatpush1.bf16.msra.mxu0 %v638
    %1369 = vmatprep.subr.bf16.mxu0 0
    %1370 = vmatpush1.bf16.msra.mxu0 %v639
    %1371 = vmatprep.subr.bf16.mxu0 0
    %1372 = vmatpush1.bf16.msra.mxu0 0
    %1373 = vmatprep.subr.bf16.mxu0 0
    %1374 = vmatpush1.bf16.msra.mxu0 0
    %1375 = vmatprep.subr.bf16.mxu0 0
    %1376 = vmatpush1.bf16.msra.mxu0 0
    %1377 = vmatprep.subr.bf16.mxu0 0
    %1378 = vmatpush1.bf16.msra.mxu0 0
    %1379 = vmatprep.subr.bf16.mxu0 0
    %1380 = vmatpush1.bf16.msra.mxu0 0
    %1381 = vmatprep.subr.bf16.mxu0 0
    %1382 = vmatpush1.bf16.msra.mxu0 0
    %1383 = vmatprep.subr.bf16.mxu0 0
    %1384 = vmatpush1.bf16.msra.mxu0 0
    %1385 = vmatprep.subr.bf16.mxu0 0
    %1386 = vmatpush1.bf16.msra.mxu0 0
    %1387 = vmatprep.subr.bf16.mxu0 0
    %1388 = vmatpush1.bf16.msra.mxu0 0
    %1389 = vmatprep.subr.bf16.mxu0 0
    %1390 = vmatpush1.bf16.msra.mxu0 0
    %1391 = vmatprep.subr.bf16.mxu0 0
    %1392 = vmatpush1.bf16.msra.mxu0 0
    %1393 = vmatprep.subr.bf16.mxu0 0
    %1394 = vmatpush1.bf16.msra.mxu0 0
    %1395 = vmatprep.subr.bf16.mxu0 0
    %1396 = vmatpush1.bf16.msra.mxu0 0
    %1397 = vmatprep.subr.bf16.mxu0 0
    %1398 = vmatpush1.bf16.msra.mxu0 0
    %1399 = vmatprep.mubr.bf16.mxu0 0
    %1400 = vmatmul.mubr.bf16.gmra.mrb[0].mxu0 %v1285
    %v1401 = vpop.f32.mrb[0].mxu0
    %v1402 = vadd.f32 %v520, %v1401
    %v1403 = vpop.f32.mrb[0].mxu0
    %v1404 = vpop.f32.mrb[0].mxu0
    %v1405 = vpop.f32.mrb[0].mxu0
    %1406 = vdwg.mxu0
    %v1407 = vadd.f32 %v332, %v1322
    %v1408 = vxor.u32 %v1407, 2147483648
    %v1409 = vmul.f32 %v1408, 1.442695
    %v1410 = vpow.pop %v1409
    %v1411 = vadd.f32 %v1410, 1.0
    %v1412 = vrcp.pop %v1411
    %v1413 = vmul.f32 1.0, %v1412
    %v1414 = vadd.f32 %v412, %v1362
    %v1415 = vxor.u32 %v1414, 2147483648
    %v1416 = vmul.f32 %v1415, 1.442695
    %v1417 = vpow.pop %v1416
    %v1418 = vadd.f32 %v1417, 1.0
    %v1419 = vrcp.pop %v1418
    %v1420 = vmul.f32 1.0, %v1419
    %v1421 = vmul.f32 %v1413, %v1402
    %v1422 = vadd.f32 %v492, %v1421
    %v1423 = vtanh.pop %v1422
    %v1424 = vsub.f32 1.0, %v1420
    %v1425 = vmul.f32 %v1424, %v1423
    %v1426 = vmul.f32 %v1420, %v1282
    %v1427 = vadd.f32 %v1425, %v1426
    %v1428 = vpack.c.bf16 %v1427, %v1427
    %v1430 = vsel %vm534, %v1428, 0
    %1432 = vmatprep.subr.bf16.mxu0 0
    %1433 = vmatpush1.bf16.msra.mxu0 %v530
    %1434 = vmatprep.subr.bf16.mxu0 0
    %1435 = vmatpush1.bf16.msra.mxu0 %v531
    %1436 = vmatprep.subr.bf16.mxu0 0
    %1437 = vmatpush1.bf16.msra.mxu0 0
    %1438 = vmatprep.subr.bf16.mxu0 0
    %1439 = vmatpush1.bf16.msra.mxu0 0
    %1440 = vmatprep.subr.bf16.mxu0 0
    %1441 = vmatpush1.bf16.msra.mxu0 0
    %1442 = vmatprep.subr.bf16.mxu0 0
    %1443 = vmatpush1.bf16.msra.mxu0 0
    %1444 = vmatprep.subr.bf16.mxu0 0
    %1445 = vmatpush1.bf16.msra.mxu0 0
    %1446 = vmatprep.subr.bf16.mxu0 0
    %1447 = vmatpush1.bf16.msra.mxu0 0
    %1448 = vmatprep.subr.bf16.mxu0 0
    %1449 = vmatpush1.bf16.msra.mxu0 0
    %1450 = vmatprep.subr.bf16.mxu0 0
    %1451 = vmatpush1.bf16.msra.mxu0 0
    %1452 = vmatprep.subr.bf16.mxu0 0
    %1453 = vmatpush1.bf16.msra.mxu0 0
    %1454 = vmatprep.subr.bf16.mxu0 0
    %1455 = vmatpush1.bf16.msra.mxu0 0
    %1456 = vmatprep.subr.bf16.mxu0 0
    %1457 = vmatpush1.bf16.msra.mxu0 0
    %1458 = vmatprep.subr.bf16.mxu0 0
    %1459 = vmatpush1.bf16.msra.mxu0 0
    %1460 = vmatprep.subr.bf16.mxu0 0
    %1461 = vmatpush1.bf16.msra.mxu0 0
    %1462 = vmatprep.subr.bf16.mxu0 0
    %1463 = vmatpush1.bf16.msra.mxu0 0
    %1464 = vmatprep.mubr.bf16.mxu0 0
    %1465 = vmatmul.mubr.bf16.gmra.mrb[0].mxu0 %v1430
    %v1466 = vpop.f32.mrb[0].mxu0
    %v1467 = vadd.f32 0.0, %v1466
    %v1468 = vpop.f32.mrb[0].mxu0
    %v1469 = vpop.f32.mrb[0].mxu0
    %v1470 = vpop.f32.mrb[0].mxu0
    %1471 = vdwg.mxu0
    %1472 = vmatprep.subr.bf16.mxu0 0
    %1473 = vmatpush1.bf16.msra.mxu0 %v586
    %1474 = vmatprep.subr.bf16.mxu0 0
    %1475 = vmatpush1.bf16.msra.mxu0 %v587
    %1476 = vmatprep.subr.bf16.mxu0 0
    %1477 = vmatpush1.bf16.msra.mxu0 0
    %1478 = vmatprep.subr.bf16.mxu0 0
    %1479 = vmatpush1.bf16.msra.mxu0 0
    %1480 = vmatprep.subr.bf16.mxu0 0
    %1481 = vmatpush1.bf16.msra.mxu0 0
    %1482 = vmatprep.subr.bf16.mxu0 0
    %1483 = vmatpush1.bf16.msra.mxu0 0
    %1484 = vmatprep.subr.bf16.mxu0 0
    %1485 = vmatpush1.bf16.msra.mxu0 0
    %1486 = vmatprep.subr.bf16.mxu0 0
    %1487 = vmatpush1.bf16.msra.mxu0 0
    %1488 = vmatprep.subr.bf16.mxu0 0
    %1489 = vmatpush1.bf16.msra.mxu0 0
    %1490 = vmatprep.subr.bf16.mxu0 0
    %1491 = vmatpush1.bf16.msra.mxu0 0
    %1492 = vmatprep.subr.bf16.mxu0 0
    %1493 = vmatpush1.bf16.msra.mxu0 0
    %1494 = vmatprep.subr.bf16.mxu0 0
    %1495 = vmatpush1.bf16.msra.mxu0 0
    %1496 = vmatprep.subr.bf16.mxu0 0
    %1497 = vmatpush1.bf16.msra.mxu0 0
    %1498 = vmatprep.subr.bf16.mxu0 0
    %1499 = vmatpush1.bf16.msra.mxu0 0
    %1500 = vmatprep.subr.bf16.mxu0 0
    %1501 = vmatpush1.bf16.msra.mxu0 0
    %1502 = vmatprep.subr.bf16.mxu0 0
    %1503 = vmatpush1.bf16.msra.mxu0 0
    %1504 = vmatprep.mubr.bf16.mxu0 0
    %1505 = vmatmul.mubr.bf16.gmra.mrb[0].mxu0 %v1430
    %v1506 = vpop.f32.mrb[0].mxu0
    %v1507 = vadd.f32 0.0, %v1506
    %v1508 = vpop.f32.mrb[0].mxu0
    %v1509 = vpop.f32.mrb[0].mxu0
    %v1510 = vpop.f32.mrb[0].mxu0
    %1511 = vdwg.mxu0
    %1512 = vmatprep.subr.bf16.mxu0 0
    %1513 = vmatpush1.bf16.msra.mxu0 %v638
    %1514 = vmatprep.subr.bf16.mxu0 0
    %1515 = vmatpush1.bf16.msra.mxu0 %v639
    %1516 = vmatprep.subr.bf16.mxu0 0
    %1517 = vmatpush1.bf16.msra.mxu0 0
    %1518 = vmatprep.subr.bf16.mxu0 0
    %1519 = vmatpush1.bf16.msra.mxu0 0
    %1520 = vmatprep.subr.bf16.mxu0 0
    %1521 = vmatpush1.bf16.msra.mxu0 0
    %1522 = vmatprep.subr.bf16.mxu0 0
    %1523 = vmatpush1.bf16.msra.mxu0 0
    %1524 = vmatprep.subr.bf16.mxu0 0
    %1525 = vmatpush1.bf16.msra.mxu0 0
    %1526 = vmatprep.subr.bf16.mxu0 0
    %1527 = vmatpush1.bf16.msra.mxu0 0
    %1528 = vmatprep.subr.bf16.mxu0 0
    %1529 = vmatpush1.bf16.msra.mxu0 0
    %1530 = vmatprep.subr.bf16.mxu0 0
    %1531 = vmatpush1.bf16.msra.mxu0 0
    %1532 = vmatprep.subr.bf16.mxu0 0
    %1533 = vmatpush1.bf16.msra.mxu0 0
    %1534 = vmatprep.subr.bf16.mxu0 0
    %1535 = vmatpush1.bf16.msra.mxu0 0
    %1536 = vmatprep.subr.bf16.mxu0 0
    %1537 = vmatpush1.bf16.msra.mxu0 0
    %1538 = vmatprep.subr.bf16.mxu0 0
    %1539 = vmatpush1.bf16.msra.mxu0 0
    %1540 = vmatprep.subr.bf16.mxu0 0
    %1541 = vmatpush1.bf16.msra.mxu0 0
    %1542 = vmatprep.subr.bf16.mxu0 0
    %1543 = vmatpush1.bf16.msra.mxu0 0
    %1544 = vmatprep.mubr.bf16.mxu0 0
    %1545 = vmatmul.mubr.bf16.gmra.mrb[0].mxu0 %v1430
    %v1546 = vpop.f32.mrb[0].mxu0
    %v1547 = vadd.f32 %v520, %v1546
    %v1548 = vpop.f32.mrb[0].mxu0
    %v1549 = vpop.f32.mrb[0].mxu0
    %v1550 = vpop.f32.mrb[0].mxu0
    %1551 = vdwg.mxu0
    %v1552 = vadd.f32 %v337, %v1467
    %v1553 = vxor.u32 %v1552, 2147483648
    %v1554 = vmul.f32 %v1553, 1.442695
    %v1555 = vpow.pop %v1554
    %v1556 = vadd.f32 %v1555, 1.0
    %v1557 = vrcp.pop %v1556
    %v1558 = vmul.f32 1.0, %v1557
    %v1559 = vadd.f32 %v417, %v1507
    %v1560 = vxor.u32 %v1559, 2147483648
    %v1561 = vmul.f32 %v1560, 1.442695
    %v1562 = vpow.pop %v1561
    %v1563 = vadd.f32 %v1562, 1.0
    %v1564 = vrcp.pop %v1563
    %v1565 = vmul.f32 1.0, %v1564
    %v1566 = vmul.f32 %v1558, %v1547
    %v1567 = vadd.f32 %v497, %v1566
    %v1568 = vtanh.pop %v1567
    %v1569 = vsub.f32 1.0, %v1565
    %v1570 = vmul.f32 %v1569, %v1568
    %v1571 = vmul.f32 %v1565, %v1427
    %v1572 = vadd.f32 %v1570, %v1571
    %v1573 = vpack.c.bf16 %v1572, %v1572
    %v1575 = vsel %vm534, %v1573, 0
    %1577 = vmatprep.subr.bf16.mxu0 0
    %1578 = vmatpush1.bf16.msra.mxu0 %v530
    %1579 = vmatprep.subr.bf16.mxu0 0
    %1580 = vmatpush1.bf16.msra.mxu0 %v531
    %1581 = vmatprep.subr.bf16.mxu0 0
    %1582 = vmatpush1.bf16.msra.mxu0 0
    %1583 = vmatprep.subr.bf16.mxu0 0
    %1584 = vmatpush1.bf16.msra.mxu0 0
    %1585 = vmatprep.subr.bf16.mxu0 0
    %1586 = vmatpush1.bf16.msra.mxu0 0
    %1587 = vmatprep.subr.bf16.mxu0 0
    %1588 = vmatpush1.bf16.msra.mxu0 0
    %1589 = vmatprep.subr.bf16.mxu0 0
    %1590 = vmatpush1.bf16.msra.mxu0 0
    %1591 = vmatprep.subr.bf16.mxu0 0
    %1592 = vmatpush1.bf16.msra.mxu0 0
    %1593 = vmatprep.subr.bf16.mxu0 0
    %1594 = vmatpush1.bf16.msra.mxu0 0
    %1595 = vmatprep.subr.bf16.mxu0 0
    %1596 = vmatpush1.bf16.msra.mxu0 0
    %1597 = vmatprep.subr.bf16.mxu0 0
    %1598 = vmatpush1.bf16.msra.mxu0 0
    %1599 = vmatprep.subr.bf16.mxu0 0
    %1600 = vmatpush1.bf16.msra.mxu0 0
    %1601 = vmatprep.subr.bf16.mxu0 0
    %1602 = vmatpush1.bf16.msra.mxu0 0
    %1603 = vmatprep.subr.bf16.mxu0 0
    %1604 = vmatpush1.bf16.msra.mxu0 0
    %1605 = vmatprep.subr.bf16.mxu0 0
    %1606 = vmatpush1.bf16.msra.mxu0 0
    %1607 = vmatprep.subr.bf16.mxu0 0
    %1608 = vmatpush1.bf16.msra.mxu0 0
    %1609 = vmatprep.mubr.bf16.mxu0 0
    %1610 = vmatmul.mubr.bf16.gmra.mrb[0].mxu0 %v1575
    %v1611 = vpop.f32.mrb[0].mxu0
    %v1612 = vadd.f32 0.0, %v1611
    %v1613 = vpop.f32.mrb[0].mxu0
    %v1614 = vpop.f32.mrb[0].mxu0
    %v1615 = vpop.f32.mrb[0].mxu0
    %1616 = vdwg.mxu0
    %1617 = vmatprep.subr.bf16.mxu0 0
    %1618 = vmatpush1.bf16.msra.mxu0 %v586
    %1619 = vmatprep.subr.bf16.mxu0 0
    %1620 = vmatpush1.bf16.msra.mxu0 %v587
    %1621 = vmatprep.subr.bf16.mxu0 0
    %1622 = vmatpush1.bf16.msra.mxu0 0
    %1623 = vmatprep.subr.bf16.mxu0 0
    %1624 = vmatpush1.bf16.msra.mxu0 0
    %1625 = vmatprep.subr.bf16.mxu0 0
    %1626 = vmatpush1.bf16.msra.mxu0 0
    %1627 = vmatprep.subr.bf16.mxu0 0
    %1628 = vmatpush1.bf16.msra.mxu0 0
    %1629 = vmatprep.subr.bf16.mxu0 0
    %1630 = vmatpush1.bf16.msra.mxu0 0
    %1631 = vmatprep.subr.bf16.mxu0 0
    %1632 = vmatpush1.bf16.msra.mxu0 0
    %1633 = vmatprep.subr.bf16.mxu0 0
    %1634 = vmatpush1.bf16.msra.mxu0 0
    %1635 = vmatprep.subr.bf16.mxu0 0
    %1636 = vmatpush1.bf16.msra.mxu0 0
    %1637 = vmatprep.subr.bf16.mxu0 0
    %1638 = vmatpush1.bf16.msra.mxu0 0
    %1639 = vmatprep.subr.bf16.mxu0 0
    %1640 = vmatpush1.bf16.msra.mxu0 0
    %1641 = vmatprep.subr.bf16.mxu0 0
    %1642 = vmatpush1.bf16.msra.mxu0 0
    %1643 = vmatprep.subr.bf16.mxu0 0
    %1644 = vmatpush1.bf16.msra.mxu0 0
    %1645 = vmatprep.subr.bf16.mxu0 0
    %1646 = vmatpush1.bf16.msra.mxu0 0
    %1647 = vmatprep.subr.bf16.mxu0 0
    %1648 = vmatpush1.bf16.msra.mxu0 0
    %1649 = vmatprep.mubr.bf16.mxu0 0
    %1650 = vmatmul.mubr.bf16.gmra.mrb[0].mxu0 %v1575
    %v1651 = vpop.f32.mrb[0].mxu0
    %v1652 = vadd.f32 0.0, %v1651
    %v1653 = vpop.f32.mrb[0].mxu0
    %v1654 = vpop.f32.mrb[0].mxu0
    %v1655 = vpop.f32.mrb[0].mxu0
    %1656 = vdwg.mxu0
    %1657 = vmatprep.subr.bf16.mxu0 0
    %1658 = vmatpush1.bf16.msra.mxu0 %v638
    %1659 = vmatprep.subr.bf16.mxu0 0
    %1660 = vmatpush1.bf16.msra.mxu0 %v639
    %1661 = vmatprep.subr.bf16.mxu0 0
    %1662 = vmatpush1.bf16.msra.mxu0 0
    %1663 = vmatprep.subr.bf16.mxu0 0
    %1664 = vmatpush1.bf16.msra.mxu0 0
    %1665 = vmatprep.subr.bf16.mxu0 0
    %1666 = vmatpush1.bf16.msra.mxu0 0
    %1667 = vmatprep.subr.bf16.mxu0 0
    %1668 = vmatpush1.bf16.msra.mxu0 0
    %1669 = vmatprep.subr.bf16.mxu0 0
    %1670 = vmatpush1.bf16.msra.mxu0 0
    %1671 = vmatprep.subr.bf16.mxu0 0
    %1672 = vmatpush1.bf16.msra.mxu0 0
    %1673 = vmatprep.subr.bf16.mxu0 0
    %1674 = vmatpush1.bf16.msra.mxu0 0
    %1675 = vmatprep.subr.bf16.mxu0 0
    %1676 = vmatpush1.bf16.msra.mxu0 0
    %1677 = vmatprep.subr.bf16.mxu0 0
    %1678 = vmatpush1.bf16.msra.mxu0 0
    %1679 = vmatprep.subr.bf16.mxu0 0
    %1680 = vmatpush1.bf16.msra.mxu0 0
    %1681 = vmatprep.subr.bf16.mxu0 0
    %1682 = vmatpush1.bf16.msra.mxu0 0
    %1683 = vmatprep.subr.bf16.mxu0 0
    %1684 = vmatpush1.bf16.msra.mxu0 0
    %1685 = vmatprep.subr.bf16.mxu0 0
    %1686 = vmatpush1.bf16.msra.mxu0 0
    %1687 = vmatprep.subr.bf16.mxu0 0
    %1688 = vmatpush1.bf16.msra.mxu0 0
    %1689 = vmatprep.mubr.bf16.mxu0 0
    %1690 = vmatmul.mubr.bf16.gmra.mrb[0].mxu0 %v1575
    %v1691 = vpop.f32.mrb[0].mxu0
    %v1692 = vadd.f32 %v520, %v1691
    %v1693 = vpop.f32.mrb[0].mxu0
    %v1694 = vpop.f32.mrb[0].mxu0
    %v1695 = vpop.f32.mrb[0].mxu0
    %1696 = vdwg.mxu0
    %v1697 = vadd.f32 %v340, %v1612
    %v1698 = vxor.u32 %v1697, 2147483648
    %v1699 = vmul.f32 %v1698, 1.442695
    %v1700 = vpow.pop %v1699
    %v1701 = vadd.f32 %v1700, 1.0
    %v1702 = vrcp.pop %v1701
    %v1703 = vmul.f32 1.0, %v1702
    %v1704 = vadd.f32 %v420, %v1652
    %v1705 = vxor.u32 %v1704, 2147483648
    %v1706 = vmul.f32 %v1705, 1.442695
    %v1707 = vpow.pop %v1706
    %v1708 = vadd.f32 %v1707, 1.0
    %v1709 = vrcp.pop %v1708
    %v1710 = vmul.f32 1.0, %v1709
    %v1711 = vmul.f32 %v1703, %v1692
    %v1712 = vadd.f32 %v500, %v1711
    %v1713 = vtanh.pop %v1712
    %v1714 = vsub.f32 1.0, %v1710
    %v1715 = vmul.f32 %v1714, %v1713
    %v1716 = vmul.f32 %v1710, %v1572
    %v1717 = vadd.f32 %v1715, %v1716
    %v1718 = vld [vmem:[#allocation16] sm:$0xf]
    %v1719 = vld [vmem:[#allocation16 + $0x4] sm:$0xf]
    %v1720 = vld [vmem:[%s14] sm:$0x1]
    %v1722 = vlaneseq
    %v1723 = vshrl.u32 %v1722, 7
    %v1724 = vsub.s32 0, %v1723
    %v1725 = vrot.slane %v1720, %v1724
    %v1729 = vunpack.c.l.b16 %v1718
    %v1730 = vunpack.c.l.b16 %v1719
    %v1731 = vpack.c.b16 %v1730, %v1729
    %v1734 = vsel %vm265, %v229, 0
    %1736 = vmatprep.subr.bf16.mxu0 0
    %1737 = vmatpush1.bf16.msra.mxu0 %v1731
    %1738 = vmatprep.subr.bf16.mxu0 0
    %1739 = vmatpush1.bf16.msra.mxu0 0
    %1740 = vmatprep.subr.bf16.mxu0 0
    %1741 = vmatpush1.bf16.msra.mxu0 0
    %1742 = vmatprep.subr.bf16.mxu0 0
    %1743 = vmatpush1.bf16.msra.mxu0 0
    %1744 = vmatprep.subr.bf16.mxu0 0
    %1745 = vmatpush1.bf16.msra.mxu0 0
    %1746 = vmatprep.subr.bf16.mxu0 0
    %1747 = vmatpush1.bf16.msra.mxu0 0
    %1748 = vmatprep.subr.bf16.mxu0 0
    %1749 = vmatpush1.bf16.msra.mxu0 0
    %1750 = vmatprep.subr.bf16.mxu0 0
    %1751 = vmatpush1.bf16.msra.mxu0 0
    %1752 = vmatprep.subr.bf16.mxu0 0
    %1753 = vmatpush1.bf16.msra.mxu0 0
    %1754 = vmatprep.subr.bf16.mxu0 0
    %1755 = vmatpush1.bf16.msra.mxu0 0
    %1756 = vmatprep.subr.bf16.mxu0 0
    %1757 = vmatpush1.bf16.msra.mxu0 0
    %1758 = vmatprep.subr.bf16.mxu0 0
    %1759 = vmatpush1.bf16.msra.mxu0 0
    %1760 = vmatprep.subr.bf16.mxu0 0
    %1761 = vmatpush1.bf16.msra.mxu0 0
    %1762 = vmatprep.subr.bf16.mxu0 0
    %1763 = vmatpush1.bf16.msra.mxu0 0
    %1764 = vmatprep.subr.bf16.mxu0 0
    %1765 = vmatpush1.bf16.msra.mxu0 0
    %1766 = vmatprep.subr.bf16.mxu0 0
    %1767 = vmatpush1.bf16.msra.mxu0 0
    %1768 = vmatprep.mubr.bf16.mxu0 0
    %1769 = vmatmul.mubr.bf16.gmra.mrb[0].mxu0 %v1734
    %v1770 = vpop.f32.mrb[0].mxu0
    %v1771 = vadd.f32 %v1725, %v1770
    %v1772 = vpop.f32.mrb[0].mxu0
    %v1773 = vpop.f32.mrb[0].mxu0
    %v1774 = vpop.f32.mrb[0].mxu0
    %1775 = vdwg.mxu0
    %v1776 = vld [vmem:[#allocation17] sm:$0xf]
    %v1777 = vld [vmem:[#allocation17 + $0x4] sm:$0xf]
    %v1778 = vld [vmem:[%s15] sm:$0x1]
    %v1780 = vlaneseq
    %v1781 = vshrl.u32 %v1780, 7
    %v1782 = vsub.s32 0, %v1781
    %v1783 = vrot.slane %v1778, %v1782
    %v1787 = vunpack.c.l.b16 %v1776
    %v1788 = vunpack.c.l.b16 %v1777
    %v1789 = vpack.c.b16 %v1788, %v1787
    %1791 = vmatprep.subr.bf16.mxu0 0
    %1792 = vmatpush1.bf16.msra.mxu0 %v1789
    %1793 = vmatprep.subr.bf16.mxu0 0
    %1794 = vmatpush1.bf16.msra.mxu0 0
    %1795 = vmatprep.subr.bf16.mxu0 0
    %1796 = vmatpush1.bf16.msra.mxu0 0
    %1797 = vmatprep.subr.bf16.mxu0 0
    %1798 = vmatpush1.bf16.msra.mxu0 0
    %1799 = vmatprep.subr.bf16.mxu0 0
    %1800 = vmatpush1.bf16.msra.mxu0 0
    %1801 = vmatprep.subr.bf16.mxu0 0
    %1802 = vmatpush1.bf16.msra.mxu0 0
    %1803 = vmatprep.subr.bf16.mxu0 0
    %1804 = vmatpush1.bf16.msra.mxu0 0
    %1805 = vmatprep.subr.bf16.mxu0 0
    %1806 = vmatpush1.bf16.msra.mxu0 0
    %1807 = vmatprep.subr.bf16.mxu0 0
    %1808 = vmatpush1.bf16.msra.mxu0 0
    %1809 = vmatprep.subr.bf16.mxu0 0
    %1810 = vmatpush1.bf16.msra.mxu0 0
    %1811 = vmatprep.subr.bf16.mxu0 0
    %1812 = vmatpush1.bf16.msra.mxu0 0
    %1813 = vmatprep.subr.bf16.mxu0 0
    %1814 = vmatpush1.bf16.msra.mxu0 0
    %1815 = vmatprep.subr.bf16.mxu0 0
    %1816 = vmatpush1.bf16.msra.mxu0 0
    %1817 = vmatprep.subr.bf16.mxu0 0
    %1818 = vmatpush1.bf16.msra.mxu0 0
    %1819 = vmatprep.subr.bf16.mxu0 0
    %1820 = vmatpush1.bf16.msra.mxu0 0
    %1821 = vmatprep.subr.bf16.mxu0 0
    %1822 = vmatpush1.bf16.msra.mxu0 0
    %1823 = vmatprep.mubr.bf16.mxu0 0
    %1824 = vmatmul.mubr.bf16.gmra.mrb[0].mxu0 %v1734
    %v1825 = vpop.f32.mrb[0].mxu0
    %v1826 = vadd.f32 %v1783, %v1825
    %v1827 = vpop.f32.mrb[0].mxu0
    %v1828 = vpop.f32.mrb[0].mxu0
    %v1829 = vpop.f32.mrb[0].mxu0
    %1830 = vdwg.mxu0
    %v1831 = vld [vmem:[#allocation19] sm:$0xf]
    %v1832 = vld [vmem:[#allocation19 + $0x4] sm:$0xf]
    %v1833 = vld [vmem:[%s16] sm:$0x1]
    %v1835 = vlaneseq
    %v1836 = vshrl.u32 %v1835, 7
    %v1837 = vsub.s32 0, %v1836
    %v1838 = vrot.slane %v1833, %v1837
    %v1842 = vunpack.c.l.b16 %v1831
    %v1843 = vunpack.c.l.b16 %v1832
    %v1844 = vpack.c.b16 %v1843, %v1842
    %1846 = vmatprep.subr.bf16.mxu0 0
    %1847 = vmatpush1.bf16.msra.mxu0 %v1844
    %1848 = vmatprep.subr.bf16.mxu0 0
    %1849 = vmatpush1.bf16.msra.mxu0 0
    %1850 = vmatprep.subr.bf16.mxu0 0
    %1851 = vmatpush1.bf16.msra.mxu0 0
    %1852 = vmatprep.subr.bf16.mxu0 0
    %1853 = vmatpush1.bf16.msra.mxu0 0
    %1854 = vmatprep.subr.bf16.mxu0 0
    %1855 = vmatpush1.bf16.msra.mxu0 0
    %1856 = vmatprep.subr.bf16.mxu0 0
    %1857 = vmatpush1.bf16.msra.mxu0 0
    %1858 = vmatprep.subr.bf16.mxu0 0
    %1859 = vmatpush1.bf16.msra.mxu0 0
    %1860 = vmatprep.subr.bf16.mxu0 0
    %1861 = vmatpush1.bf16.msra.mxu0 0
    %1862 = vmatprep.subr.bf16.mxu0 0
    %1863 = vmatpush1.bf16.msra.mxu0 0
    %1864 = vmatprep.subr.bf16.mxu0 0
    %1865 = vmatpush1.bf16.msra.mxu0 0
    %1866 = vmatprep.subr.bf16.mxu0 0
    %1867 = vmatpush1.bf16.msra.mxu0 0
    %1868 = vmatprep.subr.bf16.mxu0 0
    %1869 = vmatpush1.bf16.msra.mxu0 0
    %1870 = vmatprep.subr.bf16.mxu0 0
    %1871 = vmatpush1.bf16.msra.mxu0 0
    %1872 = vmatprep.subr.bf16.mxu0 0
    %1873 = vmatpush1.bf16.msra.mxu0 0
    %1874 = vmatprep.subr.bf16.mxu0 0
    %1875 = vmatpush1.bf16.msra.mxu0 0
    %1876 = vmatprep.subr.bf16.mxu0 0
    %1877 = vmatpush1.bf16.msra.mxu0 0
    %1878 = vmatprep.mubr.bf16.mxu0 0
    %1879 = vmatmul.mubr.bf16.gmra.mrb[0].mxu0 %v1734
    %v1880 = vpop.f32.mrb[0].mxu0
    %v1881 = vadd.f32 %v1838, %v1880
    %v1882 = vpop.f32.mrb[0].mxu0
    %v1883 = vpop.f32.mrb[0].mxu0
    %v1884 = vpop.f32.mrb[0].mxu0
    %1885 = vdwg.mxu0
    %v1886 = vxor.u32 %v1771, 2147483648
    %v1887 = vmul.f32 %v1886, 1.442695
    %v1888 = vpow.pop %v1887
    %v1889 = vadd.f32 %v1888, 1.0
    %v1890 = vrcp.pop %v1889
    %v1891 = vmul.f32 1.0, %v1890
    %v1892 = vxor.u32 %v1826, 2147483648
    %v1893 = vmul.f32 %v1892, 1.442695
    %v1894 = vpow.pop %v1893
    %v1895 = vadd.f32 %v1894, 1.0
    %v1896 = vrcp.pop %v1895
    %v1897 = vmul.f32 1.0, %v1896
    %v1898 = vld [vmem:[%s17] sm:$0x1]
    %v1900 = vlaneseq
    %v1901 = vshrl.u32 %v1900, 7
    %v1902 = vsub.s32 0, %v1901
    %v1903 = vrot.slane %v1898, %v1902
    %v1905 = vmul.f32 %v1891, %v1903
    %v1906 = vadd.f32 %v1881, %v1905
    %v1907 = vtanh.pop %v1906
    %v1908 = vsub.f32 1.0, %v1897
    %v1909 = vmul.f32 %v1908, %v1907
    %v1910 = vpack.c.bf16 %v1717, %v1717
    %v1911 = vld [vmem:[%s18] sm:$0xf]
    %v1912 = vld [vmem:[%s18 + $0x4] sm:$0xf]
    %v1913 = vld [vmem:[%s18 + $0x8] sm:$0xf]
    %v1914 = vld [vmem:[%s18 + $0xc] sm:$0xf]
    %v1915 = vpack.c.bf16 %v1909, %v1909
    %v1916 = vld [vmem:[%s19] sm:$0xf]
    %v1917 = vld [vmem:[%s19 + $0x4] sm:$0xf]
    %v1918 = vld [vmem:[%s19 + $0x8] sm:$0xf]
    %v1919 = vld [vmem:[%s19 + $0xc] sm:$0xf]
    %v1924 = vunpack.c.l.b16 %v1916
    %v1925 = vunpack.c.l.b16 %v1917
    %v1926 = vunpack.c.l.b16 %v1918
    %v1927 = vunpack.c.l.b16 %v1919
    %v1928 = vpack.c.b16 %v1925, %v1924
    %v1929 = vpack.c.b16 %v1927, %v1926
    %v1933 = vsel %vm534, %v1915, 0
    %1935 = vmatprep.subr.bf16.mxu0 0
    %1936 = vmatpush1.bf16.msra.mxu0 %v1928
    %1937 = vmatprep.subr.bf16.mxu0 0
    %1938 = vmatpush1.bf16.msra.mxu0 %v1929
    %1939 = vmatprep.subr.bf16.mxu0 0
    %1940 = vmatpush1.bf16.msra.mxu0 0
    %1941 = vmatprep.subr.bf16.mxu0 0
    %1942 = vmatpush1.bf16.msra.mxu0 0
    %1943 = vmatprep.subr.bf16.mxu0 0
    %1944 = vmatpush1.bf16.msra.mxu0 0
    %1945 = vmatprep.subr.bf16.mxu0 0
    %1946 = vmatpush1.bf16.msra.mxu0 0
    %1947 = vmatprep.subr.bf16.mxu0 0
    %1948 = vmatpush1.bf16.msra.mxu0 0
    %1949 = vmatprep.subr.bf16.mxu0 0
    %1950 = vmatpush1.bf16.msra.mxu0 0
    %1951 = vmatprep.subr.bf16.mxu0 0
    %1952 = vmatpush1.bf16.msra.mxu0 0
    %1953 = vmatprep.subr.bf16.mxu0 0
    %1954 = vmatpush1.bf16.msra.mxu0 0
    %1955 = vmatprep.subr.bf16.mxu0 0
    %1956 = vmatpush1.bf16.msra.mxu0 0
    %1957 = vmatprep.subr.bf16.mxu0 0
    %1958 = vmatpush1.bf16.msra.mxu0 0
    %1959 = vmatprep.subr.bf16.mxu0 0
    %1960 = vmatpush1.bf16.msra.mxu0 0
    %1961 = vmatprep.subr.bf16.mxu0 0
    %1962 = vmatpush1.bf16.msra.mxu0 0
    %1963 = vmatprep.subr.bf16.mxu0 0
    %1964 = vmatpush1.bf16.msra.mxu0 0
    %1965 = vmatprep.subr.bf16.mxu0 0
    %1966 = vmatpush1.bf16.msra.mxu0 0
    %1967 = vmatprep.mubr.bf16.mxu0 0
    %1968 = vmatmul.mubr.bf16.gmra.mrb[0].mxu0 %v1933
    %v1969 = vpop.f32.mrb[0].mxu0
    %v1970 = vadd.f32 0.0, %v1969
    %v1971 = vpop.f32.mrb[0].mxu0
    %v1972 = vpop.f32.mrb[0].mxu0
    %v1973 = vpop.f32.mrb[0].mxu0
    %1974 = vdwg.mxu0
    %v1979 = vunpack.c.l.b16 %v1911
    %v1980 = vunpack.c.l.b16 %v1912
    %v1981 = vunpack.c.l.b16 %v1913
    %v1982 = vunpack.c.l.b16 %v1914
    %v1983 = vpack.c.b16 %v1980, %v1979
    %v1984 = vpack.c.b16 %v1982, %v1981
    %v1988 = vsel %vm534, %v1910, 0
    %1990 = vmatprep.subr.bf16.mxu0 0
    %1991 = vmatpush1.bf16.msra.mxu0 %v1983
    %1992 = vmatprep.subr.bf16.mxu0 0
    %1993 = vmatpush1.bf16.msra.mxu0 %v1984
    %1994 = vmatprep.subr.bf16.mxu0 0
    %1995 = vmatpush1.bf16.msra.mxu0 0
    %1996 = vmatprep.subr.bf16.mxu0 0
    %1997 = vmatpush1.bf16.msra.mxu0 0
    %1998 = vmatprep.subr.bf16.mxu0 0
    %1999 = vmatpush1.bf16.msra.mxu0 0
    %2000 = vmatprep.subr.bf16.mxu0 0
    %2001 = vmatpush1.bf16.msra.mxu0 0
    %2002 = vmatprep.subr.bf16.mxu0 0
    %2003 = vmatpush1.bf16.msra.mxu0 0
    %2004 = vmatprep.subr.bf16.mxu0 0
    %2005 = vmatpush1.bf16.msra.mxu0 0
    %2006 = vmatprep.subr.bf16.mxu0 0
    %2007 = vmatpush1.bf16.msra.mxu0 0
    %2008 = vmatprep.subr.bf16.mxu0 0
    %2009 = vmatpush1.bf16.msra.mxu0 0
    %2010 = vmatprep.subr.bf16.mxu0 0
    %2011 = vmatpush1.bf16.msra.mxu0 0
    %2012 = vmatprep.subr.bf16.mxu0 0
    %2013 = vmatpush1.bf16.msra.mxu0 0
    %2014 = vmatprep.subr.bf16.mxu0 0
    %2015 = vmatpush1.bf16.msra.mxu0 0
    %2016 = vmatprep.subr.bf16.mxu0 0
    %2017 = vmatpush1.bf16.msra.mxu0 0
    %2018 = vmatprep.subr.bf16.mxu0 0
    %2019 = vmatpush1.bf16.msra.mxu0 0
    %2020 = vmatprep.subr.bf16.mxu0 0
    %2021 = vmatpush1.bf16.msra.mxu0 0
    %2022 = vmatprep.mubr.bf16.mxu0 0
    %2023 = vmatmul.mubr.bf16.gmra.mrb[0].mxu0 %v1988
    %v2024 = vpop.f32.mrb[0].mxu0
    %v2025 = vadd.f32 %v1970, %v2024
    %v2026 = vpop.f32.mrb[0].mxu0
    %v2027 = vpop.f32.mrb[0].mxu0
    %v2028 = vpop.f32.mrb[0].mxu0
    %2029 = vdwg.mxu0
    %v2030 = vld [vmem:[%s20] sm:$0x1]
    %v2032 = vlaneseq
    %v2033 = vshrl.u32 %v2032, 7
    %v2034 = vsub.s32 0, %v2033
    %v2035 = vrot.slane %v2030, %v2034
    %v2037 = vmul.f32 %v2025, %v2035
    %v2038 = vld [vmem:[%s21] sm:$0x1]
    %v2040 = vlaneseq
    %v2041 = vshrl.u32 %v2040, 7
    %v2042 = vsub.s32 0, %v2041
    %v2043 = vrot.slane %v2038, %v2042
    %v2045 = vadd.f32 %v2037, %v2043
    %v2046 = vmax.f32 %v2045, 0.0
    %v2047 = vpack.c.bf16 %v2046, %v2046
    %v2048 = vld [vmem:[%s22] sm:$0xf]
    %v2049 = vld [vmem:[%s22 + $0x4] sm:$0xf]
    %v2050 = vld [vmem:[%s22 + $0x8] sm:$0xf]
    %v2051 = vld [vmem:[%s22 + $0xc] sm:$0xf]
    %v2052 = vld [vmem:[%s23] sm:$0x1]
    %v2054 = vlaneseq
    %v2055 = vshrl.u32 %v2054, 7
    %v2056 = vsub.s32 0, %v2055
    %v2057 = vrot.slane %v2052, %v2056
    %v2063 = vunpack.c.l.b16 %v2048
    %v2064 = vunpack.c.l.b16 %v2049
    %v2065 = vunpack.c.l.b16 %v2050
    %v2066 = vunpack.c.l.b16 %v2051
    %v2067 = vpack.c.b16 %v2064, %v2063
    %v2068 = vpack.c.b16 %v2066, %v2065
    %v2072 = vsel %vm534, %v2047, 0
    %2074 = vmatprep.subr.bf16.mxu0 0
    %2075 = vmatpush1.bf16.msra.mxu0 %v2067
    %2076 = vmatprep.subr.bf16.mxu0 0
    %2077 = vmatpush1.bf16.msra.mxu0 %v2068
    %2078 = vmatprep.subr.bf16.mxu0 0
    %2079 = vmatpush1.bf16.msra.mxu0 0
    %2080 = vmatprep.subr.bf16.mxu0 0
    %2081 = vmatpush1.bf16.msra.mxu0 0
    %2082 = vmatprep.subr.bf16.mxu0 0
    %2083 = vmatpush1.bf16.msra.mxu0 0
    %2084 = vmatprep.subr.bf16.mxu0 0
    %2085 = vmatpush1.bf16.msra.mxu0 0
    %2086 = vmatprep.subr.bf16.mxu0 0
    %2087 = vmatpush1.bf16.msra.mxu0 0
    %2088 = vmatprep.subr.bf16.mxu0 0
    %2089 = vmatpush1.bf16.msra.mxu0 0
    %2090 = vmatprep.subr.bf16.mxu0 0
    %2091 = vmatpush1.bf16.msra.mxu0 0
    %2092 = vmatprep.subr.bf16.mxu0 0
    %2093 = vmatpush1.bf16.msra.mxu0 0
    %2094 = vmatprep.subr.bf16.mxu0 0
    %2095 = vmatpush1.bf16.msra.mxu0 0
    %2096 = vmatprep.subr.bf16.mxu0 0
    %2097 = vmatpush1.bf16.msra.mxu0 0
    %2098 = vmatprep.subr.bf16.mxu0 0
    %2099 = vmatpush1.bf16.msra.mxu0 0
    %2100 = vmatprep.subr.bf16.mxu0 0
    %2101 = vmatpush1.bf16.msra.mxu0 0
    %2102 = vmatprep.subr.bf16.mxu0 0
    %2103 = vmatpush1.bf16.msra.mxu0 0
    %2104 = vmatprep.subr.bf16.mxu0 0
    %2105 = vmatpush1.bf16.msra.mxu0 0
    %2106 = vmatprep.mubr.bf16.mxu0 0
    %2107 = vmatmul.mubr.bf16.gmra.mrb[0].mxu0 %v2072
    %v2108 = vpop.f32.mrb[0].mxu0
    %v2109 = vadd.f32 %v2057, %v2108
    %v2110 = vpop.f32.mrb[0].mxu0
    %v2111 = vpop.f32.mrb[0].mxu0
    %v2112 = vpop.f32.mrb[0].mxu0
    %2113 = vdwg.mxu0
    %vm2114 = vcmask 80896
    %v2115 = vsel %vm2114, %v2109, -inf
    %2116 = vmax.xlane.f32.xlu0 %v2115
    %v2117 = vpop.xlane.xlu0 %2116
    %v2118 = vsub.f32 %v2109, %v2117
    %v2119 = vmul.f32 %v2118, 1.442695
    %v2120 = vpow.pop %v2119
    %v2121 = vsel %vm2114, %v2120, 0.0
    %2122 = vadd.xlane.f32.xlu0 %v2121
    %v2123 = vpop.xlane.xlu0 %2122
    %v2124 = vrcp.pop %v2123
    %v2125 = vmul.f32 %v2120, %v2124
    %2126 = vst.msk [vmem:[#allocation20] sm:$0xff] %vm2114, %v2125
    // Predicated region
    $region142: #{tpu_custom_call.1} parent=1 // pred_check
      _
    $region143: #{tpu_custom_call.1} parent=1 // pred_check_branch
      %2128 = sbr.rel (0) target = $region145
    $region144: #{tpu_custom_call.1} parent=1 // pred_region
      %s2130 = ssub.s32 128, 128
      %2131 = vsyncadd [#allocation4], %s2130
      %s2133 = sshll.u32 [#allocation20], 4
      %s2134 = int_to_ptr.vmem [resolvable:$true] %s2133
      %2136 = dma.vmem_to_hbm [thread:$0]  %s2134, 128, %s24, [#allocation4]
    $region145: #{tpu_custom_call.1} parent=1 // pred_fallthru
      _
    // Predicated region
    $region146: #{tpu_custom_call.1} parent=1 // pred_check
      _
    $region147: #{tpu_custom_call.1} parent=1 // pred_check_branch
      %2138 = sbr.rel (0) target = $region149
    $region148: #{tpu_custom_call.1} parent=1 // pred_region
      %2139 = dma.done [#allocation4], 128
    $region149: #{tpu_custom_call.1} parent=1 // pred_fallthru
      _
    %2140 = vsyncpa [#allocation3], 1
    %2141 = vsyncpa [#allocation6], 1
    %2142 = vsyncpa [#allocation9], 1
    %2143 = vsyncpa [#allocation12], 1
    %2144 = vsyncpa [#allocation15], 1
    %2145 = vsyncpa [#allocation18], 1
    %2146 = vsyncpa [#allocation4], 1

</llo_original>
